<compile_context>
chip_gen: v6e
topology: v6e:2x2x1
jax: 0.10.0
libtpu: 0.0.40
codegen_flags: <defaults>
</compile_context>

<pallas_src>
import math

import jax
import jax.numpy as jnp
from jax.experimental import pallas as pl
from jax.experimental.pallas import tpu as pltpu

_SUBLANE = 8


def _round_up(x, m):
    return (x + m - 1) // m * m


def _fourier_kernel(pos_ref, wt_ref, out_ref):
    # pos_ref : (tile_n, in_features)  positions tile, native layout
    # wt_ref  : (in_features, half)    weight.T with 2*pi pre-folded, resident
    # out_ref : (tile_n, 2*half)       output tile: [cos(f) | sin(f)] on lanes
    in_features = wt_ref.shape[0]
    half = wt_ref.shape[1]

    pos = pos_ref[...].astype(jnp.float32)   # (TN, K)
    wt = wt_ref[...].astype(jnp.float32)     # (K, half)

    # f[n, h] = sum_k pos[n, k] * wt[k, h]
    # K is tiny (e.g. 4): unrolled broadcast-FMAs on the VPU.  The weight row
    # is a cheap (1, half) sublane-broadcast; the position column is the
    # standard keepdims lane-broadcast (softmax-style).  No MXU (>95% padding).
    f = pos[:, 0:1] * wt[0:1, :]
    for k in range(1, in_features):
        f = f + pos[:, k:k + 1] * wt[k:k + 1, :]

    # Write the two halves directly into their lane ranges — no concatenate,
    # no relayout, output already in the module's native [..., out] layout.
    out_ref[:, 0:half] = jnp.cos(f).astype(out_ref.dtype)
    out_ref[:, half:2 * half] = jnp.sin(f).astype(out_ref.dtype)


def _pick_tile_n(n, max_tile=8192):
    """Large tiles amortize the ~0.35us/step overhead; keep >=2 grid steps
    when there is enough work so v7x's two TensorCores both participate."""
    if n > max_tile:
        return max_tile
    if n >= 2048:
        return _round_up(_round_up(n, 2) // 2, _SUBLANE)
    return max(_SUBLANE, _round_up(n, _SUBLANE))


def fourier_positional_embedding_2d(positions_2d, weight, *, tile_n=None,
                                    out_dtype=None):
    """Core: positions_2d [N, in_features], weight [out_features//2, in_features]
    (unscaled nn.Parameter).  Returns [N, out_features] = [cos(f) | sin(f)]."""
    n, in_features = positions_2d.shape
    half, in_features_w = weight.shape
    assert in_features == in_features_w
    out_features = 2 * half
    out_dtype = (positions_2d.dtype if out_dtype is None
                 else jnp.dtype(out_dtype))

    if tile_n is None:
        tile_n = _pick_tile_n(n)
    tile_n = max(_SUBLANE, _round_up(tile_n, _SUBLANE))

    n_pad = _round_up(n, tile_n)
    if n_pad != n:
        positions_2d = jnp.pad(positions_2d, ((0, n_pad - n), (0, 0)))

    # Fold 2*pi into the tiny weight and pre-transpose it once, outside.
    wt_scaled = (2.0 * math.pi) * weight.astype(jnp.float32).T   # (K, half)

    grid = n_pad // tile_n
    cost = pl.CostEstimate(
        flops=2 * n_pad * half * in_features,
        transcendentals=n_pad * out_features,
        bytes_accessed=(positions_2d.size * positions_2d.dtype.itemsize
                        + wt_scaled.size * 4
                        + n_pad * out_features * out_dtype.itemsize),
    )

    out = pl.pallas_call(
        _fourier_kernel,
        out_shape=jax.ShapeDtypeStruct((n_pad, out_features), out_dtype),
        grid_spec=pltpu.PrefetchScalarGridSpec(
            num_scalar_prefetch=0,
            grid=(grid,),
            in_specs=[
                # positions: tiled over N (sublanes), full K on lanes
                pl.BlockSpec((tile_n, in_features), lambda i: (i, 0)),
                # weight is tiny: full matrix resident every step
                pl.BlockSpec((in_features, half), lambda i: (0, 0)),
            ],
            out_specs=pl.BlockSpec((tile_n, out_features), lambda i: (i, 0)),
        ),
        compiler_params=pltpu.CompilerParams(
            dimension_semantics=("parallel",),
            vmem_limit_bytes=48 * 1024 * 1024,
        ),
        cost_estimate=cost,
    )(positions_2d, wt_scaled)

    if n_pad != n:
        out = out[:n]
    return out


def fourier_positional_embedding(positions, weight, *, tile_n=None,
                                 out_dtype=None):
    """PyTorch-interface wrapper.

    positions: [..., in_features]; weight: [out_features//2, in_features].
    Returns [..., out_features] = cat([cos(f), sin(f)], -1), f = 2*pi*pos@W.T.
    Only free row-major reshapes happen outside the kernel (no transposes).
    """
    lead = positions.shape[:-1]
    in_features = positions.shape[-1]
    out_features = 2 * weight.shape[0]
    n = math.prod(lead) if lead else 1

    out = fourier_positional_embedding_2d(
        positions.reshape(n, in_features), weight,
        tile_n=tile_n, out_dtype=out_dtype)
    return out.reshape(*lead, out_features)


def fourier_positional_embedding_ref(positions, weight):
    f = 2.0 * math.pi * jnp.einsum(
        "...k,hk->...h", positions, weight,
        precision=jax.lax.Precision.HIGHEST)
    return jnp.concatenate([jnp.cos(f), jnp.sin(f)], axis=-1)


if __name__ == "__main__":
    # Small, module-consistent shapes:
    #   in_features = 4 (position coords), out_features = 32
    #   batch=2, seq=64 -> N = 128 flattened positions
    in_features = 4
    out_features = 32
    std = 1.0
    batch, seq = 2, 64

    key = jax.random.PRNGKey(0)
    k_pos, k_w = jax.random.split(key)

    positions = jax.random.normal(k_pos, (batch, seq, in_features),
                                  dtype=jnp.float32)
    # deterministic init matching nn.Parameter(torch.randn([out//2, in]) * std)
    weight = jax.random.normal(k_w, (out_features // 2, in_features),
                               dtype=jnp.float32) * std

    out = fourier_positional_embedding(positions, weight)
    out = jax.block_until_ready(out)
    ref = fourier_positional_embedding_ref(positions, weight)
    assert out.shape == (batch, seq, out_features)
    assert jnp.allclose(out, ref, atol=1e-4, rtol=1e-5), "mismatch vs reference"

    # Exercise the multi-step grid + N-padding path (odd N, forced small tile).
    positions2 = jax.random.normal(k_pos, (5, 50, in_features),
                                   dtype=jnp.float32)
    out2 = fourier_positional_embedding(positions2, weight, tile_n=64)
    out2 = jax.block_until_ready(out2)
    ref2 = fourier_positional_embedding_ref(positions2, weight)
    assert out2.shape == (5, 50, out_features)
    assert jnp.allclose(out2, ref2, atol=1e-4, rtol=1e-5), "mismatch (padded)"

    print("KERNEL_OK")
</pallas_src>

<mosaic_0001>
module attributes {stable_mosaic.version = 11 : i64} {
  func.func @_fourier_kernel(%arg0: i32, %arg1: memref<128x4xf32, #tpu.memory_space<vmem>>, %arg2: memref<4x16xf32, #tpu.memory_space<vmem>>, %arg3: memref<128x32xf32, #tpu.memory_space<vmem>>) attributes {dimension_semantics = [#tpu.dimension_semantics<parallel>], iteration_bounds = array<i64: 1>, scalar_prefetch = 0 : i64, scratch_operands = 0 : i64, tpu.core_type = #tpu.core_type<tc>, window_params = [{transform_indices = @transform_0, window_bounds = array<i64: 128, 4>}, {pipeline_mode = #tpu.pipeline_mode<synchronous>, transform_indices = @transform_1, window_bounds = array<i64: 4, 16>}, {transform_indices = @transform_2, window_bounds = array<i64: 128, 32>}]} {
    %c0 = arith.constant 0 : index
    %c0_0 = arith.constant 0 : index
    %0 = vector.load %arg1[%c0, %c0_0] : memref<128x4xf32, #tpu.memory_space<vmem>>, vector<128x4xf32>
    %c0_1 = arith.constant 0 : index
    %c0_2 = arith.constant 0 : index
    %1 = vector.load %arg2[%c0_1, %c0_2] : memref<4x16xf32, #tpu.memory_space<vmem>>, vector<4x16xf32>
    %2 = vector.extract_strided_slice %0 {offsets = [0, 0], sizes = [128, 1], strides = [1, 1]} : vector<128x4xf32> to vector<128x1xf32>
    %3 = vector.extract_strided_slice %1 {offsets = [0, 0], sizes = [1, 16], strides = [1, 1]} : vector<4x16xf32> to vector<1x16xf32>
    %4 = vector.broadcast %2 : vector<128x1xf32> to vector<128x16xf32>
    %5 = vector.broadcast %3 : vector<1x16xf32> to vector<128x16xf32>
    %6 = arith.mulf %4, %5 : vector<128x16xf32>
    %7 = vector.extract_strided_slice %0 {offsets = [0, 1], sizes = [128, 1], strides = [1, 1]} : vector<128x4xf32> to vector<128x1xf32>
    %8 = vector.extract_strided_slice %1 {offsets = [1, 0], sizes = [1, 16], strides = [1, 1]} : vector<4x16xf32> to vector<1x16xf32>
    %9 = vector.broadcast %7 : vector<128x1xf32> to vector<128x16xf32>
    %10 = vector.broadcast %8 : vector<1x16xf32> to vector<128x16xf32>
    %11 = arith.mulf %9, %10 : vector<128x16xf32>
    %12 = arith.addf %6, %11 : vector<128x16xf32>
    %13 = vector.extract_strided_slice %0 {offsets = [0, 2], sizes = [128, 1], strides = [1, 1]} : vector<128x4xf32> to vector<128x1xf32>
    %14 = vector.extract_strided_slice %1 {offsets = [2, 0], sizes = [1, 16], strides = [1, 1]} : vector<4x16xf32> to vector<1x16xf32>
    %15 = vector.broadcast %13 : vector<128x1xf32> to vector<128x16xf32>
    %16 = vector.broadcast %14 : vector<1x16xf32> to vector<128x16xf32>
    %17 = arith.mulf %15, %16 : vector<128x16xf32>
    %18 = arith.addf %12, %17 : vector<128x16xf32>
    %19 = vector.extract_strided_slice %0 {offsets = [0, 3], sizes = [128, 1], strides = [1, 1]} : vector<128x4xf32> to vector<128x1xf32>
    %20 = vector.extract_strided_slice %1 {offsets = [3, 0], sizes = [1, 16], strides = [1, 1]} : vector<4x16xf32> to vector<1x16xf32>
    %21 = vector.broadcast %19 : vector<128x1xf32> to vector<128x16xf32>
    %22 = vector.broadcast %20 : vector<1x16xf32> to vector<128x16xf32>
    %23 = arith.mulf %21, %22 : vector<128x16xf32>
    %24 = arith.addf %18, %23 : vector<128x16xf32>
    %25 = math.cos %24 : vector<128x16xf32>
    %c0_3 = arith.constant 0 : index
    %c0_4 = arith.constant 0 : index
    %26 = vector.load %arg3[%c0_3, %c0_4] : memref<128x32xf32, #tpu.memory_space<vmem>>, vector<128x16xf32>
    tpu.vector_store %arg3[%c0_3, %c0_4], %25 {strides = array<i32>} : memref<128x32xf32, #tpu.memory_space<vmem>>, vector<128x16xf32>,
    %27 = math.sin %24 : vector<128x16xf32>
    %c0_5 = arith.constant 0 : index
    %c16 = arith.constant 16 : index
    %28 = vector.load %arg3[%c0_5, %c16] : memref<128x32xf32, #tpu.memory_space<vmem>>, vector<128x16xf32>
    tpu.vector_store %arg3[%c0_5, %c16], %27 {strides = array<i32>} : memref<128x32xf32, #tpu.memory_space<vmem>>, vector<128x16xf32>,
    return
  }
  func.func @transform_0(%arg0: i32) -> (i32, i32) {
    %c0_i32 = arith.constant 0 : i32
    %c0_i32_0 = arith.constant 0 : i32
    return %arg0, %c0_i32 : i32, i32
  }
  func.func @transform_1(%arg0: i32) -> (i32, i32) {
    %c0_i32 = arith.constant 0 : i32
    %c0_i32_0 = arith.constant 0 : i32
    %c0_i32_1 = arith.constant 0 : i32
    return %c0_i32, %c0_i32_0 : i32, i32
  }
  func.func @transform_2(%arg0: i32) -> (i32, i32) {
    %c0_i32 = arith.constant 0 : i32
    %c0_i32_0 = arith.constant 0 : i32
    return %arg0, %c0_i32 : i32, i32
  }
}

</mosaic_0001>

<llo_original>
// kernel: tpu_custom_call.1
$region0: #{tpu_custom_call.1}
  #allocation0 [shape = 'u32[]', space=smem, size = 0x4, offset = 0x4, fixed_abs, tag = 'smem constant byte address 0x4 - core index']
  #allocation1 [shape = 'u32[144,128]{1,0:T(1,128)}', space=vmem, size = 0x12000, scoped, tag = 'internal scratch']
  %s0 = inlined_call_operand.vmem [shape: f32[128,4], index: 0, kind: input, shape index: {}]
  %s1 = inlined_call_operand.vmem [shape: f32[4,16], index: 1, kind: input, shape index: {}]
  %s2 = inlined_call_operand.vmem [shape: f32[128,32], index: 2, kind: output, shape index: {}]
  %s3 = sld [smem:[#allocation0]]
  $region18: #{tpu_custom_call.1} parent=0
    _
  %s5 = ssub.s32 1, %s3
  %s6 = scalar_select 0, %s5, %s3
  // Predicated region
  $region2: #{tpu_custom_call.1} parent=0 // pred_check
    _
  $region3: #{tpu_custom_call.1} parent=0 // pred_check_branch
    %8 = sbr.rel (0) target = $region5
  $region4: #{tpu_custom_call.1} parent=0 // pred_region
    _
  $region5: #{tpu_custom_call.1} parent=0 // pred_fallthru
    _
  // Predicated region
  $region6: #{tpu_custom_call.1} parent=0 // pred_check
    _
  $region7: #{tpu_custom_call.1} parent=0 // pred_check_branch
    %10 = sbr.rel (0) target = $region9
  $region8: #{tpu_custom_call.1} parent=0 // pred_region
    _
  $region9: #{tpu_custom_call.1} parent=0 // pred_fallthru
    _
  %v11 = vld [vmem:[%s0] sm:$0xff]
  %v12 = vld [vmem:[%s0 + $0x8] sm:$0xff]
  %v13 = vld [vmem:[%s0 + $0x10] sm:$0xff]
  %v14 = vld [vmem:[%s0 + $0x18] sm:$0xff]
  %v15 = vld [vmem:[%s0 + $0x20] sm:$0xff]
  %v16 = vld [vmem:[%s0 + $0x28] sm:$0xff]
  %v17 = vld [vmem:[%s0 + $0x30] sm:$0xff]
  %v18 = vld [vmem:[%s0 + $0x38] sm:$0xff]
  %v19 = vld [vmem:[%s0 + $0x40] sm:$0xff]
  %v20 = vld [vmem:[%s0 + $0x48] sm:$0xff]
  %v21 = vld [vmem:[%s0 + $0x50] sm:$0xff]
  %v22 = vld [vmem:[%s0 + $0x58] sm:$0xff]
  %v23 = vld [vmem:[%s0 + $0x60] sm:$0xff]
  %v24 = vld [vmem:[%s0 + $0x68] sm:$0xff]
  %v25 = vld [vmem:[%s0 + $0x70] sm:$0xff]
  %v26 = vld [vmem:[%s0 + $0x78] sm:$0xff]
  %v27 = vld [vmem:[%s1] sm:$0xf]
  %29 = vset.pattern.permute.xlu0 0
  %30 = vperm.xlu0 %29, %v11
  %v31 = vpop.permute.xlu0 %30
  %34 = vset.pattern.permute.xlu0 0
  %35 = vperm.xlu0 %34, %v12
  %v36 = vpop.permute.xlu0 %35
  %39 = vset.pattern.permute.xlu0 0
  %40 = vperm.xlu0 %39, %v13
  %v41 = vpop.permute.xlu0 %40
  %44 = vset.pattern.permute.xlu0 0
  %45 = vperm.xlu0 %44, %v14
  %v46 = vpop.permute.xlu0 %45
  %49 = vset.pattern.permute.xlu0 0
  %50 = vperm.xlu0 %49, %v15
  %v51 = vpop.permute.xlu0 %50
  %54 = vset.pattern.permute.xlu0 0
  %55 = vperm.xlu0 %54, %v16
  %v56 = vpop.permute.xlu0 %55
  %59 = vset.pattern.permute.xlu0 0
  %60 = vperm.xlu0 %59, %v17
  %v61 = vpop.permute.xlu0 %60
  %64 = vset.pattern.permute.xlu0 0
  %65 = vperm.xlu0 %64, %v18
  %v66 = vpop.permute.xlu0 %65
  %69 = vset.pattern.permute.xlu0 0
  %70 = vperm.xlu0 %69, %v19
  %v71 = vpop.permute.xlu0 %70
  %74 = vset.pattern.permute.xlu0 0
  %75 = vperm.xlu0 %74, %v20
  %v76 = vpop.permute.xlu0 %75
  %79 = vset.pattern.permute.xlu0 0
  %80 = vperm.xlu0 %79, %v21
  %v81 = vpop.permute.xlu0 %80
  %84 = vset.pattern.permute.xlu0 0
  %85 = vperm.xlu0 %84, %v22
  %v86 = vpop.permute.xlu0 %85
  %89 = vset.pattern.permute.xlu0 0
  %90 = vperm.xlu0 %89, %v23
  %v91 = vpop.permute.xlu0 %90
  %94 = vset.pattern.permute.xlu0 0
  %95 = vperm.xlu0 %94, %v24
  %v96 = vpop.permute.xlu0 %95
  %99 = vset.pattern.permute.xlu0 0
  %100 = vperm.xlu0 %99, %v25
  %v101 = vpop.permute.xlu0 %100
  %104 = vset.pattern.permute.xlu0 0
  %105 = vperm.xlu0 %104, %v26
  %v106 = vpop.permute.xlu0 %105
  %v108 = vlaneseq
  %v109 = vshrl.u32 %v108, 7
  %v110 = vsub.s32 0, %v109
  %v111 = vrot.slane %v27, %v110
  %v112 = vmul.f32 %v31, %v111
  %v113 = vmul.f32 %v36, %v111
  %v114 = vmul.f32 %v41, %v111
  %v115 = vmul.f32 %v46, %v111
  %v116 = vmul.f32 %v51, %v111
  %v117 = vmul.f32 %v56, %v111
  %v118 = vmul.f32 %v61, %v111
  %v119 = vmul.f32 %v66, %v111
  %v120 = vmul.f32 %v71, %v111
  %v121 = vmul.f32 %v76, %v111
  %v122 = vmul.f32 %v81, %v111
  %v123 = vmul.f32 %v86, %v111
  %v124 = vmul.f32 %v91, %v111
  %v125 = vmul.f32 %v96, %v111
  %v126 = vmul.f32 %v101, %v111
  %v127 = vmul.f32 %v106, %v111
  %128 = vset.pattern.permute.xlu0 1
  %129 = vperm.xlu0 %128, %v11
  %v130 = vpop.permute.xlu0 %129
  %132 = vset.pattern.permute.xlu0 1
  %133 = vperm.xlu0 %132, %v12
  %v134 = vpop.permute.xlu0 %133
  %136 = vset.pattern.permute.xlu0 1
  %137 = vperm.xlu0 %136, %v13
  %v138 = vpop.permute.xlu0 %137
  %140 = vset.pattern.permute.xlu0 1
  %141 = vperm.xlu0 %140, %v14
  %v142 = vpop.permute.xlu0 %141
  %144 = vset.pattern.permute.xlu0 1
  %145 = vperm.xlu0 %144, %v15
  %v146 = vpop.permute.xlu0 %145
  %148 = vset.pattern.permute.xlu0 1
  %149 = vperm.xlu0 %148, %v16
  %v150 = vpop.permute.xlu0 %149
  %152 = vset.pattern.permute.xlu0 1
  %153 = vperm.xlu0 %152, %v17
  %v154 = vpop.permute.xlu0 %153
  %156 = vset.pattern.permute.xlu0 1
  %157 = vperm.xlu0 %156, %v18
  %v158 = vpop.permute.xlu0 %157
  %160 = vset.pattern.permute.xlu0 1
  %161 = vperm.xlu0 %160, %v19
  %v162 = vpop.permute.xlu0 %161
  %164 = vset.pattern.permute.xlu0 1
  %165 = vperm.xlu0 %164, %v20
  %v166 = vpop.permute.xlu0 %165
  %168 = vset.pattern.permute.xlu0 1
  %169 = vperm.xlu0 %168, %v21
  %v170 = vpop.permute.xlu0 %169
  %172 = vset.pattern.permute.xlu0 1
  %173 = vperm.xlu0 %172, %v22
  %v174 = vpop.permute.xlu0 %173
  %176 = vset.pattern.permute.xlu0 1
  %177 = vperm.xlu0 %176, %v23
  %v178 = vpop.permute.xlu0 %177
  %180 = vset.pattern.permute.xlu0 1
  %181 = vperm.xlu0 %180, %v24
  %v182 = vpop.permute.xlu0 %181
  %184 = vset.pattern.permute.xlu0 1
  %185 = vperm.xlu0 %184, %v25
  %v186 = vpop.permute.xlu0 %185
  %188 = vset.pattern.permute.xlu0 1
  %189 = vperm.xlu0 %188, %v26
  %v190 = vpop.permute.xlu0 %189
  %v192 = vlaneseq
  %v193 = vshrl.u32 %v192, 7
  %v194 = vsub.s32 1, %v193
  %v195 = vrot.slane %v27, %v194
  %v196 = vmul.f32 %v130, %v195
  %v197 = vmul.f32 %v134, %v195
  %v198 = vmul.f32 %v138, %v195
  %v199 = vmul.f32 %v142, %v195
  %v200 = vmul.f32 %v146, %v195
  %v201 = vmul.f32 %v150, %v195
  %v202 = vmul.f32 %v154, %v195
  %v203 = vmul.f32 %v158, %v195
  %v204 = vmul.f32 %v162, %v195
  %v205 = vmul.f32 %v166, %v195
  %v206 = vmul.f32 %v170, %v195
  %v207 = vmul.f32 %v174, %v195
  %v208 = vmul.f32 %v178, %v195
  %v209 = vmul.f32 %v182, %v195
  %v210 = vmul.f32 %v186, %v195
  %v211 = vmul.f32 %v190, %v195
  %v212 = vadd.f32 %v112, %v196
  %v213 = vadd.f32 %v113, %v197
  %v214 = vadd.f32 %v114, %v198
  %v215 = vadd.f32 %v115, %v199
  %v216 = vadd.f32 %v116, %v200
  %v217 = vadd.f32 %v117, %v201
  %v218 = vadd.f32 %v118, %v202
  %v219 = vadd.f32 %v119, %v203
  %v220 = vadd.f32 %v120, %v204
  %v221 = vadd.f32 %v121, %v205
  %v222 = vadd.f32 %v122, %v206
  %v223 = vadd.f32 %v123, %v207
  %v224 = vadd.f32 %v124, %v208
  %v225 = vadd.f32 %v125, %v209
  %v226 = vadd.f32 %v126, %v210
  %v227 = vadd.f32 %v127, %v211
  %228 = vset.pattern.permute.xlu0 2
  %229 = vperm.xlu0 %228, %v11
  %v230 = vpop.permute.xlu0 %229
  %232 = vset.pattern.permute.xlu0 2
  %233 = vperm.xlu0 %232, %v12
  %v234 = vpop.permute.xlu0 %233
  %236 = vset.pattern.permute.xlu0 2
  %237 = vperm.xlu0 %236, %v13
  %v238 = vpop.permute.xlu0 %237
  %240 = vset.pattern.permute.xlu0 2
  %241 = vperm.xlu0 %240, %v14
  %v242 = vpop.permute.xlu0 %241
  %244 = vset.pattern.permute.xlu0 2
  %245 = vperm.xlu0 %244, %v15
  %v246 = vpop.permute.xlu0 %245
  %248 = vset.pattern.permute.xlu0 2
  %249 = vperm.xlu0 %248, %v16
  %v250 = vpop.permute.xlu0 %249
  %252 = vset.pattern.permute.xlu0 2
  %253 = vperm.xlu0 %252, %v17
  %v254 = vpop.permute.xlu0 %253
  %256 = vset.pattern.permute.xlu0 2
  %257 = vperm.xlu0 %256, %v18
  %v258 = vpop.permute.xlu0 %257
  %260 = vset.pattern.permute.xlu0 2
  %261 = vperm.xlu0 %260, %v19
  %v262 = vpop.permute.xlu0 %261
  %264 = vset.pattern.permute.xlu0 2
  %265 = vperm.xlu0 %264, %v20
  %v266 = vpop.permute.xlu0 %265
  %268 = vset.pattern.permute.xlu0 2
  %269 = vperm.xlu0 %268, %v21
  %v270 = vpop.permute.xlu0 %269
  %272 = vset.pattern.permute.xlu0 2
  %273 = vperm.xlu0 %272, %v22
  %v274 = vpop.permute.xlu0 %273
  %276 = vset.pattern.permute.xlu0 2
  %277 = vperm.xlu0 %276, %v23
  %v278 = vpop.permute.xlu0 %277
  %280 = vset.pattern.permute.xlu0 2
  %281 = vperm.xlu0 %280, %v24
  %v282 = vpop.permute.xlu0 %281
  %284 = vset.pattern.permute.xlu0 2
  %285 = vperm.xlu0 %284, %v25
  %v286 = vpop.permute.xlu0 %285
  %288 = vset.pattern.permute.xlu0 2
  %289 = vperm.xlu0 %288, %v26
  %v290 = vpop.permute.xlu0 %289
  %v292 = vlaneseq
  %v293 = vshrl.u32 %v292, 7
  %v294 = vsub.s32 2, %v293
  %v295 = vrot.slane %v27, %v294
  %v296 = vmul.f32 %v230, %v295
  %v297 = vmul.f32 %v234, %v295
  %v298 = vmul.f32 %v238, %v295
  %v299 = vmul.f32 %v242, %v295
  %v300 = vmul.f32 %v246, %v295
  %v301 = vmul.f32 %v250, %v295
  %v302 = vmul.f32 %v254, %v295
  %v303 = vmul.f32 %v258, %v295
  %v304 = vmul.f32 %v262, %v295
  %v305 = vmul.f32 %v266, %v295
  %v306 = vmul.f32 %v270, %v295
  %v307 = vmul.f32 %v274, %v295
  %v308 = vmul.f32 %v278, %v295
  %v309 = vmul.f32 %v282, %v295
  %v310 = vmul.f32 %v286, %v295
  %v311 = vmul.f32 %v290, %v295
  %v312 = vadd.f32 %v212, %v296
  %v313 = vadd.f32 %v213, %v297
  %v314 = vadd.f32 %v214, %v298
  %v315 = vadd.f32 %v215, %v299
  %v316 = vadd.f32 %v216, %v300
  %v317 = vadd.f32 %v217, %v301
  %v318 = vadd.f32 %v218, %v302
  %v319 = vadd.f32 %v219, %v303
  %v320 = vadd.f32 %v220, %v304
  %v321 = vadd.f32 %v221, %v305
  %v322 = vadd.f32 %v222, %v306
  %v323 = vadd.f32 %v223, %v307
  %v324 = vadd.f32 %v224, %v308
  %v325 = vadd.f32 %v225, %v309
  %v326 = vadd.f32 %v226, %v310
  %v327 = vadd.f32 %v227, %v311
  %328 = vset.pattern.permute.xlu0 3
  %329 = vperm.xlu0 %328, %v11
  %v330 = vpop.permute.xlu0 %329
  %332 = vset.pattern.permute.xlu0 3
  %333 = vperm.xlu0 %332, %v12
  %v334 = vpop.permute.xlu0 %333
  %336 = vset.pattern.permute.xlu0 3
  %337 = vperm.xlu0 %336, %v13
  %v338 = vpop.permute.xlu0 %337
  %340 = vset.pattern.permute.xlu0 3
  %341 = vperm.xlu0 %340, %v14
  %v342 = vpop.permute.xlu0 %341
  %344 = vset.pattern.permute.xlu0 3
  %345 = vperm.xlu0 %344, %v15
  %v346 = vpop.permute.xlu0 %345
  %348 = vset.pattern.permute.xlu0 3
  %349 = vperm.xlu0 %348, %v16
  %v350 = vpop.permute.xlu0 %349
  %352 = vset.pattern.permute.xlu0 3
  %353 = vperm.xlu0 %352, %v17
  %v354 = vpop.permute.xlu0 %353
  %356 = vset.pattern.permute.xlu0 3
  %357 = vperm.xlu0 %356, %v18
  %v358 = vpop.permute.xlu0 %357
  %360 = vset.pattern.permute.xlu0 3
  %361 = vperm.xlu0 %360, %v19
  %v362 = vpop.permute.xlu0 %361
  %364 = vset.pattern.permute.xlu0 3
  %365 = vperm.xlu0 %364, %v20
  %v366 = vpop.permute.xlu0 %365
  %368 = vset.pattern.permute.xlu0 3
  %369 = vperm.xlu0 %368, %v21
  %v370 = vpop.permute.xlu0 %369
  %372 = vset.pattern.permute.xlu0 3
  %373 = vperm.xlu0 %372, %v22
  %v374 = vpop.permute.xlu0 %373
  %376 = vset.pattern.permute.xlu0 3
  %377 = vperm.xlu0 %376, %v23
  %v378 = vpop.permute.xlu0 %377
  %380 = vset.pattern.permute.xlu0 3
  %381 = vperm.xlu0 %380, %v24
  %v382 = vpop.permute.xlu0 %381
  %384 = vset.pattern.permute.xlu0 3
  %385 = vperm.xlu0 %384, %v25
  %v386 = vpop.permute.xlu0 %385
  %388 = vset.pattern.permute.xlu0 3
  %389 = vperm.xlu0 %388, %v26
  %v390 = vpop.permute.xlu0 %389
  %v392 = vlaneseq
  %v393 = vshrl.u32 %v392, 7
  %v394 = vsub.s32 3, %v393
  %v395 = vrot.slane %v27, %v394
  %v396 = vmul.f32 %v330, %v395
  %v397 = vmul.f32 %v334, %v395
  %v398 = vmul.f32 %v338, %v395
  %v399 = vmul.f32 %v342, %v395
  %v400 = vmul.f32 %v346, %v395
  %v401 = vmul.f32 %v350, %v395
  %v402 = vmul.f32 %v354, %v395
  %v403 = vmul.f32 %v358, %v395
  %v404 = vmul.f32 %v362, %v395
  %v405 = vmul.f32 %v366, %v395
  %v406 = vmul.f32 %v370, %v395
  %v407 = vmul.f32 %v374, %v395
  %v408 = vmul.f32 %v378, %v395
  %v409 = vmul.f32 %v382, %v395
  %v410 = vmul.f32 %v386, %v395
  %v411 = vmul.f32 %v390, %v395
  %v412 = vadd.f32 %v312, %v396
  %v413 = vadd.f32 %v313, %v397
  %v414 = vadd.f32 %v314, %v398
  %v415 = vadd.f32 %v315, %v399
  %v416 = vadd.f32 %v316, %v400
  %v417 = vadd.f32 %v317, %v401
  %v418 = vadd.f32 %v318, %v402
  %v419 = vadd.f32 %v319, %v403
  %v420 = vadd.f32 %v320, %v404
  %v421 = vadd.f32 %v321, %v405
  %v422 = vadd.f32 %v322, %v406
  %v423 = vadd.f32 %v323, %v407
  %v424 = vadd.f32 %v324, %v408
  %v425 = vadd.f32 %v325, %v409
  %v426 = vadd.f32 %v326, %v410
  %v427 = vadd.f32 %v327, %v411
  %v428 = vand.u32 2147483647, %v412
  %vm429 = vcmp.le.f32.partialorder %v428, 0.7853982
  %vm430 = vcmp.lt.s32.totalorder %v412, 0
  %v431 = vand.u32 %v412, 2139095040
  %v432 = vshrl.u32 %v431, 23
  %v433 = vsub.s32 %v432, 127
  %v434 = vand.u32 2147483647, %v412
  %v435 = vand.u32 %v434, 8388607
  %v436 = vor.u32 %v435, 8388608
  %v437 = vsub.s32 0, %v436
  %v438 = vadd.s32 %v433, 1
  %vm439 = vcmp.gt.s32.totalorder %v438, 0
  %v440 = vsel %vm439, %v438, 0
  %v441 = vshrl.u32 %v440, 5
  %v442 = vand.u32 %v440, 31
  %v443 = vsub.s32 32, %v442
  %v444 = vshrl.u32 683565275, %v443
  %v445 = vshll.u32 683565275, %v442
  %v446 = vshrl.u32 2475754826, %v443
  %v447 = vor.u32 %v445, %v446
  %v448 = vshll.u32 2475754826, %v442
  %v449 = vshrl.u32 2131351028, %v443
  %v450 = vor.u32 %v448, %v449
  %v451 = vshll.u32 2131351028, %v442
  %v452 = vshrl.u32 2102212464, %v443
  %v453 = vor.u32 %v451, %v452
  %v454 = vshll.u32 2102212464, %v442
  %v455 = vshrl.u32 920167782, %v443
  %v456 = vor.u32 %v454, %v455
  %v457 = vshll.u32 920167782, %v442
  %v458 = vshrl.u32 1326507024, %v443
  %v459 = vor.u32 %v457, %v458
  %vm460 = vcmp.lt.s32.totalorder %v441, 1
  %vm461 = vcmp.lt.s32.totalorder %v441, 2
  %vm462 = vcmp.lt.s32.totalorder %v441, 3
  %vm463 = vcmp.lt.s32.totalorder %v441, 4
  %v464 = vsel %vm460, %v444, %v447
  %v465 = vsel %vm463, %v453, 2102212464
  %v466 = vsel %vm462, %v450, %v465
  %v467 = vsel %vm461, %v464, %v466
  %v468 = vsel %vm460, %v447, %v450
  %v469 = vsel %vm463, %v456, 920167782
  %v470 = vsel %vm462, %v453, %v469
  %v471 = vsel %vm461, %v468, %v470
  %v472 = vsel %vm460, %v450, %v453
  %v473 = vsel %vm463, %v459, 1326507024
  %v474 = vsel %vm462, %v456, %v473
  %v475 = vsel %vm461, %v472, %v474
  %v476 = vshll.u32 %v436, 8
  %v477 = vmul.u32.u64.compose %v476, %v475
  %v478 = vextract.low.u32 %v477
  %v479 = vextract.high.u32 %v477
  %v480 = vmul.u32.u64.compose %v476, %v471
  %v481 = vextract.low.u32 %v480
  %v482 = vextract.high.u32 %v480
  %v483 = vmul.u32 %v476, %v467
  %v484 = vadd.s32 %v479, %v481
  %vm485 = vc.u32 %v479, %v481
  %v486 = vadd.s32 %v482, 1
  %v487 = vsel %vm485, %v486, %v482
  %v488 = vadd.s32 %v483, %v487
  %v489 = vadd.s32 %v488, 536870912
  %v490 = vshrl.u32 %v489, 30
  %v491 = vshll.u32 %v490, 30
  %v492 = vsub.s32 %v488, %v491
  %vm493 = vcmp.lt.s32.totalorder %v492, 0
  %v494 = vsub.s32 0, %v492
  %v495 = vsel %vm493, %v494, %v492
  %v496 = vclz %v495
  %v497 = vsub.s32 %v496, 2
  %vm498 = vcmp.gt.s32.totalorder 0, %v497
  %v499 = vsel %vm498, 0, %v497
  %v500 = vsub.s32 32, %v499
  %v501 = vshll.u32 %v492, %v499
  %v502 = vshrl.u32 %v484, %v500
  %v503 = vor.u32 %v501, %v502
  %v504 = vsub.s32 4294967266, %v499
  %v505 = vadd.s32 %v504, 127
  %v506 = vshll.u32 %v505, 23
  %v507 = vor.u32 4788187, %v506
  %v508 = vand.u32 2147483647, %v507
  %v510 = vcvt.s32.f32 %v503
  %v511 = vmul.f32 %v510, %v508
  %v512 = vxor.u32 %v511, 2147483648
  %v513 = vsel %vm430, %v512, %v511
  %v514 = vsub.s32 4, %v490
  %v515 = vsel %vm430, %v514, %v490
  %v516 = vsel %vm429, %v412, %v513
  %v517 = vsel %vm429, 0, %v515
  %v518 = vcosq.f32.pop %v516
  %v519 = vsinq.f32.pop %v516
  %vm520 = vweird.f32 %v412
  %v521 = vand.u32 %v517, 3
  %vm522 = vcmp.lt.s32.totalorder %v521, 2
  %vm523 = vcmp.eq.s32.totalorder %v521, 0
  %v524 = vxor.u32 %v519, 2147483648
  %v525 = vsel %vm523, %v518, %v524
  %vm526 = vcmp.eq.s32.totalorder %v521, 2
  %v527 = vxor.u32 %v518, 2147483648
  %v528 = vsel %vm526, %v527, %v519
  %v529 = vsel %vm522, %v525, %v528
  %v530 = vsel %vm520, nan, %v529
  %v531 = vand.u32 2147483647, %v413
  %vm532 = vcmp.le.f32.partialorder %v531, 0.7853982
  %vm533 = vcmp.lt.s32.totalorder %v413, 0
  %v534 = vand.u32 %v413, 2139095040
  %v535 = vshrl.u32 %v534, 23
  %v536 = vsub.s32 %v535, 127
  %v537 = vand.u32 2147483647, %v413
  %v538 = vand.u32 %v537, 8388607
  %v539 = vor.u32 %v538, 8388608
  %v540 = vsub.s32 0, %v539
  %v541 = vadd.s32 %v536, 1
  %vm542 = vcmp.gt.s32.totalorder %v541, 0
  %v543 = vsel %vm542, %v541, 0
  %v544 = vshrl.u32 %v543, 5
  %v545 = vand.u32 %v543, 31
  %v546 = vsub.s32 32, %v545
  %v547 = vshrl.u32 683565275, %v546
  %v548 = vshll.u32 683565275, %v545
  %v549 = vshrl.u32 2475754826, %v546
  %v550 = vor.u32 %v548, %v549
  %v551 = vshll.u32 2475754826, %v545
  %v552 = vshrl.u32 2131351028, %v546
  %v553 = vor.u32 %v551, %v552
  %v554 = vshll.u32 2131351028, %v545
  %v555 = vshrl.u32 2102212464, %v546
  %v556 = vor.u32 %v554, %v555
  %v557 = vshll.u32 2102212464, %v545
  %v558 = vshrl.u32 920167782, %v546
  %v559 = vor.u32 %v557, %v558
  %v560 = vshll.u32 920167782, %v545
  %v561 = vshrl.u32 1326507024, %v546
  %v562 = vor.u32 %v560, %v561
  %vm563 = vcmp.lt.s32.totalorder %v544, 1
  %vm564 = vcmp.lt.s32.totalorder %v544, 2
  %vm565 = vcmp.lt.s32.totalorder %v544, 3
  %vm566 = vcmp.lt.s32.totalorder %v544, 4
  %v567 = vsel %vm563, %v547, %v550
  %v568 = vsel %vm566, %v556, 2102212464
  %v569 = vsel %vm565, %v553, %v568
  %v570 = vsel %vm564, %v567, %v569
  %v571 = vsel %vm563, %v550, %v553
  %v572 = vsel %vm566, %v559, 920167782
  %v573 = vsel %vm565, %v556, %v572
  %v574 = vsel %vm564, %v571, %v573
  %v575 = vsel %vm563, %v553, %v556
  %v576 = vsel %vm566, %v562, 1326507024
  %v577 = vsel %vm565, %v559, %v576
  %v578 = vsel %vm564, %v575, %v577
  %v579 = vshll.u32 %v539, 8
  %v580 = vmul.u32.u64.compose %v579, %v578
  %v581 = vextract.low.u32 %v580
  %v582 = vextract.high.u32 %v580
  %v583 = vmul.u32.u64.compose %v579, %v574
  %v584 = vextract.low.u32 %v583
  %v585 = vextract.high.u32 %v583
  %v586 = vmul.u32 %v579, %v570
  %v587 = vadd.s32 %v582, %v584
  %vm588 = vc.u32 %v582, %v584
  %v589 = vadd.s32 %v585, 1
  %v590 = vsel %vm588, %v589, %v585
  %v591 = vadd.s32 %v586, %v590
  %v592 = vadd.s32 %v591, 536870912
  %v593 = vshrl.u32 %v592, 30
  %v594 = vshll.u32 %v593, 30
  %v595 = vsub.s32 %v591, %v594
  %vm596 = vcmp.lt.s32.totalorder %v595, 0
  %v597 = vsub.s32 0, %v595
  %v598 = vsel %vm596, %v597, %v595
  %v599 = vclz %v598
  %v600 = vsub.s32 %v599, 2
  %vm601 = vcmp.gt.s32.totalorder 0, %v600
  %v602 = vsel %vm601, 0, %v600
  %v603 = vsub.s32 32, %v602
  %v604 = vshll.u32 %v595, %v602
  %v605 = vshrl.u32 %v587, %v603
  %v606 = vor.u32 %v604, %v605
  %v607 = vsub.s32 4294967266, %v602
  %v608 = vadd.s32 %v607, 127
  %v609 = vshll.u32 %v608, 23
  %v610 = vor.u32 4788187, %v609
  %v611 = vand.u32 2147483647, %v610
  %v613 = vcvt.s32.f32 %v606
  %v614 = vmul.f32 %v613, %v611
  %v615 = vxor.u32 %v614, 2147483648
  %v616 = vsel %vm533, %v615, %v614
  %v617 = vsub.s32 4, %v593
  %v618 = vsel %vm533, %v617, %v593
  %v619 = vsel %vm532, %v413, %v616
  %v620 = vsel %vm532, 0, %v618
  %v621 = vcosq.f32.pop %v619
  %v622 = vsinq.f32.pop %v619
  %vm623 = vweird.f32 %v413
  %v624 = vand.u32 %v620, 3
  %vm625 = vcmp.lt.s32.totalorder %v624, 2
  %vm626 = vcmp.eq.s32.totalorder %v624, 0
  %v627 = vxor.u32 %v622, 2147483648
  %v628 = vsel %vm626, %v621, %v627
  %vm629 = vcmp.eq.s32.totalorder %v624, 2
  %v630 = vxor.u32 %v621, 2147483648
  %v631 = vsel %vm629, %v630, %v622
  %v632 = vsel %vm625, %v628, %v631
  %v633 = vsel %vm623, nan, %v632
  %v634 = vand.u32 2147483647, %v414
  %vm635 = vcmp.le.f32.partialorder %v634, 0.7853982
  %vm636 = vcmp.lt.s32.totalorder %v414, 0
  %v637 = vand.u32 %v414, 2139095040
  %v638 = vshrl.u32 %v637, 23
  %v639 = vsub.s32 %v638, 127
  %v640 = vand.u32 2147483647, %v414
  %v641 = vand.u32 %v640, 8388607
  %v642 = vor.u32 %v641, 8388608
  %v643 = vsub.s32 0, %v642
  %v644 = vadd.s32 %v639, 1
  %vm645 = vcmp.gt.s32.totalorder %v644, 0
  %v646 = vsel %vm645, %v644, 0
  %v647 = vshrl.u32 %v646, 5
  %v648 = vand.u32 %v646, 31
  %v649 = vsub.s32 32, %v648
  %v650 = vshrl.u32 683565275, %v649
  %v651 = vshll.u32 683565275, %v648
  %v652 = vshrl.u32 2475754826, %v649
  %v653 = vor.u32 %v651, %v652
  %v654 = vshll.u32 2475754826, %v648
  %v655 = vshrl.u32 2131351028, %v649
  %v656 = vor.u32 %v654, %v655
  %v657 = vshll.u32 2131351028, %v648
  %v658 = vshrl.u32 2102212464, %v649
  %v659 = vor.u32 %v657, %v658
  %v660 = vshll.u32 2102212464, %v648
  %v661 = vshrl.u32 920167782, %v649
  %v662 = vor.u32 %v660, %v661
  %v663 = vshll.u32 920167782, %v648
  %v664 = vshrl.u32 1326507024, %v649
  %v665 = vor.u32 %v663, %v664
  %vm666 = vcmp.lt.s32.totalorder %v647, 1
  %vm667 = vcmp.lt.s32.totalorder %v647, 2
  %vm668 = vcmp.lt.s32.totalorder %v647, 3
  %vm669 = vcmp.lt.s32.totalorder %v647, 4
  %v670 = vsel %vm666, %v650, %v653
  %v671 = vsel %vm669, %v659, 2102212464
  %v672 = vsel %vm668, %v656, %v671
  %v673 = vsel %vm667, %v670, %v672
  %v674 = vsel %vm666, %v653, %v656
  %v675 = vsel %vm669, %v662, 920167782
  %v676 = vsel %vm668, %v659, %v675
  %v677 = vsel %vm667, %v674, %v676
  %v678 = vsel %vm666, %v656, %v659
  %v679 = vsel %vm669, %v665, 1326507024
  %v680 = vsel %vm668, %v662, %v679
  %v681 = vsel %vm667, %v678, %v680
  %v682 = vshll.u32 %v642, 8
  %v683 = vmul.u32.u64.compose %v682, %v681
  %v684 = vextract.low.u32 %v683
  %v685 = vextract.high.u32 %v683
  %v686 = vmul.u32.u64.compose %v682, %v677
  %v687 = vextract.low.u32 %v686
  %v688 = vextract.high.u32 %v686
  %v689 = vmul.u32 %v682, %v673
  %v690 = vadd.s32 %v685, %v687
  %vm691 = vc.u32 %v685, %v687
  %v692 = vadd.s32 %v688, 1
  %v693 = vsel %vm691, %v692, %v688
  %v694 = vadd.s32 %v689, %v693
  %v695 = vadd.s32 %v694, 536870912
  %v696 = vshrl.u32 %v695, 30
  %v697 = vshll.u32 %v696, 30
  %v698 = vsub.s32 %v694, %v697
  %vm699 = vcmp.lt.s32.totalorder %v698, 0
  %v700 = vsub.s32 0, %v698
  %v701 = vsel %vm699, %v700, %v698
  %v702 = vclz %v701
  %v703 = vsub.s32 %v702, 2
  %vm704 = vcmp.gt.s32.totalorder 0, %v703
  %v705 = vsel %vm704, 0, %v703
  %v706 = vsub.s32 32, %v705
  %v707 = vshll.u32 %v698, %v705
  %v708 = vshrl.u32 %v690, %v706
  %v709 = vor.u32 %v707, %v708
  %v710 = vsub.s32 4294967266, %v705
  %v711 = vadd.s32 %v710, 127
  %v712 = vshll.u32 %v711, 23
  %v713 = vor.u32 4788187, %v712
  %v714 = vand.u32 2147483647, %v713
  %v716 = vcvt.s32.f32 %v709
  %v717 = vmul.f32 %v716, %v714
  %v718 = vxor.u32 %v717, 2147483648
  %v719 = vsel %vm636, %v718, %v717
  %v720 = vsub.s32 4, %v696
  %v721 = vsel %vm636, %v720, %v696
  %v722 = vsel %vm635, %v414, %v719
  %v723 = vsel %vm635, 0, %v721
  %v724 = vcosq.f32.pop %v722
  %v725 = vsinq.f32.pop %v722
  %vm726 = vweird.f32 %v414
  %v727 = vand.u32 %v723, 3
  %vm728 = vcmp.lt.s32.totalorder %v727, 2
  %vm729 = vcmp.eq.s32.totalorder %v727, 0
  %v730 = vxor.u32 %v725, 2147483648
  %v731 = vsel %vm729, %v724, %v730
  %vm732 = vcmp.eq.s32.totalorder %v727, 2
  %v733 = vxor.u32 %v724, 2147483648
  %v734 = vsel %vm732, %v733, %v725
  %v735 = vsel %vm728, %v731, %v734
  %v736 = vsel %vm726, nan, %v735
  %v737 = vand.u32 2147483647, %v415
  %vm738 = vcmp.le.f32.partialorder %v737, 0.7853982
  %vm739 = vcmp.lt.s32.totalorder %v415, 0
  %v740 = vand.u32 %v415, 2139095040
  %v741 = vshrl.u32 %v740, 23
  %v742 = vsub.s32 %v741, 127
  %v743 = vand.u32 2147483647, %v415
  %v744 = vand.u32 %v743, 8388607
  %v745 = vor.u32 %v744, 8388608
  %v746 = vsub.s32 0, %v745
  %v747 = vadd.s32 %v742, 1
  %vm748 = vcmp.gt.s32.totalorder %v747, 0
  %v749 = vsel %vm748, %v747, 0
  %v750 = vshrl.u32 %v749, 5
  %v751 = vand.u32 %v749, 31
  %v752 = vsub.s32 32, %v751
  %v753 = vshrl.u32 683565275, %v752
  %v754 = vshll.u32 683565275, %v751
  %v755 = vshrl.u32 2475754826, %v752
  %v756 = vor.u32 %v754, %v755
  %v757 = vshll.u32 2475754826, %v751
  %v758 = vshrl.u32 2131351028, %v752
  %v759 = vor.u32 %v757, %v758
  %v760 = vshll.u32 2131351028, %v751
  %v761 = vshrl.u32 2102212464, %v752
  %v762 = vor.u32 %v760, %v761
  %v763 = vshll.u32 2102212464, %v751
  %v764 = vshrl.u32 920167782, %v752
  %v765 = vor.u32 %v763, %v764
  %v766 = vshll.u32 920167782, %v751
  %v767 = vshrl.u32 1326507024, %v752
  %v768 = vor.u32 %v766, %v767
  %vm769 = vcmp.lt.s32.totalorder %v750, 1
  %vm770 = vcmp.lt.s32.totalorder %v750, 2
  %vm771 = vcmp.lt.s32.totalorder %v750, 3
  %vm772 = vcmp.lt.s32.totalorder %v750, 4
  %v773 = vsel %vm769, %v753, %v756
  %v774 = vsel %vm772, %v762, 2102212464
  %v775 = vsel %vm771, %v759, %v774
  %v776 = vsel %vm770, %v773, %v775
  %v777 = vsel %vm769, %v756, %v759
  %v778 = vsel %vm772, %v765, 920167782
  %v779 = vsel %vm771, %v762, %v778
  %v780 = vsel %vm770, %v777, %v779
  %v781 = vsel %vm769, %v759, %v762
  %v782 = vsel %vm772, %v768, 1326507024
  %v783 = vsel %vm771, %v765, %v782
  %v784 = vsel %vm770, %v781, %v783
  %v785 = vshll.u32 %v745, 8
  %v786 = vmul.u32.u64.compose %v785, %v784
  %v787 = vextract.low.u32 %v786
  %v788 = vextract.high.u32 %v786
  %v789 = vmul.u32.u64.compose %v785, %v780
  %v790 = vextract.low.u32 %v789
  %v791 = vextract.high.u32 %v789
  %v792 = vmul.u32 %v785, %v776
  %v793 = vadd.s32 %v788, %v790
  %vm794 = vc.u32 %v788, %v790
  %v795 = vadd.s32 %v791, 1
  %v796 = vsel %vm794, %v795, %v791
  %v797 = vadd.s32 %v792, %v796
  %v798 = vadd.s32 %v797, 536870912
  %v799 = vshrl.u32 %v798, 30
  %v800 = vshll.u32 %v799, 30
  %v801 = vsub.s32 %v797, %v800
  %vm802 = vcmp.lt.s32.totalorder %v801, 0
  %v803 = vsub.s32 0, %v801
  %v804 = vsel %vm802, %v803, %v801
  %v805 = vclz %v804
  %v806 = vsub.s32 %v805, 2
  %vm807 = vcmp.gt.s32.totalorder 0, %v806
  %v808 = vsel %vm807, 0, %v806
  %v809 = vsub.s32 32, %v808
  %v810 = vshll.u32 %v801, %v808
  %v811 = vshrl.u32 %v793, %v809
  %v812 = vor.u32 %v810, %v811
  %v813 = vsub.s32 4294967266, %v808
  %v814 = vadd.s32 %v813, 127
  %v815 = vshll.u32 %v814, 23
  %v816 = vor.u32 4788187, %v815
  %v817 = vand.u32 2147483647, %v816
  %v819 = vcvt.s32.f32 %v812
  %v820 = vmul.f32 %v819, %v817
  %v821 = vxor.u32 %v820, 2147483648
  %v822 = vsel %vm739, %v821, %v820
  %v823 = vsub.s32 4, %v799
  %v824 = vsel %vm739, %v823, %v799
  %v825 = vsel %vm738, %v415, %v822
  %v826 = vsel %vm738, 0, %v824
  %v827 = vcosq.f32.pop %v825
  %v828 = vsinq.f32.pop %v825
  %vm829 = vweird.f32 %v415
  %v830 = vand.u32 %v826, 3
  %vm831 = vcmp.lt.s32.totalorder %v830, 2
  %vm832 = vcmp.eq.s32.totalorder %v830, 0
  %v833 = vxor.u32 %v828, 2147483648
  %v834 = vsel %vm832, %v827, %v833
  %vm835 = vcmp.eq.s32.totalorder %v830, 2
  %v836 = vxor.u32 %v827, 2147483648
  %v837 = vsel %vm835, %v836, %v828
  %v838 = vsel %vm831, %v834, %v837
  %v839 = vsel %vm829, nan, %v838
  %v840 = vand.u32 2147483647, %v416
  %vm841 = vcmp.le.f32.partialorder %v840, 0.7853982
  %vm842 = vcmp.lt.s32.totalorder %v416, 0
  %v843 = vand.u32 %v416, 2139095040
  %v844 = vshrl.u32 %v843, 23
  %v845 = vsub.s32 %v844, 127
  %v846 = vand.u32 2147483647, %v416
  %v847 = vand.u32 %v846, 8388607
  %v848 = vor.u32 %v847, 8388608
  %v849 = vsub.s32 0, %v848
  %v850 = vadd.s32 %v845, 1
  %vm851 = vcmp.gt.s32.totalorder %v850, 0
  %v852 = vsel %vm851, %v850, 0
  %v853 = vshrl.u32 %v852, 5
  %v854 = vand.u32 %v852, 31
  %v855 = vsub.s32 32, %v854
  %v856 = vshrl.u32 683565275, %v855
  %v857 = vshll.u32 683565275, %v854
  %v858 = vshrl.u32 2475754826, %v855
  %v859 = vor.u32 %v857, %v858
  %v860 = vshll.u32 2475754826, %v854
  %v861 = vshrl.u32 2131351028, %v855
  %v862 = vor.u32 %v860, %v861
  %v863 = vshll.u32 2131351028, %v854
  %v864 = vshrl.u32 2102212464, %v855
  %v865 = vor.u32 %v863, %v864
  %v866 = vshll.u32 2102212464, %v854
  %v867 = vshrl.u32 920167782, %v855
  %v868 = vor.u32 %v866, %v867
  %v869 = vshll.u32 920167782, %v854
  %v870 = vshrl.u32 1326507024, %v855
  %v871 = vor.u32 %v869, %v870
  %vm872 = vcmp.lt.s32.totalorder %v853, 1
  %vm873 = vcmp.lt.s32.totalorder %v853, 2
  %vm874 = vcmp.lt.s32.totalorder %v853, 3
  %vm875 = vcmp.lt.s32.totalorder %v853, 4
  %v876 = vsel %vm872, %v856, %v859
  %v877 = vsel %vm875, %v865, 2102212464
  %v878 = vsel %vm874, %v862, %v877
  %v879 = vsel %vm873, %v876, %v878
  %v880 = vsel %vm872, %v859, %v862
  %v881 = vsel %vm875, %v868, 920167782
  %v882 = vsel %vm874, %v865, %v881
  %v883 = vsel %vm873, %v880, %v882
  %v884 = vsel %vm872, %v862, %v865
  %v885 = vsel %vm875, %v871, 1326507024
  %v886 = vsel %vm874, %v868, %v885
  %v887 = vsel %vm873, %v884, %v886
  %v888 = vshll.u32 %v848, 8
  %v889 = vmul.u32.u64.compose %v888, %v887
  %v890 = vextract.low.u32 %v889
  %v891 = vextract.high.u32 %v889
  %v892 = vmul.u32.u64.compose %v888, %v883
  %v893 = vextract.low.u32 %v892
  %v894 = vextract.high.u32 %v892
  %v895 = vmul.u32 %v888, %v879
  %v896 = vadd.s32 %v891, %v893
  %vm897 = vc.u32 %v891, %v893
  %v898 = vadd.s32 %v894, 1
  %v899 = vsel %vm897, %v898, %v894
  %v900 = vadd.s32 %v895, %v899
  %v901 = vadd.s32 %v900, 536870912
  %v902 = vshrl.u32 %v901, 30
  %v903 = vshll.u32 %v902, 30
  %v904 = vsub.s32 %v900, %v903
  %vm905 = vcmp.lt.s32.totalorder %v904, 0
  %v906 = vsub.s32 0, %v904
  %v907 = vsel %vm905, %v906, %v904
  %v908 = vclz %v907
  %v909 = vsub.s32 %v908, 2
  %vm910 = vcmp.gt.s32.totalorder 0, %v909
  %v911 = vsel %vm910, 0, %v909
  %v912 = vsub.s32 32, %v911
  %v913 = vshll.u32 %v904, %v911
  %v914 = vshrl.u32 %v896, %v912
  %v915 = vor.u32 %v913, %v914
  %v916 = vsub.s32 4294967266, %v911
  %v917 = vadd.s32 %v916, 127
  %v918 = vshll.u32 %v917, 23
  %v919 = vor.u32 4788187, %v918
  %v920 = vand.u32 2147483647, %v919
  %v922 = vcvt.s32.f32 %v915
  %v923 = vmul.f32 %v922, %v920
  %v924 = vxor.u32 %v923, 2147483648
  %v925 = vsel %vm842, %v924, %v923
  %v926 = vsub.s32 4, %v902
  %v927 = vsel %vm842, %v926, %v902
  %v928 = vsel %vm841, %v416, %v925
  %v929 = vsel %vm841, 0, %v927
  %v930 = vcosq.f32.pop %v928
  %v931 = vsinq.f32.pop %v928
  %vm932 = vweird.f32 %v416
  %v933 = vand.u32 %v929, 3
  %vm934 = vcmp.lt.s32.totalorder %v933, 2
  %vm935 = vcmp.eq.s32.totalorder %v933, 0
  %v936 = vxor.u32 %v931, 2147483648
  %v937 = vsel %vm935, %v930, %v936
  %vm938 = vcmp.eq.s32.totalorder %v933, 2
  %v939 = vxor.u32 %v930, 2147483648
  %v940 = vsel %vm938, %v939, %v931
  %v941 = vsel %vm934, %v937, %v940
  %v942 = vsel %vm932, nan, %v941
  %v943 = vand.u32 2147483647, %v417
  %vm944 = vcmp.le.f32.partialorder %v943, 0.7853982
  %vm945 = vcmp.lt.s32.totalorder %v417, 0
  %v946 = vand.u32 %v417, 2139095040
  %v947 = vshrl.u32 %v946, 23
  %v948 = vsub.s32 %v947, 127
  %v949 = vand.u32 2147483647, %v417
  %v950 = vand.u32 %v949, 8388607
  %v951 = vor.u32 %v950, 8388608
  %v952 = vsub.s32 0, %v951
  %v953 = vadd.s32 %v948, 1
  %vm954 = vcmp.gt.s32.totalorder %v953, 0
  %v955 = vsel %vm954, %v953, 0
  %v956 = vshrl.u32 %v955, 5
  %v957 = vand.u32 %v955, 31
  %v958 = vsub.s32 32, %v957
  %v959 = vshrl.u32 683565275, %v958
  %v960 = vshll.u32 683565275, %v957
  %v961 = vshrl.u32 2475754826, %v958
  %v962 = vor.u32 %v960, %v961
  %v963 = vshll.u32 2475754826, %v957
  %v964 = vshrl.u32 2131351028, %v958
  %v965 = vor.u32 %v963, %v964
  %v966 = vshll.u32 2131351028, %v957
  %v967 = vshrl.u32 2102212464, %v958
  %v968 = vor.u32 %v966, %v967
  %v969 = vshll.u32 2102212464, %v957
  %v970 = vshrl.u32 920167782, %v958
  %v971 = vor.u32 %v969, %v970
  %v972 = vshll.u32 920167782, %v957
  %v973 = vshrl.u32 1326507024, %v958
  %v974 = vor.u32 %v972, %v973
  %vm975 = vcmp.lt.s32.totalorder %v956, 1
  %vm976 = vcmp.lt.s32.totalorder %v956, 2
  %vm977 = vcmp.lt.s32.totalorder %v956, 3
  %vm978 = vcmp.lt.s32.totalorder %v956, 4
  %v979 = vsel %vm975, %v959, %v962
  %v980 = vsel %vm978, %v968, 2102212464
  %v981 = vsel %vm977, %v965, %v980
  %v982 = vsel %vm976, %v979, %v981
  %v983 = vsel %vm975, %v962, %v965
  %v984 = vsel %vm978, %v971, 920167782
  %v985 = vsel %vm977, %v968, %v984
  %v986 = vsel %vm976, %v983, %v985
  %v987 = vsel %vm975, %v965, %v968
  %v988 = vsel %vm978, %v974, 1326507024
  %v989 = vsel %vm977, %v971, %v988
  %v990 = vsel %vm976, %v987, %v989
  %v991 = vshll.u32 %v951, 8
  %v992 = vmul.u32.u64.compose %v991, %v990
  %v993 = vextract.low.u32 %v992
  %v994 = vextract.high.u32 %v992
  %v995 = vmul.u32.u64.compose %v991, %v986
  %v996 = vextract.low.u32 %v995
  %v997 = vextract.high.u32 %v995
  %v998 = vmul.u32 %v991, %v982
  %v999 = vadd.s32 %v994, %v996
  %vm1000 = vc.u32 %v994, %v996
  %v1001 = vadd.s32 %v997, 1
  %v1002 = vsel %vm1000, %v1001, %v997
  %v1003 = vadd.s32 %v998, %v1002
  %v1004 = vadd.s32 %v1003, 536870912
  %v1005 = vshrl.u32 %v1004, 30
  %v1006 = vshll.u32 %v1005, 30
  %v1007 = vsub.s32 %v1003, %v1006
  %vm1008 = vcmp.lt.s32.totalorder %v1007, 0
  %v1009 = vsub.s32 0, %v1007
  %v1010 = vsel %vm1008, %v1009, %v1007
  %v1011 = vclz %v1010
  %v1012 = vsub.s32 %v1011, 2
  %vm1013 = vcmp.gt.s32.totalorder 0, %v1012
  %v1014 = vsel %vm1013, 0, %v1012
  %v1015 = vsub.s32 32, %v1014
  %v1016 = vshll.u32 %v1007, %v1014
  %v1017 = vshrl.u32 %v999, %v1015
  %v1018 = vor.u32 %v1016, %v1017
  %v1019 = vsub.s32 4294967266, %v1014
  %v1020 = vadd.s32 %v1019, 127
  %v1021 = vshll.u32 %v1020, 23
  %v1022 = vor.u32 4788187, %v1021
  %v1023 = vand.u32 2147483647, %v1022
  %v1025 = vcvt.s32.f32 %v1018
  %v1026 = vmul.f32 %v1025, %v1023
  %v1027 = vxor.u32 %v1026, 2147483648
  %v1028 = vsel %vm945, %v1027, %v1026
  %v1029 = vsub.s32 4, %v1005
  %v1030 = vsel %vm945, %v1029, %v1005
  %v1031 = vsel %vm944, %v417, %v1028
  %v1032 = vsel %vm944, 0, %v1030
  %v1033 = vcosq.f32.pop %v1031
  %v1034 = vsinq.f32.pop %v1031
  %vm1035 = vweird.f32 %v417
  %v1036 = vand.u32 %v1032, 3
  %vm1037 = vcmp.lt.s32.totalorder %v1036, 2
  %vm1038 = vcmp.eq.s32.totalorder %v1036, 0
  %v1039 = vxor.u32 %v1034, 2147483648
  %v1040 = vsel %vm1038, %v1033, %v1039
  %vm1041 = vcmp.eq.s32.totalorder %v1036, 2
  %v1042 = vxor.u32 %v1033, 2147483648
  %v1043 = vsel %vm1041, %v1042, %v1034
  %v1044 = vsel %vm1037, %v1040, %v1043
  %v1045 = vsel %vm1035, nan, %v1044
  %v1046 = vand.u32 2147483647, %v418
  %vm1047 = vcmp.le.f32.partialorder %v1046, 0.7853982
  %vm1048 = vcmp.lt.s32.totalorder %v418, 0
  %v1049 = vand.u32 %v418, 2139095040
  %v1050 = vshrl.u32 %v1049, 23
  %v1051 = vsub.s32 %v1050, 127
  %v1052 = vand.u32 2147483647, %v418
  %v1053 = vand.u32 %v1052, 8388607
  %v1054 = vor.u32 %v1053, 8388608
  %v1055 = vsub.s32 0, %v1054
  %v1056 = vadd.s32 %v1051, 1
  %vm1057 = vcmp.gt.s32.totalorder %v1056, 0
  %v1058 = vsel %vm1057, %v1056, 0
  %v1059 = vshrl.u32 %v1058, 5
  %v1060 = vand.u32 %v1058, 31
  %v1061 = vsub.s32 32, %v1060
  %v1062 = vshrl.u32 683565275, %v1061
  %v1063 = vshll.u32 683565275, %v1060
  %v1064 = vshrl.u32 2475754826, %v1061
  %v1065 = vor.u32 %v1063, %v1064
  %v1066 = vshll.u32 2475754826, %v1060
  %v1067 = vshrl.u32 2131351028, %v1061
  %v1068 = vor.u32 %v1066, %v1067
  %v1069 = vshll.u32 2131351028, %v1060
  %v1070 = vshrl.u32 2102212464, %v1061
  %v1071 = vor.u32 %v1069, %v1070
  %v1072 = vshll.u32 2102212464, %v1060
  %v1073 = vshrl.u32 920167782, %v1061
  %v1074 = vor.u32 %v1072, %v1073
  %v1075 = vshll.u32 920167782, %v1060
  %v1076 = vshrl.u32 1326507024, %v1061
  %v1077 = vor.u32 %v1075, %v1076
  %vm1078 = vcmp.lt.s32.totalorder %v1059, 1
  %vm1079 = vcmp.lt.s32.totalorder %v1059, 2
  %vm1080 = vcmp.lt.s32.totalorder %v1059, 3
  %vm1081 = vcmp.lt.s32.totalorder %v1059, 4
  %v1082 = vsel %vm1078, %v1062, %v1065
  %v1083 = vsel %vm1081, %v1071, 2102212464
  %v1084 = vsel %vm1080, %v1068, %v1083
  %v1085 = vsel %vm1079, %v1082, %v1084
  %v1086 = vsel %vm1078, %v1065, %v1068
  %v1087 = vsel %vm1081, %v1074, 920167782
  %v1088 = vsel %vm1080, %v1071, %v1087
  %v1089 = vsel %vm1079, %v1086, %v1088
  %v1090 = vsel %vm1078, %v1068, %v1071
  %v1091 = vsel %vm1081, %v1077, 1326507024
  %v1092 = vsel %vm1080, %v1074, %v1091
  %v1093 = vsel %vm1079, %v1090, %v1092
  %v1094 = vshll.u32 %v1054, 8
  %v1095 = vmul.u32.u64.compose %v1094, %v1093
  %v1096 = vextract.low.u32 %v1095
  %v1097 = vextract.high.u32 %v1095
  %v1098 = vmul.u32.u64.compose %v1094, %v1089
  %v1099 = vextract.low.u32 %v1098
  %v1100 = vextract.high.u32 %v1098
  %v1101 = vmul.u32 %v1094, %v1085
  %v1102 = vadd.s32 %v1097, %v1099
  %vm1103 = vc.u32 %v1097, %v1099
  %v1104 = vadd.s32 %v1100, 1
  %v1105 = vsel %vm1103, %v1104, %v1100
  %v1106 = vadd.s32 %v1101, %v1105
  %v1107 = vadd.s32 %v1106, 536870912
  %v1108 = vshrl.u32 %v1107, 30
  %v1109 = vshll.u32 %v1108, 30
  %v1110 = vsub.s32 %v1106, %v1109
  %vm1111 = vcmp.lt.s32.totalorder %v1110, 0
  %v1112 = vsub.s32 0, %v1110
  %v1113 = vsel %vm1111, %v1112, %v1110
  %v1114 = vclz %v1113
  %v1115 = vsub.s32 %v1114, 2
  %vm1116 = vcmp.gt.s32.totalorder 0, %v1115
  %v1117 = vsel %vm1116, 0, %v1115
  %v1118 = vsub.s32 32, %v1117
  %v1119 = vshll.u32 %v1110, %v1117
  %v1120 = vshrl.u32 %v1102, %v1118
  %v1121 = vor.u32 %v1119, %v1120
  %v1122 = vsub.s32 4294967266, %v1117
  %v1123 = vadd.s32 %v1122, 127
  %v1124 = vshll.u32 %v1123, 23
  %v1125 = vor.u32 4788187, %v1124
  %v1126 = vand.u32 2147483647, %v1125
  %v1128 = vcvt.s32.f32 %v1121
  %v1129 = vmul.f32 %v1128, %v1126
  %v1130 = vxor.u32 %v1129, 2147483648
  %v1131 = vsel %vm1048, %v1130, %v1129
  %v1132 = vsub.s32 4, %v1108
  %v1133 = vsel %vm1048, %v1132, %v1108
  %v1134 = vsel %vm1047, %v418, %v1131
  %v1135 = vsel %vm1047, 0, %v1133
  %v1136 = vcosq.f32.pop %v1134
  %v1137 = vsinq.f32.pop %v1134
  %vm1138 = vweird.f32 %v418
  %v1139 = vand.u32 %v1135, 3
  %vm1140 = vcmp.lt.s32.totalorder %v1139, 2
  %vm1141 = vcmp.eq.s32.totalorder %v1139, 0
  %v1142 = vxor.u32 %v1137, 2147483648
  %v1143 = vsel %vm1141, %v1136, %v1142
  %vm1144 = vcmp.eq.s32.totalorder %v1139, 2
  %v1145 = vxor.u32 %v1136, 2147483648
  %v1146 = vsel %vm1144, %v1145, %v1137
  %v1147 = vsel %vm1140, %v1143, %v1146
  %v1148 = vsel %vm1138, nan, %v1147
  %v1149 = vand.u32 2147483647, %v419
  %vm1150 = vcmp.le.f32.partialorder %v1149, 0.7853982
  %vm1151 = vcmp.lt.s32.totalorder %v419, 0
  %v1152 = vand.u32 %v419, 2139095040
  %v1153 = vshrl.u32 %v1152, 23
  %v1154 = vsub.s32 %v1153, 127
  %v1155 = vand.u32 2147483647, %v419
  %v1156 = vand.u32 %v1155, 8388607
  %v1157 = vor.u32 %v1156, 8388608
  %v1158 = vsub.s32 0, %v1157
  %v1159 = vadd.s32 %v1154, 1
  %vm1160 = vcmp.gt.s32.totalorder %v1159, 0
  %v1161 = vsel %vm1160, %v1159, 0
  %v1162 = vshrl.u32 %v1161, 5
  %v1163 = vand.u32 %v1161, 31
  %v1164 = vsub.s32 32, %v1163
  %v1165 = vshrl.u32 683565275, %v1164
  %v1166 = vshll.u32 683565275, %v1163
  %v1167 = vshrl.u32 2475754826, %v1164
  %v1168 = vor.u32 %v1166, %v1167
  %v1169 = vshll.u32 2475754826, %v1163
  %v1170 = vshrl.u32 2131351028, %v1164
  %v1171 = vor.u32 %v1169, %v1170
  %v1172 = vshll.u32 2131351028, %v1163
  %v1173 = vshrl.u32 2102212464, %v1164
  %v1174 = vor.u32 %v1172, %v1173
  %v1175 = vshll.u32 2102212464, %v1163
  %v1176 = vshrl.u32 920167782, %v1164
  %v1177 = vor.u32 %v1175, %v1176
  %v1178 = vshll.u32 920167782, %v1163
  %v1179 = vshrl.u32 1326507024, %v1164
  %v1180 = vor.u32 %v1178, %v1179
  %vm1181 = vcmp.lt.s32.totalorder %v1162, 1
  %vm1182 = vcmp.lt.s32.totalorder %v1162, 2
  %vm1183 = vcmp.lt.s32.totalorder %v1162, 3
  %vm1184 = vcmp.lt.s32.totalorder %v1162, 4
  %v1185 = vsel %vm1181, %v1165, %v1168
  %v1186 = vsel %vm1184, %v1174, 2102212464
  %v1187 = vsel %vm1183, %v1171, %v1186
  %v1188 = vsel %vm1182, %v1185, %v1187
  %v1189 = vsel %vm1181, %v1168, %v1171
  %v1190 = vsel %vm1184, %v1177, 920167782
  %v1191 = vsel %vm1183, %v1174, %v1190
  %v1192 = vsel %vm1182, %v1189, %v1191
  %v1193 = vsel %vm1181, %v1171, %v1174
  %v1194 = vsel %vm1184, %v1180, 1326507024
  %v1195 = vsel %vm1183, %v1177, %v1194
  %v1196 = vsel %vm1182, %v1193, %v1195
  %v1197 = vshll.u32 %v1157, 8
  %v1198 = vmul.u32.u64.compose %v1197, %v1196
  %v1199 = vextract.low.u32 %v1198
  %v1200 = vextract.high.u32 %v1198
  %v1201 = vmul.u32.u64.compose %v1197, %v1192
  %v1202 = vextract.low.u32 %v1201
  %v1203 = vextract.high.u32 %v1201
  %v1204 = vmul.u32 %v1197, %v1188
  %v1205 = vadd.s32 %v1200, %v1202
  %vm1206 = vc.u32 %v1200, %v1202
  %v1207 = vadd.s32 %v1203, 1
  %v1208 = vsel %vm1206, %v1207, %v1203
  %v1209 = vadd.s32 %v1204, %v1208
  %v1210 = vadd.s32 %v1209, 536870912
  %v1211 = vshrl.u32 %v1210, 30
  %v1212 = vshll.u32 %v1211, 30
  %v1213 = vsub.s32 %v1209, %v1212
  %vm1214 = vcmp.lt.s32.totalorder %v1213, 0
  %v1215 = vsub.s32 0, %v1213
  %v1216 = vsel %vm1214, %v1215, %v1213
  %v1217 = vclz %v1216
  %v1218 = vsub.s32 %v1217, 2
  %vm1219 = vcmp.gt.s32.totalorder 0, %v1218
  %v1220 = vsel %vm1219, 0, %v1218
  %v1221 = vsub.s32 32, %v1220
  %v1222 = vshll.u32 %v1213, %v1220
  %v1223 = vshrl.u32 %v1205, %v1221
  %v1224 = vor.u32 %v1222, %v1223
  %v1225 = vsub.s32 4294967266, %v1220
  %v1226 = vadd.s32 %v1225, 127
  %v1227 = vshll.u32 %v1226, 23
  %v1228 = vor.u32 4788187, %v1227
  %v1229 = vand.u32 2147483647, %v1228
  %v1231 = vcvt.s32.f32 %v1224
  %v1232 = vmul.f32 %v1231, %v1229
  %v1233 = vxor.u32 %v1232, 2147483648
  %v1234 = vsel %vm1151, %v1233, %v1232
  %v1235 = vsub.s32 4, %v1211
  %v1236 = vsel %vm1151, %v1235, %v1211
  %v1237 = vsel %vm1150, %v419, %v1234
  %v1238 = vsel %vm1150, 0, %v1236
  %v1239 = vcosq.f32.pop %v1237
  %v1240 = vsinq.f32.pop %v1237
  %vm1241 = vweird.f32 %v419
  %v1242 = vand.u32 %v1238, 3
  %vm1243 = vcmp.lt.s32.totalorder %v1242, 2
  %vm1244 = vcmp.eq.s32.totalorder %v1242, 0
  %v1245 = vxor.u32 %v1240, 2147483648
  %v1246 = vsel %vm1244, %v1239, %v1245
  %vm1247 = vcmp.eq.s32.totalorder %v1242, 2
  %v1248 = vxor.u32 %v1239, 2147483648
  %v1249 = vsel %vm1247, %v1248, %v1240
  %v1250 = vsel %vm1243, %v1246, %v1249
  %v1251 = vsel %vm1241, nan, %v1250
  %v1252 = vand.u32 2147483647, %v420
  %vm1253 = vcmp.le.f32.partialorder %v1252, 0.7853982
  %vm1254 = vcmp.lt.s32.totalorder %v420, 0
  %v1255 = vand.u32 %v420, 2139095040
  %v1256 = vshrl.u32 %v1255, 23
  %v1257 = vsub.s32 %v1256, 127
  %v1258 = vand.u32 2147483647, %v420
  %v1259 = vand.u32 %v1258, 8388607
  %v1260 = vor.u32 %v1259, 8388608
  %v1261 = vsub.s32 0, %v1260
  %v1262 = vadd.s32 %v1257, 1
  %vm1263 = vcmp.gt.s32.totalorder %v1262, 0
  %v1264 = vsel %vm1263, %v1262, 0
  %v1265 = vshrl.u32 %v1264, 5
  %v1266 = vand.u32 %v1264, 31
  %v1267 = vsub.s32 32, %v1266
  %v1268 = vshrl.u32 683565275, %v1267
  %v1269 = vshll.u32 683565275, %v1266
  %v1270 = vshrl.u32 2475754826, %v1267
  %v1271 = vor.u32 %v1269, %v1270
  %v1272 = vshll.u32 2475754826, %v1266
  %v1273 = vshrl.u32 2131351028, %v1267
  %v1274 = vor.u32 %v1272, %v1273
  %v1275 = vshll.u32 2131351028, %v1266
  %v1276 = vshrl.u32 2102212464, %v1267
  %v1277 = vor.u32 %v1275, %v1276
  %v1278 = vshll.u32 2102212464, %v1266
  %v1279 = vshrl.u32 920167782, %v1267
  %v1280 = vor.u32 %v1278, %v1279
  %v1281 = vshll.u32 920167782, %v1266
  %v1282 = vshrl.u32 1326507024, %v1267
  %v1283 = vor.u32 %v1281, %v1282
  %vm1284 = vcmp.lt.s32.totalorder %v1265, 1
  %vm1285 = vcmp.lt.s32.totalorder %v1265, 2
  %vm1286 = vcmp.lt.s32.totalorder %v1265, 3
  %vm1287 = vcmp.lt.s32.totalorder %v1265, 4
  %v1288 = vsel %vm1284, %v1268, %v1271
  %v1289 = vsel %vm1287, %v1277, 2102212464
  %v1290 = vsel %vm1286, %v1274, %v1289
  %v1291 = vsel %vm1285, %v1288, %v1290
  %v1292 = vsel %vm1284, %v1271, %v1274
  %v1293 = vsel %vm1287, %v1280, 920167782
  %v1294 = vsel %vm1286, %v1277, %v1293
  %v1295 = vsel %vm1285, %v1292, %v1294
  %v1296 = vsel %vm1284, %v1274, %v1277
  %v1297 = vsel %vm1287, %v1283, 1326507024
  %v1298 = vsel %vm1286, %v1280, %v1297
  %v1299 = vsel %vm1285, %v1296, %v1298
  %v1300 = vshll.u32 %v1260, 8
  %v1301 = vmul.u32.u64.compose %v1300, %v1299
  %v1302 = vextract.low.u32 %v1301
  %v1303 = vextract.high.u32 %v1301
  %v1304 = vmul.u32.u64.compose %v1300, %v1295
  %v1305 = vextract.low.u32 %v1304
  %v1306 = vextract.high.u32 %v1304
  %v1307 = vmul.u32 %v1300, %v1291
  %v1308 = vadd.s32 %v1303, %v1305
  %vm1309 = vc.u32 %v1303, %v1305
  %v1310 = vadd.s32 %v1306, 1
  %v1311 = vsel %vm1309, %v1310, %v1306
  %v1312 = vadd.s32 %v1307, %v1311
  %v1313 = vadd.s32 %v1312, 536870912
  %v1314 = vshrl.u32 %v1313, 30
  %v1315 = vshll.u32 %v1314, 30
  %v1316 = vsub.s32 %v1312, %v1315
  %vm1317 = vcmp.lt.s32.totalorder %v1316, 0
  %v1318 = vsub.s32 0, %v1316
  %v1319 = vsel %vm1317, %v1318, %v1316
  %v1320 = vclz %v1319
  %v1321 = vsub.s32 %v1320, 2
  %vm1322 = vcmp.gt.s32.totalorder 0, %v1321
  %v1323 = vsel %vm1322, 0, %v1321
  %v1324 = vsub.s32 32, %v1323
  %v1325 = vshll.u32 %v1316, %v1323
  %v1326 = vshrl.u32 %v1308, %v1324
  %v1327 = vor.u32 %v1325, %v1326
  %v1328 = vsub.s32 4294967266, %v1323
  %v1329 = vadd.s32 %v1328, 127
  %v1330 = vshll.u32 %v1329, 23
  %v1331 = vor.u32 4788187, %v1330
  %v1332 = vand.u32 2147483647, %v1331
  %v1334 = vcvt.s32.f32 %v1327
  %v1335 = vmul.f32 %v1334, %v1332
  %v1336 = vxor.u32 %v1335, 2147483648
  %v1337 = vsel %vm1254, %v1336, %v1335
  %v1338 = vsub.s32 4, %v1314
  %v1339 = vsel %vm1254, %v1338, %v1314
  %v1340 = vsel %vm1253, %v420, %v1337
  %v1341 = vsel %vm1253, 0, %v1339
  %v1342 = vcosq.f32.pop %v1340
  %v1343 = vsinq.f32.pop %v1340
  %vm1344 = vweird.f32 %v420
  %v1345 = vand.u32 %v1341, 3
  %vm1346 = vcmp.lt.s32.totalorder %v1345, 2
  %vm1347 = vcmp.eq.s32.totalorder %v1345, 0
  %v1348 = vxor.u32 %v1343, 2147483648
  %v1349 = vsel %vm1347, %v1342, %v1348
  %vm1350 = vcmp.eq.s32.totalorder %v1345, 2
  %v1351 = vxor.u32 %v1342, 2147483648
  %v1352 = vsel %vm1350, %v1351, %v1343
  %v1353 = vsel %vm1346, %v1349, %v1352
  %v1354 = vsel %vm1344, nan, %v1353
  %v1355 = vand.u32 2147483647, %v421
  %vm1356 = vcmp.le.f32.partialorder %v1355, 0.7853982
  %vm1357 = vcmp.lt.s32.totalorder %v421, 0
  %v1358 = vand.u32 %v421, 2139095040
  %v1359 = vshrl.u32 %v1358, 23
  %v1360 = vsub.s32 %v1359, 127
  %v1361 = vand.u32 2147483647, %v421
  %v1362 = vand.u32 %v1361, 8388607
  %v1363 = vor.u32 %v1362, 8388608
  %v1364 = vsub.s32 0, %v1363
  %v1365 = vadd.s32 %v1360, 1
  %vm1366 = vcmp.gt.s32.totalorder %v1365, 0
  %v1367 = vsel %vm1366, %v1365, 0
  %v1368 = vshrl.u32 %v1367, 5
  %v1369 = vand.u32 %v1367, 31
  %v1370 = vsub.s32 32, %v1369
  %v1371 = vshrl.u32 683565275, %v1370
  %v1372 = vshll.u32 683565275, %v1369
  %v1373 = vshrl.u32 2475754826, %v1370
  %v1374 = vor.u32 %v1372, %v1373
  %v1375 = vshll.u32 2475754826, %v1369
  %v1376 = vshrl.u32 2131351028, %v1370
  %v1377 = vor.u32 %v1375, %v1376
  %v1378 = vshll.u32 2131351028, %v1369
  %v1379 = vshrl.u32 2102212464, %v1370
  %v1380 = vor.u32 %v1378, %v1379
  %v1381 = vshll.u32 2102212464, %v1369
  %v1382 = vshrl.u32 920167782, %v1370
  %v1383 = vor.u32 %v1381, %v1382
  %v1384 = vshll.u32 920167782, %v1369
  %v1385 = vshrl.u32 1326507024, %v1370
  %v1386 = vor.u32 %v1384, %v1385
  %vm1387 = vcmp.lt.s32.totalorder %v1368, 1
  %vm1388 = vcmp.lt.s32.totalorder %v1368, 2
  %vm1389 = vcmp.lt.s32.totalorder %v1368, 3
  %vm1390 = vcmp.lt.s32.totalorder %v1368, 4
  %v1391 = vsel %vm1387, %v1371, %v1374
  %v1392 = vsel %vm1390, %v1380, 2102212464
  %v1393 = vsel %vm1389, %v1377, %v1392
  %v1394 = vsel %vm1388, %v1391, %v1393
  %v1395 = vsel %vm1387, %v1374, %v1377
  %v1396 = vsel %vm1390, %v1383, 920167782
  %v1397 = vsel %vm1389, %v1380, %v1396
  %v1398 = vsel %vm1388, %v1395, %v1397
  %v1399 = vsel %vm1387, %v1377, %v1380
  %v1400 = vsel %vm1390, %v1386, 1326507024
  %v1401 = vsel %vm1389, %v1383, %v1400
  %v1402 = vsel %vm1388, %v1399, %v1401
  %v1403 = vshll.u32 %v1363, 8
  %v1404 = vmul.u32.u64.compose %v1403, %v1402
  %v1405 = vextract.low.u32 %v1404
  %v1406 = vextract.high.u32 %v1404
  %v1407 = vmul.u32.u64.compose %v1403, %v1398
  %v1408 = vextract.low.u32 %v1407
  %v1409 = vextract.high.u32 %v1407
  %v1410 = vmul.u32 %v1403, %v1394
  %v1411 = vadd.s32 %v1406, %v1408
  %vm1412 = vc.u32 %v1406, %v1408
  %v1413 = vadd.s32 %v1409, 1
  %v1414 = vsel %vm1412, %v1413, %v1409
  %v1415 = vadd.s32 %v1410, %v1414
  %v1416 = vadd.s32 %v1415, 536870912
  %v1417 = vshrl.u32 %v1416, 30
  %v1418 = vshll.u32 %v1417, 30
  %v1419 = vsub.s32 %v1415, %v1418
  %vm1420 = vcmp.lt.s32.totalorder %v1419, 0
  %v1421 = vsub.s32 0, %v1419
  %v1422 = vsel %vm1420, %v1421, %v1419
  %v1423 = vclz %v1422
  %v1424 = vsub.s32 %v1423, 2
  %vm1425 = vcmp.gt.s32.totalorder 0, %v1424
  %v1426 = vsel %vm1425, 0, %v1424
  %v1427 = vsub.s32 32, %v1426
  %v1428 = vshll.u32 %v1419, %v1426
  %v1429 = vshrl.u32 %v1411, %v1427
  %v1430 = vor.u32 %v1428, %v1429
  %v1431 = vsub.s32 4294967266, %v1426
  %v1432 = vadd.s32 %v1431, 127
  %v1433 = vshll.u32 %v1432, 23
  %v1434 = vor.u32 4788187, %v1433
  %v1435 = vand.u32 2147483647, %v1434
  %v1437 = vcvt.s32.f32 %v1430
  %v1438 = vmul.f32 %v1437, %v1435
  %v1439 = vxor.u32 %v1438, 2147483648
  %v1440 = vsel %vm1357, %v1439, %v1438
  %v1441 = vsub.s32 4, %v1417
  %v1442 = vsel %vm1357, %v1441, %v1417
  %v1443 = vsel %vm1356, %v421, %v1440
  %v1444 = vsel %vm1356, 0, %v1442
  %v1445 = vcosq.f32.pop %v1443
  %v1446 = vsinq.f32.pop %v1443
  %vm1447 = vweird.f32 %v421
  %v1448 = vand.u32 %v1444, 3
  %vm1449 = vcmp.lt.s32.totalorder %v1448, 2
  %vm1450 = vcmp.eq.s32.totalorder %v1448, 0
  %v1451 = vxor.u32 %v1446, 2147483648
  %v1452 = vsel %vm1450, %v1445, %v1451
  %vm1453 = vcmp.eq.s32.totalorder %v1448, 2
  %v1454 = vxor.u32 %v1445, 2147483648
  %v1455 = vsel %vm1453, %v1454, %v1446
  %v1456 = vsel %vm1449, %v1452, %v1455
  %v1457 = vsel %vm1447, nan, %v1456
  %v1458 = vand.u32 2147483647, %v422
  %vm1459 = vcmp.le.f32.partialorder %v1458, 0.7853982
  %vm1460 = vcmp.lt.s32.totalorder %v422, 0
  %v1461 = vand.u32 %v422, 2139095040
  %v1462 = vshrl.u32 %v1461, 23
  %v1463 = vsub.s32 %v1462, 127
  %v1464 = vand.u32 2147483647, %v422
  %v1465 = vand.u32 %v1464, 8388607
  %v1466 = vor.u32 %v1465, 8388608
  %v1467 = vsub.s32 0, %v1466
  %v1468 = vadd.s32 %v1463, 1
  %vm1469 = vcmp.gt.s32.totalorder %v1468, 0
  %v1470 = vsel %vm1469, %v1468, 0
  %v1471 = vshrl.u32 %v1470, 5
  %v1472 = vand.u32 %v1470, 31
  %v1473 = vsub.s32 32, %v1472
  %v1474 = vshrl.u32 683565275, %v1473
  %v1475 = vshll.u32 683565275, %v1472
  %v1476 = vshrl.u32 2475754826, %v1473
  %v1477 = vor.u32 %v1475, %v1476
  %v1478 = vshll.u32 2475754826, %v1472
  %v1479 = vshrl.u32 2131351028, %v1473
  %v1480 = vor.u32 %v1478, %v1479
  %v1481 = vshll.u32 2131351028, %v1472
  %v1482 = vshrl.u32 2102212464, %v1473
  %v1483 = vor.u32 %v1481, %v1482
  %v1484 = vshll.u32 2102212464, %v1472
  %v1485 = vshrl.u32 920167782, %v1473
  %v1486 = vor.u32 %v1484, %v1485
  %v1487 = vshll.u32 920167782, %v1472
  %v1488 = vshrl.u32 1326507024, %v1473
  %v1489 = vor.u32 %v1487, %v1488
  %vm1490 = vcmp.lt.s32.totalorder %v1471, 1
  %vm1491 = vcmp.lt.s32.totalorder %v1471, 2
  %vm1492 = vcmp.lt.s32.totalorder %v1471, 3
  %vm1493 = vcmp.lt.s32.totalorder %v1471, 4
  %v1494 = vsel %vm1490, %v1474, %v1477
  %v1495 = vsel %vm1493, %v1483, 2102212464
  %v1496 = vsel %vm1492, %v1480, %v1495
  %v1497 = vsel %vm1491, %v1494, %v1496
  %v1498 = vsel %vm1490, %v1477, %v1480
  %v1499 = vsel %vm1493, %v1486, 920167782
  %v1500 = vsel %vm1492, %v1483, %v1499
  %v1501 = vsel %vm1491, %v1498, %v1500
  %v1502 = vsel %vm1490, %v1480, %v1483
  %v1503 = vsel %vm1493, %v1489, 1326507024
  %v1504 = vsel %vm1492, %v1486, %v1503
  %v1505 = vsel %vm1491, %v1502, %v1504
  %v1506 = vshll.u32 %v1466, 8
  %v1507 = vmul.u32.u64.compose %v1506, %v1505
  %v1508 = vextract.low.u32 %v1507
  %v1509 = vextract.high.u32 %v1507
  %v1510 = vmul.u32.u64.compose %v1506, %v1501
  %v1511 = vextract.low.u32 %v1510
  %v1512 = vextract.high.u32 %v1510
  %v1513 = vmul.u32 %v1506, %v1497
  %v1514 = vadd.s32 %v1509, %v1511
  %vm1515 = vc.u32 %v1509, %v1511
  %v1516 = vadd.s32 %v1512, 1
  %v1517 = vsel %vm1515, %v1516, %v1512
  %v1518 = vadd.s32 %v1513, %v1517
  %v1519 = vadd.s32 %v1518, 536870912
  %v1520 = vshrl.u32 %v1519, 30
  %v1521 = vshll.u32 %v1520, 30
  %v1522 = vsub.s32 %v1518, %v1521
  %vm1523 = vcmp.lt.s32.totalorder %v1522, 0
  %v1524 = vsub.s32 0, %v1522
  %v1525 = vsel %vm1523, %v1524, %v1522
  %v1526 = vclz %v1525
  %v1527 = vsub.s32 %v1526, 2
  %vm1528 = vcmp.gt.s32.totalorder 0, %v1527
  %v1529 = vsel %vm1528, 0, %v1527
  %v1530 = vsub.s32 32, %v1529
  %v1531 = vshll.u32 %v1522, %v1529
  %v1532 = vshrl.u32 %v1514, %v1530
  %v1533 = vor.u32 %v1531, %v1532
  %v1534 = vsub.s32 4294967266, %v1529
  %v1535 = vadd.s32 %v1534, 127
  %v1536 = vshll.u32 %v1535, 23
  %v1537 = vor.u32 4788187, %v1536
  %v1538 = vand.u32 2147483647, %v1537
  %v1540 = vcvt.s32.f32 %v1533
  %v1541 = vmul.f32 %v1540, %v1538
  %v1542 = vxor.u32 %v1541, 2147483648
  %v1543 = vsel %vm1460, %v1542, %v1541
  %v1544 = vsub.s32 4, %v1520
  %v1545 = vsel %vm1460, %v1544, %v1520
  %v1546 = vsel %vm1459, %v422, %v1543
  %v1547 = vsel %vm1459, 0, %v1545
  %v1548 = vcosq.f32.pop %v1546
  %v1549 = vsinq.f32.pop %v1546
  %vm1550 = vweird.f32 %v422
  %v1551 = vand.u32 %v1547, 3
  %vm1552 = vcmp.lt.s32.totalorder %v1551, 2
  %vm1553 = vcmp.eq.s32.totalorder %v1551, 0
  %v1554 = vxor.u32 %v1549, 2147483648
  %v1555 = vsel %vm1553, %v1548, %v1554
  %vm1556 = vcmp.eq.s32.totalorder %v1551, 2
  %v1557 = vxor.u32 %v1548, 2147483648
  %v1558 = vsel %vm1556, %v1557, %v1549
  %v1559 = vsel %vm1552, %v1555, %v1558
  %v1560 = vsel %vm1550, nan, %v1559
  %v1561 = vand.u32 2147483647, %v423
  %vm1562 = vcmp.le.f32.partialorder %v1561, 0.7853982
  %vm1563 = vcmp.lt.s32.totalorder %v423, 0
  %v1564 = vand.u32 %v423, 2139095040
  %v1565 = vshrl.u32 %v1564, 23
  %v1566 = vsub.s32 %v1565, 127
  %v1567 = vand.u32 2147483647, %v423
  %v1568 = vand.u32 %v1567, 8388607
  %v1569 = vor.u32 %v1568, 8388608
  %v1570 = vsub.s32 0, %v1569
  %v1571 = vadd.s32 %v1566, 1
  %vm1572 = vcmp.gt.s32.totalorder %v1571, 0
  %v1573 = vsel %vm1572, %v1571, 0
  %v1574 = vshrl.u32 %v1573, 5
  %v1575 = vand.u32 %v1573, 31
  %v1576 = vsub.s32 32, %v1575
  %v1577 = vshrl.u32 683565275, %v1576
  %v1578 = vshll.u32 683565275, %v1575
  %v1579 = vshrl.u32 2475754826, %v1576
  %v1580 = vor.u32 %v1578, %v1579
  %v1581 = vshll.u32 2475754826, %v1575
  %v1582 = vshrl.u32 2131351028, %v1576
  %v1583 = vor.u32 %v1581, %v1582
  %v1584 = vshll.u32 2131351028, %v1575
  %v1585 = vshrl.u32 2102212464, %v1576
  %v1586 = vor.u32 %v1584, %v1585
  %v1587 = vshll.u32 2102212464, %v1575
  %v1588 = vshrl.u32 920167782, %v1576
  %v1589 = vor.u32 %v1587, %v1588
  %v1590 = vshll.u32 920167782, %v1575
  %v1591 = vshrl.u32 1326507024, %v1576
  %v1592 = vor.u32 %v1590, %v1591
  %vm1593 = vcmp.lt.s32.totalorder %v1574, 1
  %vm1594 = vcmp.lt.s32.totalorder %v1574, 2
  %vm1595 = vcmp.lt.s32.totalorder %v1574, 3
  %vm1596 = vcmp.lt.s32.totalorder %v1574, 4
  %v1597 = vsel %vm1593, %v1577, %v1580
  %v1598 = vsel %vm1596, %v1586, 2102212464
  %v1599 = vsel %vm1595, %v1583, %v1598
  %v1600 = vsel %vm1594, %v1597, %v1599
  %v1601 = vsel %vm1593, %v1580, %v1583
  %v1602 = vsel %vm1596, %v1589, 920167782
  %v1603 = vsel %vm1595, %v1586, %v1602
  %v1604 = vsel %vm1594, %v1601, %v1603
  %v1605 = vsel %vm1593, %v1583, %v1586
  %v1606 = vsel %vm1596, %v1592, 1326507024
  %v1607 = vsel %vm1595, %v1589, %v1606
  %v1608 = vsel %vm1594, %v1605, %v1607
  %v1609 = vshll.u32 %v1569, 8
  %v1610 = vmul.u32.u64.compose %v1609, %v1608
  %v1611 = vextract.low.u32 %v1610
  %v1612 = vextract.high.u32 %v1610
  %v1613 = vmul.u32.u64.compose %v1609, %v1604
  %v1614 = vextract.low.u32 %v1613
  %v1615 = vextract.high.u32 %v1613
  %v1616 = vmul.u32 %v1609, %v1600
  %v1617 = vadd.s32 %v1612, %v1614
  %vm1618 = vc.u32 %v1612, %v1614
  %v1619 = vadd.s32 %v1615, 1
  %v1620 = vsel %vm1618, %v1619, %v1615
  %v1621 = vadd.s32 %v1616, %v1620
  %v1622 = vadd.s32 %v1621, 536870912
  %v1623 = vshrl.u32 %v1622, 30
  %v1624 = vshll.u32 %v1623, 30
  %v1625 = vsub.s32 %v1621, %v1624
  %vm1626 = vcmp.lt.s32.totalorder %v1625, 0
  %v1627 = vsub.s32 0, %v1625
  %v1628 = vsel %vm1626, %v1627, %v1625
  %v1629 = vclz %v1628
  %v1630 = vsub.s32 %v1629, 2
  %vm1631 = vcmp.gt.s32.totalorder 0, %v1630
  %v1632 = vsel %vm1631, 0, %v1630
  %v1633 = vsub.s32 32, %v1632
  %v1634 = vshll.u32 %v1625, %v1632
  %v1635 = vshrl.u32 %v1617, %v1633
  %v1636 = vor.u32 %v1634, %v1635
  %v1637 = vsub.s32 4294967266, %v1632
  %v1638 = vadd.s32 %v1637, 127
  %v1639 = vshll.u32 %v1638, 23
  %v1640 = vor.u32 4788187, %v1639
  %v1641 = vand.u32 2147483647, %v1640
  %v1643 = vcvt.s32.f32 %v1636
  %v1644 = vmul.f32 %v1643, %v1641
  %v1645 = vxor.u32 %v1644, 2147483648
  %v1646 = vsel %vm1563, %v1645, %v1644
  %v1647 = vsub.s32 4, %v1623
  %v1648 = vsel %vm1563, %v1647, %v1623
  %v1649 = vsel %vm1562, %v423, %v1646
  %v1650 = vsel %vm1562, 0, %v1648
  %v1651 = vcosq.f32.pop %v1649
  %v1652 = vsinq.f32.pop %v1649
  %vm1653 = vweird.f32 %v423
  %v1654 = vand.u32 %v1650, 3
  %vm1655 = vcmp.lt.s32.totalorder %v1654, 2
  %vm1656 = vcmp.eq.s32.totalorder %v1654, 0
  %v1657 = vxor.u32 %v1652, 2147483648
  %v1658 = vsel %vm1656, %v1651, %v1657
  %vm1659 = vcmp.eq.s32.totalorder %v1654, 2
  %v1660 = vxor.u32 %v1651, 2147483648
  %v1661 = vsel %vm1659, %v1660, %v1652
  %v1662 = vsel %vm1655, %v1658, %v1661
  %v1663 = vsel %vm1653, nan, %v1662
  %v1664 = vand.u32 2147483647, %v424
  %vm1665 = vcmp.le.f32.partialorder %v1664, 0.7853982
  %vm1666 = vcmp.lt.s32.totalorder %v424, 0
  %v1667 = vand.u32 %v424, 2139095040
  %v1668 = vshrl.u32 %v1667, 23
  %v1669 = vsub.s32 %v1668, 127
  %v1670 = vand.u32 2147483647, %v424
  %v1671 = vand.u32 %v1670, 8388607
  %v1672 = vor.u32 %v1671, 8388608
  %v1673 = vsub.s32 0, %v1672
  %v1674 = vadd.s32 %v1669, 1
  %vm1675 = vcmp.gt.s32.totalorder %v1674, 0
  %v1676 = vsel %vm1675, %v1674, 0
  %v1677 = vshrl.u32 %v1676, 5
  %v1678 = vand.u32 %v1676, 31
  %v1679 = vsub.s32 32, %v1678
  %v1680 = vshrl.u32 683565275, %v1679
  %v1681 = vshll.u32 683565275, %v1678
  %v1682 = vshrl.u32 2475754826, %v1679
  %v1683 = vor.u32 %v1681, %v1682
  %v1684 = vshll.u32 2475754826, %v1678
  %v1685 = vshrl.u32 2131351028, %v1679
  %v1686 = vor.u32 %v1684, %v1685
  %v1687 = vshll.u32 2131351028, %v1678
  %v1688 = vshrl.u32 2102212464, %v1679
  %v1689 = vor.u32 %v1687, %v1688
  %v1690 = vshll.u32 2102212464, %v1678
  %v1691 = vshrl.u32 920167782, %v1679
  %v1692 = vor.u32 %v1690, %v1691
  %v1693 = vshll.u32 920167782, %v1678
  %v1694 = vshrl.u32 1326507024, %v1679
  %v1695 = vor.u32 %v1693, %v1694
  %vm1696 = vcmp.lt.s32.totalorder %v1677, 1
  %vm1697 = vcmp.lt.s32.totalorder %v1677, 2
  %vm1698 = vcmp.lt.s32.totalorder %v1677, 3
  %vm1699 = vcmp.lt.s32.totalorder %v1677, 4
  %v1700 = vsel %vm1696, %v1680, %v1683
  %v1701 = vsel %vm1699, %v1689, 2102212464
  %v1702 = vsel %vm1698, %v1686, %v1701
  %v1703 = vsel %vm1697, %v1700, %v1702
  %v1704 = vsel %vm1696, %v1683, %v1686
  %v1705 = vsel %vm1699, %v1692, 920167782
  %v1706 = vsel %vm1698, %v1689, %v1705
  %v1707 = vsel %vm1697, %v1704, %v1706
  %v1708 = vsel %vm1696, %v1686, %v1689
  %v1709 = vsel %vm1699, %v1695, 1326507024
  %v1710 = vsel %vm1698, %v1692, %v1709
  %v1711 = vsel %vm1697, %v1708, %v1710
  %v1712 = vshll.u32 %v1672, 8
  %v1713 = vmul.u32.u64.compose %v1712, %v1711
  %v1714 = vextract.low.u32 %v1713
  %v1715 = vextract.high.u32 %v1713
  %v1716 = vmul.u32.u64.compose %v1712, %v1707
  %v1717 = vextract.low.u32 %v1716
  %v1718 = vextract.high.u32 %v1716
  %v1719 = vmul.u32 %v1712, %v1703
  %v1720 = vadd.s32 %v1715, %v1717
  %vm1721 = vc.u32 %v1715, %v1717
  %v1722 = vadd.s32 %v1718, 1
  %v1723 = vsel %vm1721, %v1722, %v1718
  %v1724 = vadd.s32 %v1719, %v1723
  %v1725 = vadd.s32 %v1724, 536870912
  %v1726 = vshrl.u32 %v1725, 30
  %v1727 = vshll.u32 %v1726, 30
  %v1728 = vsub.s32 %v1724, %v1727
  %vm1729 = vcmp.lt.s32.totalorder %v1728, 0
  %v1730 = vsub.s32 0, %v1728
  %v1731 = vsel %vm1729, %v1730, %v1728
  %v1732 = vclz %v1731
  %v1733 = vsub.s32 %v1732, 2
  %vm1734 = vcmp.gt.s32.totalorder 0, %v1733
  %v1735 = vsel %vm1734, 0, %v1733
  %v1736 = vsub.s32 32, %v1735
  %v1737 = vshll.u32 %v1728, %v1735
  %v1738 = vshrl.u32 %v1720, %v1736
  %v1739 = vor.u32 %v1737, %v1738
  %v1740 = vsub.s32 4294967266, %v1735
  %v1741 = vadd.s32 %v1740, 127
  %v1742 = vshll.u32 %v1741, 23
  %v1743 = vor.u32 4788187, %v1742
  %v1744 = vand.u32 2147483647, %v1743
  %v1746 = vcvt.s32.f32 %v1739
  %v1747 = vmul.f32 %v1746, %v1744
  %v1748 = vxor.u32 %v1747, 2147483648
  %v1749 = vsel %vm1666, %v1748, %v1747
  %v1750 = vsub.s32 4, %v1726
  %v1751 = vsel %vm1666, %v1750, %v1726
  %v1752 = vsel %vm1665, %v424, %v1749
  %v1753 = vsel %vm1665, 0, %v1751
  %v1754 = vcosq.f32.pop %v1752
  %v1755 = vsinq.f32.pop %v1752
  %vm1756 = vweird.f32 %v424
  %v1757 = vand.u32 %v1753, 3
  %vm1758 = vcmp.lt.s32.totalorder %v1757, 2
  %vm1759 = vcmp.eq.s32.totalorder %v1757, 0
  %v1760 = vxor.u32 %v1755, 2147483648
  %v1761 = vsel %vm1759, %v1754, %v1760
  %vm1762 = vcmp.eq.s32.totalorder %v1757, 2
  %v1763 = vxor.u32 %v1754, 2147483648
  %v1764 = vsel %vm1762, %v1763, %v1755
  %v1765 = vsel %vm1758, %v1761, %v1764
  %v1766 = vsel %vm1756, nan, %v1765
  %v1767 = vand.u32 2147483647, %v425
  %vm1768 = vcmp.le.f32.partialorder %v1767, 0.7853982
  %vm1769 = vcmp.lt.s32.totalorder %v425, 0
  %v1770 = vand.u32 %v425, 2139095040
  %v1771 = vshrl.u32 %v1770, 23
  %v1772 = vsub.s32 %v1771, 127
  %v1773 = vand.u32 2147483647, %v425
  %v1774 = vand.u32 %v1773, 8388607
  %v1775 = vor.u32 %v1774, 8388608
  %v1776 = vsub.s32 0, %v1775
  %v1777 = vadd.s32 %v1772, 1
  %vm1778 = vcmp.gt.s32.totalorder %v1777, 0
  %v1779 = vsel %vm1778, %v1777, 0
  %v1780 = vshrl.u32 %v1779, 5
  %v1781 = vand.u32 %v1779, 31
  %v1782 = vsub.s32 32, %v1781
  %v1783 = vshrl.u32 683565275, %v1782
  %v1784 = vshll.u32 683565275, %v1781
  %v1785 = vshrl.u32 2475754826, %v1782
  %v1786 = vor.u32 %v1784, %v1785
  %v1787 = vshll.u32 2475754826, %v1781
  %v1788 = vshrl.u32 2131351028, %v1782
  %v1789 = vor.u32 %v1787, %v1788
  %v1790 = vshll.u32 2131351028, %v1781
  %v1791 = vshrl.u32 2102212464, %v1782
  %v1792 = vor.u32 %v1790, %v1791
  %v1793 = vshll.u32 2102212464, %v1781
  %v1794 = vshrl.u32 920167782, %v1782
  %v1795 = vor.u32 %v1793, %v1794
  %v1796 = vshll.u32 920167782, %v1781
  %v1797 = vshrl.u32 1326507024, %v1782
  %v1798 = vor.u32 %v1796, %v1797
  %vm1799 = vcmp.lt.s32.totalorder %v1780, 1
  %vm1800 = vcmp.lt.s32.totalorder %v1780, 2
  %vm1801 = vcmp.lt.s32.totalorder %v1780, 3
  %vm1802 = vcmp.lt.s32.totalorder %v1780, 4
  %v1803 = vsel %vm1799, %v1783, %v1786
  %v1804 = vsel %vm1802, %v1792, 2102212464
  %v1805 = vsel %vm1801, %v1789, %v1804
  %v1806 = vsel %vm1800, %v1803, %v1805
  %v1807 = vsel %vm1799, %v1786, %v1789
  %v1808 = vsel %vm1802, %v1795, 920167782
  %v1809 = vsel %vm1801, %v1792, %v1808
  %v1810 = vsel %vm1800, %v1807, %v1809
  %v1811 = vsel %vm1799, %v1789, %v1792
  %v1812 = vsel %vm1802, %v1798, 1326507024
  %v1813 = vsel %vm1801, %v1795, %v1812
  %v1814 = vsel %vm1800, %v1811, %v1813
  %v1815 = vshll.u32 %v1775, 8
  %v1816 = vmul.u32.u64.compose %v1815, %v1814
  %v1817 = vextract.low.u32 %v1816
  %v1818 = vextract.high.u32 %v1816
  %v1819 = vmul.u32.u64.compose %v1815, %v1810
  %v1820 = vextract.low.u32 %v1819
  %v1821 = vextract.high.u32 %v1819
  %v1822 = vmul.u32 %v1815, %v1806
  %v1823 = vadd.s32 %v1818, %v1820
  %vm1824 = vc.u32 %v1818, %v1820
  %v1825 = vadd.s32 %v1821, 1
  %v1826 = vsel %vm1824, %v1825, %v1821
  %v1827 = vadd.s32 %v1822, %v1826
  %v1828 = vadd.s32 %v1827, 536870912
  %v1829 = vshrl.u32 %v1828, 30
  %v1830 = vshll.u32 %v1829, 30
  %v1831 = vsub.s32 %v1827, %v1830
  %vm1832 = vcmp.lt.s32.totalorder %v1831, 0
  %v1833 = vsub.s32 0, %v1831
  %v1834 = vsel %vm1832, %v1833, %v1831
  %v1835 = vclz %v1834
  %v1836 = vsub.s32 %v1835, 2
  %vm1837 = vcmp.gt.s32.totalorder 0, %v1836
  %v1838 = vsel %vm1837, 0, %v1836
  %v1839 = vsub.s32 32, %v1838
  %v1840 = vshll.u32 %v1831, %v1838
  %v1841 = vshrl.u32 %v1823, %v1839
  %v1842 = vor.u32 %v1840, %v1841
  %v1843 = vsub.s32 4294967266, %v1838
  %v1844 = vadd.s32 %v1843, 127
  %v1845 = vshll.u32 %v1844, 23
  %v1846 = vor.u32 4788187, %v1845
  %v1847 = vand.u32 2147483647, %v1846
  %v1849 = vcvt.s32.f32 %v1842
  %v1850 = vmul.f32 %v1849, %v1847
  %v1851 = vxor.u32 %v1850, 2147483648
  %v1852 = vsel %vm1769, %v1851, %v1850
  %v1853 = vsub.s32 4, %v1829
  %v1854 = vsel %vm1769, %v1853, %v1829
  %v1855 = vsel %vm1768, %v425, %v1852
  %v1856 = vsel %vm1768, 0, %v1854
  %v1857 = vcosq.f32.pop %v1855
  %v1858 = vsinq.f32.pop %v1855
  %vm1859 = vweird.f32 %v425
  %v1860 = vand.u32 %v1856, 3
  %vm1861 = vcmp.lt.s32.totalorder %v1860, 2
  %vm1862 = vcmp.eq.s32.totalorder %v1860, 0
  %v1863 = vxor.u32 %v1858, 2147483648
  %v1864 = vsel %vm1862, %v1857, %v1863
  %vm1865 = vcmp.eq.s32.totalorder %v1860, 2
  %v1866 = vxor.u32 %v1857, 2147483648
  %v1867 = vsel %vm1865, %v1866, %v1858
  %v1868 = vsel %vm1861, %v1864, %v1867
  %v1869 = vsel %vm1859, nan, %v1868
  %v1870 = vand.u32 2147483647, %v426
  %vm1871 = vcmp.le.f32.partialorder %v1870, 0.7853982
  %vm1872 = vcmp.lt.s32.totalorder %v426, 0
  %v1873 = vand.u32 %v426, 2139095040
  %v1874 = vshrl.u32 %v1873, 23
  %v1875 = vsub.s32 %v1874, 127
  %v1876 = vand.u32 2147483647, %v426
  %v1877 = vand.u32 %v1876, 8388607
  %v1878 = vor.u32 %v1877, 8388608
  %v1879 = vsub.s32 0, %v1878
  %v1880 = vadd.s32 %v1875, 1
  %vm1881 = vcmp.gt.s32.totalorder %v1880, 0
  %v1882 = vsel %vm1881, %v1880, 0
  %v1883 = vshrl.u32 %v1882, 5
  %v1884 = vand.u32 %v1882, 31
  %v1885 = vsub.s32 32, %v1884
  %v1886 = vshrl.u32 683565275, %v1885
  %v1887 = vshll.u32 683565275, %v1884
  %v1888 = vshrl.u32 2475754826, %v1885
  %v1889 = vor.u32 %v1887, %v1888
  %v1890 = vshll.u32 2475754826, %v1884
  %v1891 = vshrl.u32 2131351028, %v1885
  %v1892 = vor.u32 %v1890, %v1891
  %v1893 = vshll.u32 2131351028, %v1884
  %v1894 = vshrl.u32 2102212464, %v1885
  %v1895 = vor.u32 %v1893, %v1894
  %v1896 = vshll.u32 2102212464, %v1884
  %v1897 = vshrl.u32 920167782, %v1885
  %v1898 = vor.u32 %v1896, %v1897
  %v1899 = vshll.u32 920167782, %v1884
  %v1900 = vshrl.u32 1326507024, %v1885
  %v1901 = vor.u32 %v1899, %v1900
  %vm1902 = vcmp.lt.s32.totalorder %v1883, 1
  %vm1903 = vcmp.lt.s32.totalorder %v1883, 2
  %vm1904 = vcmp.lt.s32.totalorder %v1883, 3
  %vm1905 = vcmp.lt.s32.totalorder %v1883, 4
  %v1906 = vsel %vm1902, %v1886, %v1889
  %v1907 = vsel %vm1905, %v1895, 2102212464
  %v1908 = vsel %vm1904, %v1892, %v1907
  %v1909 = vsel %vm1903, %v1906, %v1908
  %v1910 = vsel %vm1902, %v1889, %v1892
  %v1911 = vsel %vm1905, %v1898, 920167782
  %v1912 = vsel %vm1904, %v1895, %v1911
  %v1913 = vsel %vm1903, %v1910, %v1912
  %v1914 = vsel %vm1902, %v1892, %v1895
  %v1915 = vsel %vm1905, %v1901, 1326507024
  %v1916 = vsel %vm1904, %v1898, %v1915
  %v1917 = vsel %vm1903, %v1914, %v1916
  %v1918 = vshll.u32 %v1878, 8
  %v1919 = vmul.u32.u64.compose %v1918, %v1917
  %v1920 = vextract.low.u32 %v1919
  %v1921 = vextract.high.u32 %v1919
  %v1922 = vmul.u32.u64.compose %v1918, %v1913
  %v1923 = vextract.low.u32 %v1922
  %v1924 = vextract.high.u32 %v1922
  %v1925 = vmul.u32 %v1918, %v1909
  %v1926 = vadd.s32 %v1921, %v1923
  %vm1927 = vc.u32 %v1921, %v1923
  %v1928 = vadd.s32 %v1924, 1
  %v1929 = vsel %vm1927, %v1928, %v1924
  %v1930 = vadd.s32 %v1925, %v1929
  %v1931 = vadd.s32 %v1930, 536870912
  %v1932 = vshrl.u32 %v1931, 30
  %v1933 = vshll.u32 %v1932, 30
  %v1934 = vsub.s32 %v1930, %v1933
  %vm1935 = vcmp.lt.s32.totalorder %v1934, 0
  %v1936 = vsub.s32 0, %v1934
  %v1937 = vsel %vm1935, %v1936, %v1934
  %v1938 = vclz %v1937
  %v1939 = vsub.s32 %v1938, 2
  %vm1940 = vcmp.gt.s32.totalorder 0, %v1939
  %v1941 = vsel %vm1940, 0, %v1939
  %v1942 = vsub.s32 32, %v1941
  %v1943 = vshll.u32 %v1934, %v1941
  %v1944 = vshrl.u32 %v1926, %v1942
  %v1945 = vor.u32 %v1943, %v1944
  %v1946 = vsub.s32 4294967266, %v1941
  %v1947 = vadd.s32 %v1946, 127
  %v1948 = vshll.u32 %v1947, 23
  %v1949 = vor.u32 4788187, %v1948
  %v1950 = vand.u32 2147483647, %v1949
  %v1952 = vcvt.s32.f32 %v1945
  %v1953 = vmul.f32 %v1952, %v1950
  %v1954 = vxor.u32 %v1953, 2147483648
  %v1955 = vsel %vm1872, %v1954, %v1953
  %v1956 = vsub.s32 4, %v1932
  %v1957 = vsel %vm1872, %v1956, %v1932
  %v1958 = vsel %vm1871, %v426, %v1955
  %v1959 = vsel %vm1871, 0, %v1957
  %v1960 = vcosq.f32.pop %v1958
  %v1961 = vsinq.f32.pop %v1958
  %vm1962 = vweird.f32 %v426
  %v1963 = vand.u32 %v1959, 3
  %vm1964 = vcmp.lt.s32.totalorder %v1963, 2
  %vm1965 = vcmp.eq.s32.totalorder %v1963, 0
  %v1966 = vxor.u32 %v1961, 2147483648
  %v1967 = vsel %vm1965, %v1960, %v1966
  %vm1968 = vcmp.eq.s32.totalorder %v1963, 2
  %v1969 = vxor.u32 %v1960, 2147483648
  %v1970 = vsel %vm1968, %v1969, %v1961
  %v1971 = vsel %vm1964, %v1967, %v1970
  %v1972 = vsel %vm1962, nan, %v1971
  %v1973 = vand.u32 2147483647, %v427
  %vm1974 = vcmp.le.f32.partialorder %v1973, 0.7853982
  %vm1975 = vcmp.lt.s32.totalorder %v427, 0
  %v1976 = vand.u32 %v427, 2139095040
  %v1977 = vshrl.u32 %v1976, 23
  %v1978 = vsub.s32 %v1977, 127
  %v1979 = vand.u32 2147483647, %v427
  %v1980 = vand.u32 %v1979, 8388607
  %v1981 = vor.u32 %v1980, 8388608
  %v1982 = vsub.s32 0, %v1981
  %v1983 = vadd.s32 %v1978, 1
  %vm1984 = vcmp.gt.s32.totalorder %v1983, 0
  %v1985 = vsel %vm1984, %v1983, 0
  %v1986 = vshrl.u32 %v1985, 5
  %v1987 = vand.u32 %v1985, 31
  %v1988 = vsub.s32 32, %v1987
  %v1989 = vshrl.u32 683565275, %v1988
  %v1990 = vshll.u32 683565275, %v1987
  %v1991 = vshrl.u32 2475754826, %v1988
  %v1992 = vor.u32 %v1990, %v1991
  %v1993 = vshll.u32 2475754826, %v1987
  %v1994 = vshrl.u32 2131351028, %v1988
  %v1995 = vor.u32 %v1993, %v1994
  %v1996 = vshll.u32 2131351028, %v1987
  %v1997 = vshrl.u32 2102212464, %v1988
  %v1998 = vor.u32 %v1996, %v1997
  %v1999 = vshll.u32 2102212464, %v1987
  %v2000 = vshrl.u32 920167782, %v1988
  %v2001 = vor.u32 %v1999, %v2000
  %v2002 = vshll.u32 920167782, %v1987
  %v2003 = vshrl.u32 1326507024, %v1988
  %v2004 = vor.u32 %v2002, %v2003
  %vm2005 = vcmp.lt.s32.totalorder %v1986, 1
  %vm2006 = vcmp.lt.s32.totalorder %v1986, 2
  %vm2007 = vcmp.lt.s32.totalorder %v1986, 3
  %vm2008 = vcmp.lt.s32.totalorder %v1986, 4
  %v2009 = vsel %vm2005, %v1989, %v1992
  %v2010 = vsel %vm2008, %v1998, 2102212464
  %v2011 = vsel %vm2007, %v1995, %v2010
  %v2012 = vsel %vm2006, %v2009, %v2011
  %v2013 = vsel %vm2005, %v1992, %v1995
  %v2014 = vsel %vm2008, %v2001, 920167782
  %v2015 = vsel %vm2007, %v1998, %v2014
  %v2016 = vsel %vm2006, %v2013, %v2015
  %v2017 = vsel %vm2005, %v1995, %v1998
  %v2018 = vsel %vm2008, %v2004, 1326507024
  %v2019 = vsel %vm2007, %v2001, %v2018
  %v2020 = vsel %vm2006, %v2017, %v2019
  %v2021 = vshll.u32 %v1981, 8
  %v2022 = vmul.u32.u64.compose %v2021, %v2020
  %v2023 = vextract.low.u32 %v2022
  %v2024 = vextract.high.u32 %v2022
  %v2025 = vmul.u32.u64.compose %v2021, %v2016
  %v2026 = vextract.low.u32 %v2025
  %v2027 = vextract.high.u32 %v2025
  %v2028 = vmul.u32 %v2021, %v2012
  %v2029 = vadd.s32 %v2024, %v2026
  %vm2030 = vc.u32 %v2024, %v2026
  %v2031 = vadd.s32 %v2027, 1
  %v2032 = vsel %vm2030, %v2031, %v2027
  %v2033 = vadd.s32 %v2028, %v2032
  %v2034 = vadd.s32 %v2033, 536870912
  %v2035 = vshrl.u32 %v2034, 30
  %v2036 = vshll.u32 %v2035, 30
  %v2037 = vsub.s32 %v2033, %v2036
  %vm2038 = vcmp.lt.s32.totalorder %v2037, 0
  %v2039 = vsub.s32 0, %v2037
  %v2040 = vsel %vm2038, %v2039, %v2037
  %v2041 = vclz %v2040
  %v2042 = vsub.s32 %v2041, 2
  %vm2043 = vcmp.gt.s32.totalorder 0, %v2042
  %v2044 = vsel %vm2043, 0, %v2042
  %v2045 = vsub.s32 32, %v2044
  %v2046 = vshll.u32 %v2037, %v2044
  %v2047 = vshrl.u32 %v2029, %v2045
  %v2048 = vor.u32 %v2046, %v2047
  %v2049 = vsub.s32 4294967266, %v2044
  %v2050 = vadd.s32 %v2049, 127
  %v2051 = vshll.u32 %v2050, 23
  %v2052 = vor.u32 4788187, %v2051
  %v2053 = vand.u32 2147483647, %v2052
  %v2055 = vcvt.s32.f32 %v2048
  %v2056 = vmul.f32 %v2055, %v2053
  %v2057 = vxor.u32 %v2056, 2147483648
  %v2058 = vsel %vm1975, %v2057, %v2056
  %v2059 = vsub.s32 4, %v2035
  %v2060 = vsel %vm1975, %v2059, %v2035
  %v2061 = vsel %vm1974, %v427, %v2058
  %v2062 = vsel %vm1974, 0, %v2060
  %v2063 = vcosq.f32.pop %v2061
  %v2064 = vsinq.f32.pop %v2061
  %vm2065 = vweird.f32 %v427
  %v2066 = vand.u32 %v2062, 3
  %vm2067 = vcmp.lt.s32.totalorder %v2066, 2
  %vm2068 = vcmp.eq.s32.totalorder %v2066, 0
  %v2069 = vxor.u32 %v2064, 2147483648
  %v2070 = vsel %vm2068, %v2063, %v2069
  %vm2071 = vcmp.eq.s32.totalorder %v2066, 2
  %v2072 = vxor.u32 %v2063, 2147483648
  %v2073 = vsel %vm2071, %v2072, %v2064
  %v2074 = vsel %vm2067, %v2070, %v2073
  %v2075 = vsel %vm2065, nan, %v2074
  %vm2076 = vcmask 130048
  %2077 = vst.msk [vmem:[%s2] sm:$0xff] %vm2076, %v530
  %2078 = vst.msk [vmem:[%s2 + $0x8] sm:$0xff] %vm2076, %v633
  %2079 = vst.msk [vmem:[%s2 + $0x10] sm:$0xff] %vm2076, %v736
  %2080 = vst.msk [vmem:[%s2 + $0x18] sm:$0xff] %vm2076, %v839
  %2081 = vst.msk [vmem:[%s2 + $0x20] sm:$0xff] %vm2076, %v942
  %2082 = vst.msk [vmem:[%s2 + $0x28] sm:$0xff] %vm2076, %v1045
  %2083 = vst.msk [vmem:[%s2 + $0x30] sm:$0xff] %vm2076, %v1148
  %2084 = vst.msk [vmem:[%s2 + $0x38] sm:$0xff] %vm2076, %v1251
  %2085 = vst.msk [vmem:[%s2 + $0x40] sm:$0xff] %vm2076, %v1354
  %2086 = vst.msk [vmem:[%s2 + $0x48] sm:$0xff] %vm2076, %v1457
  %2087 = vst.msk [vmem:[%s2 + $0x50] sm:$0xff] %vm2076, %v1560
  %2088 = vst.msk [vmem:[%s2 + $0x58] sm:$0xff] %vm2076, %v1663
  %2089 = vst.msk [vmem:[%s2 + $0x60] sm:$0xff] %vm2076, %v1766
  %2090 = vst.msk [vmem:[%s2 + $0x68] sm:$0xff] %vm2076, %v1869
  %2091 = vst.msk [vmem:[%s2 + $0x70] sm:$0xff] %vm2076, %v1972
  %2092 = vst.msk [vmem:[%s2 + $0x78] sm:$0xff] %vm2076, %v2075
  %v2093 = vand.u32 2147483647, %v412
  %vm2094 = vcmp.le.f32.partialorder %v2093, 0.7853982
  %vm2095 = vcmp.lt.s32.totalorder %v412, 0
  %v2096 = vand.u32 %v412, 2139095040
  %v2097 = vshrl.u32 %v2096, 23
  %v2098 = vsub.s32 %v2097, 127
  %v2099 = vand.u32 2147483647, %v412
  %v2100 = vand.u32 %v2099, 8388607
  %v2101 = vor.u32 %v2100, 8388608
  %v2102 = vsub.s32 0, %v2101
  %v2103 = vadd.s32 %v2098, 1
  %vm2104 = vcmp.gt.s32.totalorder %v2103, 0
  %v2105 = vsel %vm2104, %v2103, 0
  %v2106 = vshrl.u32 %v2105, 5
  %v2107 = vand.u32 %v2105, 31
  %v2108 = vsub.s32 32, %v2107
  %v2109 = vshrl.u32 683565275, %v2108
  %v2110 = vshll.u32 683565275, %v2107
  %v2111 = vshrl.u32 2475754826, %v2108
  %v2112 = vor.u32 %v2110, %v2111
  %v2113 = vshll.u32 2475754826, %v2107
  %v2114 = vshrl.u32 2131351028, %v2108
  %v2115 = vor.u32 %v2113, %v2114
  %v2116 = vshll.u32 2131351028, %v2107
  %v2117 = vshrl.u32 2102212464, %v2108
  %v2118 = vor.u32 %v2116, %v2117
  %v2119 = vshll.u32 2102212464, %v2107
  %v2120 = vshrl.u32 920167782, %v2108
  %v2121 = vor.u32 %v2119, %v2120
  %v2122 = vshll.u32 920167782, %v2107
  %v2123 = vshrl.u32 1326507024, %v2108
  %v2124 = vor.u32 %v2122, %v2123
  %vm2125 = vcmp.lt.s32.totalorder %v2106, 1
  %vm2126 = vcmp.lt.s32.totalorder %v2106, 2
  %vm2127 = vcmp.lt.s32.totalorder %v2106, 3
  %vm2128 = vcmp.lt.s32.totalorder %v2106, 4
  %v2129 = vsel %vm2125, %v2109, %v2112
  %v2130 = vsel %vm2128, %v2118, 2102212464
  %v2131 = vsel %vm2127, %v2115, %v2130
  %v2132 = vsel %vm2126, %v2129, %v2131
  %v2133 = vsel %vm2125, %v2112, %v2115
  %v2134 = vsel %vm2128, %v2121, 920167782
  %v2135 = vsel %vm2127, %v2118, %v2134
  %v2136 = vsel %vm2126, %v2133, %v2135
  %v2137 = vsel %vm2125, %v2115, %v2118
  %v2138 = vsel %vm2128, %v2124, 1326507024
  %v2139 = vsel %vm2127, %v2121, %v2138
  %v2140 = vsel %vm2126, %v2137, %v2139
  %v2141 = vshll.u32 %v2101, 8
  %v2142 = vmul.u32.u64.compose %v2141, %v2140
  %v2143 = vextract.low.u32 %v2142
  %v2144 = vextract.high.u32 %v2142
  %v2145 = vmul.u32.u64.compose %v2141, %v2136
  %v2146 = vextract.low.u32 %v2145
  %v2147 = vextract.high.u32 %v2145
  %v2148 = vmul.u32 %v2141, %v2132
  %v2149 = vadd.s32 %v2144, %v2146
  %vm2150 = vc.u32 %v2144, %v2146
  %v2151 = vadd.s32 %v2147, 1
  %v2152 = vsel %vm2150, %v2151, %v2147
  %v2153 = vadd.s32 %v2148, %v2152
  %v2154 = vadd.s32 %v2153, 536870912
  %v2155 = vshrl.u32 %v2154, 30
  %v2156 = vshll.u32 %v2155, 30
  %v2157 = vsub.s32 %v2153, %v2156
  %vm2158 = vcmp.lt.s32.totalorder %v2157, 0
  %v2159 = vsub.s32 0, %v2157
  %v2160 = vsel %vm2158, %v2159, %v2157
  %v2161 = vclz %v2160
  %v2162 = vsub.s32 %v2161, 2
  %vm2163 = vcmp.gt.s32.totalorder 0, %v2162
  %v2164 = vsel %vm2163, 0, %v2162
  %v2165 = vsub.s32 32, %v2164
  %v2166 = vshll.u32 %v2157, %v2164
  %v2167 = vshrl.u32 %v2149, %v2165
  %v2168 = vor.u32 %v2166, %v2167
  %v2169 = vsub.s32 4294967266, %v2164
  %v2170 = vadd.s32 %v2169, 127
  %v2171 = vshll.u32 %v2170, 23
  %v2172 = vor.u32 4788187, %v2171
  %v2173 = vand.u32 2147483647, %v2172
  %v2175 = vcvt.s32.f32 %v2168
  %v2176 = vmul.f32 %v2175, %v2173
  %v2177 = vxor.u32 %v2176, 2147483648
  %v2178 = vsel %vm2095, %v2177, %v2176
  %v2179 = vsub.s32 4, %v2155
  %v2180 = vsel %vm2095, %v2179, %v2155
  %v2181 = vsel %vm2094, %v412, %v2178
  %v2182 = vsel %vm2094, 0, %v2180
  %v2183 = vcosq.f32.pop %v2181
  %v2184 = vsinq.f32.pop %v2181
  %vm2185 = vweird.f32 %v412
  %v2186 = vadd.s32 %v2182, 3
  %v2187 = vand.u32 %v2186, 3
  %vm2188 = vcmp.lt.s32.totalorder %v2187, 2
  %vm2189 = vcmp.eq.s32.totalorder %v2187, 0
  %v2190 = vxor.u32 %v2184, 2147483648
  %v2191 = vsel %vm2189, %v2183, %v2190
  %vm2192 = vcmp.eq.s32.totalorder %v2187, 2
  %v2193 = vxor.u32 %v2183, 2147483648
  %v2194 = vsel %vm2192, %v2193, %v2184
  %v2195 = vsel %vm2188, %v2191, %v2194
  %v2196 = vsel %vm2185, nan, %v2195
  %v2197 = vand.u32 2147483647, %v413
  %vm2198 = vcmp.le.f32.partialorder %v2197, 0.7853982
  %vm2199 = vcmp.lt.s32.totalorder %v413, 0
  %v2200 = vand.u32 %v413, 2139095040
  %v2201 = vshrl.u32 %v2200, 23
  %v2202 = vsub.s32 %v2201, 127
  %v2203 = vand.u32 2147483647, %v413
  %v2204 = vand.u32 %v2203, 8388607
  %v2205 = vor.u32 %v2204, 8388608
  %v2206 = vsub.s32 0, %v2205
  %v2207 = vadd.s32 %v2202, 1
  %vm2208 = vcmp.gt.s32.totalorder %v2207, 0
  %v2209 = vsel %vm2208, %v2207, 0
  %v2210 = vshrl.u32 %v2209, 5
  %v2211 = vand.u32 %v2209, 31
  %v2212 = vsub.s32 32, %v2211
  %v2213 = vshrl.u32 683565275, %v2212
  %v2214 = vshll.u32 683565275, %v2211
  %v2215 = vshrl.u32 2475754826, %v2212
  %v2216 = vor.u32 %v2214, %v2215
  %v2217 = vshll.u32 2475754826, %v2211
  %v2218 = vshrl.u32 2131351028, %v2212
  %v2219 = vor.u32 %v2217, %v2218
  %v2220 = vshll.u32 2131351028, %v2211
  %v2221 = vshrl.u32 2102212464, %v2212
  %v2222 = vor.u32 %v2220, %v2221
  %v2223 = vshll.u32 2102212464, %v2211
  %v2224 = vshrl.u32 920167782, %v2212
  %v2225 = vor.u32 %v2223, %v2224
  %v2226 = vshll.u32 920167782, %v2211
  %v2227 = vshrl.u32 1326507024, %v2212
  %v2228 = vor.u32 %v2226, %v2227
  %vm2229 = vcmp.lt.s32.totalorder %v2210, 1
  %vm2230 = vcmp.lt.s32.totalorder %v2210, 2
  %vm2231 = vcmp.lt.s32.totalorder %v2210, 3
  %vm2232 = vcmp.lt.s32.totalorder %v2210, 4
  %v2233 = vsel %vm2229, %v2213, %v2216
  %v2234 = vsel %vm2232, %v2222, 2102212464
  %v2235 = vsel %vm2231, %v2219, %v2234
  %v2236 = vsel %vm2230, %v2233, %v2235
  %v2237 = vsel %vm2229, %v2216, %v2219
  %v2238 = vsel %vm2232, %v2225, 920167782
  %v2239 = vsel %vm2231, %v2222, %v2238
  %v2240 = vsel %vm2230, %v2237, %v2239
  %v2241 = vsel %vm2229, %v2219, %v2222
  %v2242 = vsel %vm2232, %v2228, 1326507024
  %v2243 = vsel %vm2231, %v2225, %v2242
  %v2244 = vsel %vm2230, %v2241, %v2243
  %v2245 = vshll.u32 %v2205, 8
  %v2246 = vmul.u32.u64.compose %v2245, %v2244
  %v2247 = vextract.low.u32 %v2246
  %v2248 = vextract.high.u32 %v2246
  %v2249 = vmul.u32.u64.compose %v2245, %v2240
  %v2250 = vextract.low.u32 %v2249
  %v2251 = vextract.high.u32 %v2249
  %v2252 = vmul.u32 %v2245, %v2236
  %v2253 = vadd.s32 %v2248, %v2250
  %vm2254 = vc.u32 %v2248, %v2250
  %v2255 = vadd.s32 %v2251, 1
  %v2256 = vsel %vm2254, %v2255, %v2251
  %v2257 = vadd.s32 %v2252, %v2256
  %v2258 = vadd.s32 %v2257, 536870912
  %v2259 = vshrl.u32 %v2258, 30
  %v2260 = vshll.u32 %v2259, 30
  %v2261 = vsub.s32 %v2257, %v2260
  %vm2262 = vcmp.lt.s32.totalorder %v2261, 0
  %v2263 = vsub.s32 0, %v2261
  %v2264 = vsel %vm2262, %v2263, %v2261
  %v2265 = vclz %v2264
  %v2266 = vsub.s32 %v2265, 2
  %vm2267 = vcmp.gt.s32.totalorder 0, %v2266
  %v2268 = vsel %vm2267, 0, %v2266
  %v2269 = vsub.s32 32, %v2268
  %v2270 = vshll.u32 %v2261, %v2268
  %v2271 = vshrl.u32 %v2253, %v2269
  %v2272 = vor.u32 %v2270, %v2271
  %v2273 = vsub.s32 4294967266, %v2268
  %v2274 = vadd.s32 %v2273, 127
  %v2275 = vshll.u32 %v2274, 23
  %v2276 = vor.u32 4788187, %v2275
  %v2277 = vand.u32 2147483647, %v2276
  %v2279 = vcvt.s32.f32 %v2272
  %v2280 = vmul.f32 %v2279, %v2277
  %v2281 = vxor.u32 %v2280, 2147483648
  %v2282 = vsel %vm2199, %v2281, %v2280
  %v2283 = vsub.s32 4, %v2259
  %v2284 = vsel %vm2199, %v2283, %v2259
  %v2285 = vsel %vm2198, %v413, %v2282
  %v2286 = vsel %vm2198, 0, %v2284
  %v2287 = vcosq.f32.pop %v2285
  %v2288 = vsinq.f32.pop %v2285
  %vm2289 = vweird.f32 %v413
  %v2290 = vadd.s32 %v2286, 3
  %v2291 = vand.u32 %v2290, 3
  %vm2292 = vcmp.lt.s32.totalorder %v2291, 2
  %vm2293 = vcmp.eq.s32.totalorder %v2291, 0
  %v2294 = vxor.u32 %v2288, 2147483648
  %v2295 = vsel %vm2293, %v2287, %v2294
  %vm2296 = vcmp.eq.s32.totalorder %v2291, 2
  %v2297 = vxor.u32 %v2287, 2147483648
  %v2298 = vsel %vm2296, %v2297, %v2288
  %v2299 = vsel %vm2292, %v2295, %v2298
  %v2300 = vsel %vm2289, nan, %v2299
  %v2301 = vand.u32 2147483647, %v414
  %vm2302 = vcmp.le.f32.partialorder %v2301, 0.7853982
  %vm2303 = vcmp.lt.s32.totalorder %v414, 0
  %v2304 = vand.u32 %v414, 2139095040
  %v2305 = vshrl.u32 %v2304, 23
  %v2306 = vsub.s32 %v2305, 127
  %v2307 = vand.u32 2147483647, %v414
  %v2308 = vand.u32 %v2307, 8388607
  %v2309 = vor.u32 %v2308, 8388608
  %v2310 = vsub.s32 0, %v2309
  %v2311 = vadd.s32 %v2306, 1
  %vm2312 = vcmp.gt.s32.totalorder %v2311, 0
  %v2313 = vsel %vm2312, %v2311, 0
  %v2314 = vshrl.u32 %v2313, 5
  %v2315 = vand.u32 %v2313, 31
  %v2316 = vsub.s32 32, %v2315
  %v2317 = vshrl.u32 683565275, %v2316
  %v2318 = vshll.u32 683565275, %v2315
  %v2319 = vshrl.u32 2475754826, %v2316
  %v2320 = vor.u32 %v2318, %v2319
  %v2321 = vshll.u32 2475754826, %v2315
  %v2322 = vshrl.u32 2131351028, %v2316
  %v2323 = vor.u32 %v2321, %v2322
  %v2324 = vshll.u32 2131351028, %v2315
  %v2325 = vshrl.u32 2102212464, %v2316
  %v2326 = vor.u32 %v2324, %v2325
  %v2327 = vshll.u32 2102212464, %v2315
  %v2328 = vshrl.u32 920167782, %v2316
  %v2329 = vor.u32 %v2327, %v2328
  %v2330 = vshll.u32 920167782, %v2315
  %v2331 = vshrl.u32 1326507024, %v2316
  %v2332 = vor.u32 %v2330, %v2331
  %vm2333 = vcmp.lt.s32.totalorder %v2314, 1
  %vm2334 = vcmp.lt.s32.totalorder %v2314, 2
  %vm2335 = vcmp.lt.s32.totalorder %v2314, 3
  %vm2336 = vcmp.lt.s32.totalorder %v2314, 4
  %v2337 = vsel %vm2333, %v2317, %v2320
  %v2338 = vsel %vm2336, %v2326, 2102212464
  %v2339 = vsel %vm2335, %v2323, %v2338
  %v2340 = vsel %vm2334, %v2337, %v2339
  %v2341 = vsel %vm2333, %v2320, %v2323
  %v2342 = vsel %vm2336, %v2329, 920167782
  %v2343 = vsel %vm2335, %v2326, %v2342
  %v2344 = vsel %vm2334, %v2341, %v2343
  %v2345 = vsel %vm2333, %v2323, %v2326
  %v2346 = vsel %vm2336, %v2332, 1326507024
  %v2347 = vsel %vm2335, %v2329, %v2346
  %v2348 = vsel %vm2334, %v2345, %v2347
  %v2349 = vshll.u32 %v2309, 8
  %v2350 = vmul.u32.u64.compose %v2349, %v2348
  %v2351 = vextract.low.u32 %v2350
  %v2352 = vextract.high.u32 %v2350
  %v2353 = vmul.u32.u64.compose %v2349, %v2344
  %v2354 = vextract.low.u32 %v2353
  %v2355 = vextract.high.u32 %v2353
  %v2356 = vmul.u32 %v2349, %v2340
  %v2357 = vadd.s32 %v2352, %v2354
  %vm2358 = vc.u32 %v2352, %v2354
  %v2359 = vadd.s32 %v2355, 1
  %v2360 = vsel %vm2358, %v2359, %v2355
  %v2361 = vadd.s32 %v2356, %v2360
  %v2362 = vadd.s32 %v2361, 536870912
  %v2363 = vshrl.u32 %v2362, 30
  %v2364 = vshll.u32 %v2363, 30
  %v2365 = vsub.s32 %v2361, %v2364
  %vm2366 = vcmp.lt.s32.totalorder %v2365, 0
  %v2367 = vsub.s32 0, %v2365
  %v2368 = vsel %vm2366, %v2367, %v2365
  %v2369 = vclz %v2368
  %v2370 = vsub.s32 %v2369, 2
  %vm2371 = vcmp.gt.s32.totalorder 0, %v2370
  %v2372 = vsel %vm2371, 0, %v2370
  %v2373 = vsub.s32 32, %v2372
  %v2374 = vshll.u32 %v2365, %v2372
  %v2375 = vshrl.u32 %v2357, %v2373
  %v2376 = vor.u32 %v2374, %v2375
  %v2377 = vsub.s32 4294967266, %v2372
  %v2378 = vadd.s32 %v2377, 127
  %v2379 = vshll.u32 %v2378, 23
  %v2380 = vor.u32 4788187, %v2379
  %v2381 = vand.u32 2147483647, %v2380
  %v2383 = vcvt.s32.f32 %v2376
  %v2384 = vmul.f32 %v2383, %v2381
  %v2385 = vxor.u32 %v2384, 2147483648
  %v2386 = vsel %vm2303, %v2385, %v2384
  %v2387 = vsub.s32 4, %v2363
  %v2388 = vsel %vm2303, %v2387, %v2363
  %v2389 = vsel %vm2302, %v414, %v2386
  %v2390 = vsel %vm2302, 0, %v2388
  %v2391 = vcosq.f32.pop %v2389
  %v2392 = vsinq.f32.pop %v2389
  %vm2393 = vweird.f32 %v414
  %v2394 = vadd.s32 %v2390, 3
  %v2395 = vand.u32 %v2394, 3
  %vm2396 = vcmp.lt.s32.totalorder %v2395, 2
  %vm2397 = vcmp.eq.s32.totalorder %v2395, 0
  %v2398 = vxor.u32 %v2392, 2147483648
  %v2399 = vsel %vm2397, %v2391, %v2398
  %vm2400 = vcmp.eq.s32.totalorder %v2395, 2
  %v2401 = vxor.u32 %v2391, 2147483648
  %v2402 = vsel %vm2400, %v2401, %v2392
  %v2403 = vsel %vm2396, %v2399, %v2402
  %v2404 = vsel %vm2393, nan, %v2403
  %v2405 = vand.u32 2147483647, %v415
  %vm2406 = vcmp.le.f32.partialorder %v2405, 0.7853982
  %vm2407 = vcmp.lt.s32.totalorder %v415, 0
  %v2408 = vand.u32 %v415, 2139095040
  %v2409 = vshrl.u32 %v2408, 23
  %v2410 = vsub.s32 %v2409, 127
  %v2411 = vand.u32 2147483647, %v415
  %v2412 = vand.u32 %v2411, 8388607
  %v2413 = vor.u32 %v2412, 8388608
  %v2414 = vsub.s32 0, %v2413
  %v2415 = vadd.s32 %v2410, 1
  %vm2416 = vcmp.gt.s32.totalorder %v2415, 0
  %v2417 = vsel %vm2416, %v2415, 0
  %v2418 = vshrl.u32 %v2417, 5
  %v2419 = vand.u32 %v2417, 31
  %v2420 = vsub.s32 32, %v2419
  %v2421 = vshrl.u32 683565275, %v2420
  %v2422 = vshll.u32 683565275, %v2419
  %v2423 = vshrl.u32 2475754826, %v2420
  %v2424 = vor.u32 %v2422, %v2423
  %v2425 = vshll.u32 2475754826, %v2419
  %v2426 = vshrl.u32 2131351028, %v2420
  %v2427 = vor.u32 %v2425, %v2426
  %v2428 = vshll.u32 2131351028, %v2419
  %v2429 = vshrl.u32 2102212464, %v2420
  %v2430 = vor.u32 %v2428, %v2429
  %v2431 = vshll.u32 2102212464, %v2419
  %v2432 = vshrl.u32 920167782, %v2420
  %v2433 = vor.u32 %v2431, %v2432
  %v2434 = vshll.u32 920167782, %v2419
  %v2435 = vshrl.u32 1326507024, %v2420
  %v2436 = vor.u32 %v2434, %v2435
  %vm2437 = vcmp.lt.s32.totalorder %v2418, 1
  %vm2438 = vcmp.lt.s32.totalorder %v2418, 2
  %vm2439 = vcmp.lt.s32.totalorder %v2418, 3
  %vm2440 = vcmp.lt.s32.totalorder %v2418, 4
  %v2441 = vsel %vm2437, %v2421, %v2424
  %v2442 = vsel %vm2440, %v2430, 2102212464
  %v2443 = vsel %vm2439, %v2427, %v2442
  %v2444 = vsel %vm2438, %v2441, %v2443
  %v2445 = vsel %vm2437, %v2424, %v2427
  %v2446 = vsel %vm2440, %v2433, 920167782
  %v2447 = vsel %vm2439, %v2430, %v2446
  %v2448 = vsel %vm2438, %v2445, %v2447
  %v2449 = vsel %vm2437, %v2427, %v2430
  %v2450 = vsel %vm2440, %v2436, 1326507024
  %v2451 = vsel %vm2439, %v2433, %v2450
  %v2452 = vsel %vm2438, %v2449, %v2451
  %v2453 = vshll.u32 %v2413, 8
  %v2454 = vmul.u32.u64.compose %v2453, %v2452
  %v2455 = vextract.low.u32 %v2454
  %v2456 = vextract.high.u32 %v2454
  %v2457 = vmul.u32.u64.compose %v2453, %v2448
  %v2458 = vextract.low.u32 %v2457
  %v2459 = vextract.high.u32 %v2457
  %v2460 = vmul.u32 %v2453, %v2444
  %v2461 = vadd.s32 %v2456, %v2458
  %vm2462 = vc.u32 %v2456, %v2458
  %v2463 = vadd.s32 %v2459, 1
  %v2464 = vsel %vm2462, %v2463, %v2459
  %v2465 = vadd.s32 %v2460, %v2464
  %v2466 = vadd.s32 %v2465, 536870912
  %v2467 = vshrl.u32 %v2466, 30
  %v2468 = vshll.u32 %v2467, 30
  %v2469 = vsub.s32 %v2465, %v2468
  %vm2470 = vcmp.lt.s32.totalorder %v2469, 0
  %v2471 = vsub.s32 0, %v2469
  %v2472 = vsel %vm2470, %v2471, %v2469
  %v2473 = vclz %v2472
  %v2474 = vsub.s32 %v2473, 2
  %vm2475 = vcmp.gt.s32.totalorder 0, %v2474
  %v2476 = vsel %vm2475, 0, %v2474
  %v2477 = vsub.s32 32, %v2476
  %v2478 = vshll.u32 %v2469, %v2476
  %v2479 = vshrl.u32 %v2461, %v2477
  %v2480 = vor.u32 %v2478, %v2479
  %v2481 = vsub.s32 4294967266, %v2476
  %v2482 = vadd.s32 %v2481, 127
  %v2483 = vshll.u32 %v2482, 23
  %v2484 = vor.u32 4788187, %v2483
  %v2485 = vand.u32 2147483647, %v2484
  %v2487 = vcvt.s32.f32 %v2480
  %v2488 = vmul.f32 %v2487, %v2485
  %v2489 = vxor.u32 %v2488, 2147483648
  %v2490 = vsel %vm2407, %v2489, %v2488
  %v2491 = vsub.s32 4, %v2467
  %v2492 = vsel %vm2407, %v2491, %v2467
  %v2493 = vsel %vm2406, %v415, %v2490
  %v2494 = vsel %vm2406, 0, %v2492
  %v2495 = vcosq.f32.pop %v2493
  %v2496 = vsinq.f32.pop %v2493
  %vm2497 = vweird.f32 %v415
  %v2498 = vadd.s32 %v2494, 3
  %v2499 = vand.u32 %v2498, 3
  %vm2500 = vcmp.lt.s32.totalorder %v2499, 2
  %vm2501 = vcmp.eq.s32.totalorder %v2499, 0
  %v2502 = vxor.u32 %v2496, 2147483648
  %v2503 = vsel %vm2501, %v2495, %v2502
  %vm2504 = vcmp.eq.s32.totalorder %v2499, 2
  %v2505 = vxor.u32 %v2495, 2147483648
  %v2506 = vsel %vm2504, %v2505, %v2496
  %v2507 = vsel %vm2500, %v2503, %v2506
  %v2508 = vsel %vm2497, nan, %v2507
  %v2509 = vand.u32 2147483647, %v416
  %vm2510 = vcmp.le.f32.partialorder %v2509, 0.7853982
  %vm2511 = vcmp.lt.s32.totalorder %v416, 0
  %v2512 = vand.u32 %v416, 2139095040
  %v2513 = vshrl.u32 %v2512, 23
  %v2514 = vsub.s32 %v2513, 127
  %v2515 = vand.u32 2147483647, %v416
  %v2516 = vand.u32 %v2515, 8388607
  %v2517 = vor.u32 %v2516, 8388608
  %v2518 = vsub.s32 0, %v2517
  %v2519 = vadd.s32 %v2514, 1
  %vm2520 = vcmp.gt.s32.totalorder %v2519, 0
  %v2521 = vsel %vm2520, %v2519, 0
  %v2522 = vshrl.u32 %v2521, 5
  %v2523 = vand.u32 %v2521, 31
  %v2524 = vsub.s32 32, %v2523
  %v2525 = vshrl.u32 683565275, %v2524
  %v2526 = vshll.u32 683565275, %v2523
  %v2527 = vshrl.u32 2475754826, %v2524
  %v2528 = vor.u32 %v2526, %v2527
  %v2529 = vshll.u32 2475754826, %v2523
  %v2530 = vshrl.u32 2131351028, %v2524
  %v2531 = vor.u32 %v2529, %v2530
  %v2532 = vshll.u32 2131351028, %v2523
  %v2533 = vshrl.u32 2102212464, %v2524
  %v2534 = vor.u32 %v2532, %v2533
  %v2535 = vshll.u32 2102212464, %v2523
  %v2536 = vshrl.u32 920167782, %v2524
  %v2537 = vor.u32 %v2535, %v2536
  %v2538 = vshll.u32 920167782, %v2523
  %v2539 = vshrl.u32 1326507024, %v2524
  %v2540 = vor.u32 %v2538, %v2539
  %vm2541 = vcmp.lt.s32.totalorder %v2522, 1
  %vm2542 = vcmp.lt.s32.totalorder %v2522, 2
  %vm2543 = vcmp.lt.s32.totalorder %v2522, 3
  %vm2544 = vcmp.lt.s32.totalorder %v2522, 4
  %v2545 = vsel %vm2541, %v2525, %v2528
  %v2546 = vsel %vm2544, %v2534, 2102212464
  %v2547 = vsel %vm2543, %v2531, %v2546
  %v2548 = vsel %vm2542, %v2545, %v2547
  %v2549 = vsel %vm2541, %v2528, %v2531
  %v2550 = vsel %vm2544, %v2537, 920167782
  %v2551 = vsel %vm2543, %v2534, %v2550
  %v2552 = vsel %vm2542, %v2549, %v2551
  %v2553 = vsel %vm2541, %v2531, %v2534
  %v2554 = vsel %vm2544, %v2540, 1326507024
  %v2555 = vsel %vm2543, %v2537, %v2554
  %v2556 = vsel %vm2542, %v2553, %v2555
  %v2557 = vshll.u32 %v2517, 8
  %v2558 = vmul.u32.u64.compose %v2557, %v2556
  %v2559 = vextract.low.u32 %v2558
  %v2560 = vextract.high.u32 %v2558
  %v2561 = vmul.u32.u64.compose %v2557, %v2552
  %v2562 = vextract.low.u32 %v2561
  %v2563 = vextract.high.u32 %v2561
  %v2564 = vmul.u32 %v2557, %v2548
  %v2565 = vadd.s32 %v2560, %v2562
  %vm2566 = vc.u32 %v2560, %v2562
  %v2567 = vadd.s32 %v2563, 1
  %v2568 = vsel %vm2566, %v2567, %v2563
  %v2569 = vadd.s32 %v2564, %v2568
  %v2570 = vadd.s32 %v2569, 536870912
  %v2571 = vshrl.u32 %v2570, 30
  %v2572 = vshll.u32 %v2571, 30
  %v2573 = vsub.s32 %v2569, %v2572
  %vm2574 = vcmp.lt.s32.totalorder %v2573, 0
  %v2575 = vsub.s32 0, %v2573
  %v2576 = vsel %vm2574, %v2575, %v2573
  %v2577 = vclz %v2576
  %v2578 = vsub.s32 %v2577, 2
  %vm2579 = vcmp.gt.s32.totalorder 0, %v2578
  %v2580 = vsel %vm2579, 0, %v2578
  %v2581 = vsub.s32 32, %v2580
  %v2582 = vshll.u32 %v2573, %v2580
  %v2583 = vshrl.u32 %v2565, %v2581
  %v2584 = vor.u32 %v2582, %v2583
  %v2585 = vsub.s32 4294967266, %v2580
  %v2586 = vadd.s32 %v2585, 127
  %v2587 = vshll.u32 %v2586, 23
  %v2588 = vor.u32 4788187, %v2587
  %v2589 = vand.u32 2147483647, %v2588
  %v2591 = vcvt.s32.f32 %v2584
  %v2592 = vmul.f32 %v2591, %v2589
  %v2593 = vxor.u32 %v2592, 2147483648
  %v2594 = vsel %vm2511, %v2593, %v2592
  %v2595 = vsub.s32 4, %v2571
  %v2596 = vsel %vm2511, %v2595, %v2571
  %v2597 = vsel %vm2510, %v416, %v2594
  %v2598 = vsel %vm2510, 0, %v2596
  %v2599 = vcosq.f32.pop %v2597
  %v2600 = vsinq.f32.pop %v2597
  %vm2601 = vweird.f32 %v416
  %v2602 = vadd.s32 %v2598, 3
  %v2603 = vand.u32 %v2602, 3
  %vm2604 = vcmp.lt.s32.totalorder %v2603, 2
  %vm2605 = vcmp.eq.s32.totalorder %v2603, 0
  %v2606 = vxor.u32 %v2600, 2147483648
  %v2607 = vsel %vm2605, %v2599, %v2606
  %vm2608 = vcmp.eq.s32.totalorder %v2603, 2
  %v2609 = vxor.u32 %v2599, 2147483648
  %v2610 = vsel %vm2608, %v2609, %v2600
  %v2611 = vsel %vm2604, %v2607, %v2610
  %v2612 = vsel %vm2601, nan, %v2611
  %v2613 = vand.u32 2147483647, %v417
  %vm2614 = vcmp.le.f32.partialorder %v2613, 0.7853982
  %vm2615 = vcmp.lt.s32.totalorder %v417, 0
  %v2616 = vand.u32 %v417, 2139095040
  %v2617 = vshrl.u32 %v2616, 23
  %v2618 = vsub.s32 %v2617, 127
  %v2619 = vand.u32 2147483647, %v417
  %v2620 = vand.u32 %v2619, 8388607
  %v2621 = vor.u32 %v2620, 8388608
  %v2622 = vsub.s32 0, %v2621
  %v2623 = vadd.s32 %v2618, 1
  %vm2624 = vcmp.gt.s32.totalorder %v2623, 0
  %v2625 = vsel %vm2624, %v2623, 0
  %v2626 = vshrl.u32 %v2625, 5
  %v2627 = vand.u32 %v2625, 31
  %v2628 = vsub.s32 32, %v2627
  %v2629 = vshrl.u32 683565275, %v2628
  %v2630 = vshll.u32 683565275, %v2627
  %v2631 = vshrl.u32 2475754826, %v2628
  %v2632 = vor.u32 %v2630, %v2631
  %v2633 = vshll.u32 2475754826, %v2627
  %v2634 = vshrl.u32 2131351028, %v2628
  %v2635 = vor.u32 %v2633, %v2634
  %v2636 = vshll.u32 2131351028, %v2627
  %v2637 = vshrl.u32 2102212464, %v2628
  %v2638 = vor.u32 %v2636, %v2637
  %v2639 = vshll.u32 2102212464, %v2627
  %v2640 = vshrl.u32 920167782, %v2628
  %v2641 = vor.u32 %v2639, %v2640
  %v2642 = vshll.u32 920167782, %v2627
  %v2643 = vshrl.u32 1326507024, %v2628
  %v2644 = vor.u32 %v2642, %v2643
  %vm2645 = vcmp.lt.s32.totalorder %v2626, 1
  %vm2646 = vcmp.lt.s32.totalorder %v2626, 2
  %vm2647 = vcmp.lt.s32.totalorder %v2626, 3
  %vm2648 = vcmp.lt.s32.totalorder %v2626, 4
  %v2649 = vsel %vm2645, %v2629, %v2632
  %v2650 = vsel %vm2648, %v2638, 2102212464
  %v2651 = vsel %vm2647, %v2635, %v2650
  %v2652 = vsel %vm2646, %v2649, %v2651
  %v2653 = vsel %vm2645, %v2632, %v2635
  %v2654 = vsel %vm2648, %v2641, 920167782
  %v2655 = vsel %vm2647, %v2638, %v2654
  %v2656 = vsel %vm2646, %v2653, %v2655
  %v2657 = vsel %vm2645, %v2635, %v2638
  %v2658 = vsel %vm2648, %v2644, 1326507024
  %v2659 = vsel %vm2647, %v2641, %v2658
  %v2660 = vsel %vm2646, %v2657, %v2659
  %v2661 = vshll.u32 %v2621, 8
  %v2662 = vmul.u32.u64.compose %v2661, %v2660
  %v2663 = vextract.low.u32 %v2662
  %v2664 = vextract.high.u32 %v2662
  %v2665 = vmul.u32.u64.compose %v2661, %v2656
  %v2666 = vextract.low.u32 %v2665
  %v2667 = vextract.high.u32 %v2665
  %v2668 = vmul.u32 %v2661, %v2652
  %v2669 = vadd.s32 %v2664, %v2666
  %vm2670 = vc.u32 %v2664, %v2666
  %v2671 = vadd.s32 %v2667, 1
  %v2672 = vsel %vm2670, %v2671, %v2667
  %v2673 = vadd.s32 %v2668, %v2672
  %v2674 = vadd.s32 %v2673, 536870912
  %v2675 = vshrl.u32 %v2674, 30
  %v2676 = vshll.u32 %v2675, 30
  %v2677 = vsub.s32 %v2673, %v2676
  %vm2678 = vcmp.lt.s32.totalorder %v2677, 0
  %v2679 = vsub.s32 0, %v2677
  %v2680 = vsel %vm2678, %v2679, %v2677
  %v2681 = vclz %v2680
  %v2682 = vsub.s32 %v2681, 2
  %vm2683 = vcmp.gt.s32.totalorder 0, %v2682
  %v2684 = vsel %vm2683, 0, %v2682
  %v2685 = vsub.s32 32, %v2684
  %v2686 = vshll.u32 %v2677, %v2684
  %v2687 = vshrl.u32 %v2669, %v2685
  %v2688 = vor.u32 %v2686, %v2687
  %v2689 = vsub.s32 4294967266, %v2684
  %v2690 = vadd.s32 %v2689, 127
  %v2691 = vshll.u32 %v2690, 23
  %v2692 = vor.u32 4788187, %v2691
  %v2693 = vand.u32 2147483647, %v2692
  %v2695 = vcvt.s32.f32 %v2688
  %v2696 = vmul.f32 %v2695, %v2693
  %v2697 = vxor.u32 %v2696, 2147483648
  %v2698 = vsel %vm2615, %v2697, %v2696
  %v2699 = vsub.s32 4, %v2675
  %v2700 = vsel %vm2615, %v2699, %v2675
  %v2701 = vsel %vm2614, %v417, %v2698
  %v2702 = vsel %vm2614, 0, %v2700
  %v2703 = vcosq.f32.pop %v2701
  %v2704 = vsinq.f32.pop %v2701
  %vm2705 = vweird.f32 %v417
  %v2706 = vadd.s32 %v2702, 3
  %v2707 = vand.u32 %v2706, 3
  %vm2708 = vcmp.lt.s32.totalorder %v2707, 2
  %vm2709 = vcmp.eq.s32.totalorder %v2707, 0
  %v2710 = vxor.u32 %v2704, 2147483648
  %v2711 = vsel %vm2709, %v2703, %v2710
  %vm2712 = vcmp.eq.s32.totalorder %v2707, 2
  %v2713 = vxor.u32 %v2703, 2147483648
  %v2714 = vsel %vm2712, %v2713, %v2704
  %v2715 = vsel %vm2708, %v2711, %v2714
  %v2716 = vsel %vm2705, nan, %v2715
  %v2717 = vand.u32 2147483647, %v418
  %vm2718 = vcmp.le.f32.partialorder %v2717, 0.7853982
  %vm2719 = vcmp.lt.s32.totalorder %v418, 0
  %v2720 = vand.u32 %v418, 2139095040
  %v2721 = vshrl.u32 %v2720, 23
  %v2722 = vsub.s32 %v2721, 127
  %v2723 = vand.u32 2147483647, %v418
  %v2724 = vand.u32 %v2723, 8388607
  %v2725 = vor.u32 %v2724, 8388608
  %v2726 = vsub.s32 0, %v2725
  %v2727 = vadd.s32 %v2722, 1
  %vm2728 = vcmp.gt.s32.totalorder %v2727, 0
  %v2729 = vsel %vm2728, %v2727, 0
  %v2730 = vshrl.u32 %v2729, 5
  %v2731 = vand.u32 %v2729, 31
  %v2732 = vsub.s32 32, %v2731
  %v2733 = vshrl.u32 683565275, %v2732
  %v2734 = vshll.u32 683565275, %v2731
  %v2735 = vshrl.u32 2475754826, %v2732
  %v2736 = vor.u32 %v2734, %v2735
  %v2737 = vshll.u32 2475754826, %v2731
  %v2738 = vshrl.u32 2131351028, %v2732
  %v2739 = vor.u32 %v2737, %v2738
  %v2740 = vshll.u32 2131351028, %v2731
  %v2741 = vshrl.u32 2102212464, %v2732
  %v2742 = vor.u32 %v2740, %v2741
  %v2743 = vshll.u32 2102212464, %v2731
  %v2744 = vshrl.u32 920167782, %v2732
  %v2745 = vor.u32 %v2743, %v2744
  %v2746 = vshll.u32 920167782, %v2731
  %v2747 = vshrl.u32 1326507024, %v2732
  %v2748 = vor.u32 %v2746, %v2747
  %vm2749 = vcmp.lt.s32.totalorder %v2730, 1
  %vm2750 = vcmp.lt.s32.totalorder %v2730, 2
  %vm2751 = vcmp.lt.s32.totalorder %v2730, 3
  %vm2752 = vcmp.lt.s32.totalorder %v2730, 4
  %v2753 = vsel %vm2749, %v2733, %v2736
  %v2754 = vsel %vm2752, %v2742, 2102212464
  %v2755 = vsel %vm2751, %v2739, %v2754
  %v2756 = vsel %vm2750, %v2753, %v2755
  %v2757 = vsel %vm2749, %v2736, %v2739
  %v2758 = vsel %vm2752, %v2745, 920167782
  %v2759 = vsel %vm2751, %v2742, %v2758
  %v2760 = vsel %vm2750, %v2757, %v2759
  %v2761 = vsel %vm2749, %v2739, %v2742
  %v2762 = vsel %vm2752, %v2748, 1326507024
  %v2763 = vsel %vm2751, %v2745, %v2762
  %v2764 = vsel %vm2750, %v2761, %v2763
  %v2765 = vshll.u32 %v2725, 8
  %v2766 = vmul.u32.u64.compose %v2765, %v2764
  %v2767 = vextract.low.u32 %v2766
  %v2768 = vextract.high.u32 %v2766
  %v2769 = vmul.u32.u64.compose %v2765, %v2760
  %v2770 = vextract.low.u32 %v2769
  %v2771 = vextract.high.u32 %v2769
  %v2772 = vmul.u32 %v2765, %v2756
  %v2773 = vadd.s32 %v2768, %v2770
  %vm2774 = vc.u32 %v2768, %v2770
  %v2775 = vadd.s32 %v2771, 1
  %v2776 = vsel %vm2774, %v2775, %v2771
  %v2777 = vadd.s32 %v2772, %v2776
  %v2778 = vadd.s32 %v2777, 536870912
  %v2779 = vshrl.u32 %v2778, 30
  %v2780 = vshll.u32 %v2779, 30
  %v2781 = vsub.s32 %v2777, %v2780
  %vm2782 = vcmp.lt.s32.totalorder %v2781, 0
  %v2783 = vsub.s32 0, %v2781
  %v2784 = vsel %vm2782, %v2783, %v2781
  %v2785 = vclz %v2784
  %v2786 = vsub.s32 %v2785, 2
  %vm2787 = vcmp.gt.s32.totalorder 0, %v2786
  %v2788 = vsel %vm2787, 0, %v2786
  %v2789 = vsub.s32 32, %v2788
  %v2790 = vshll.u32 %v2781, %v2788
  %v2791 = vshrl.u32 %v2773, %v2789
  %v2792 = vor.u32 %v2790, %v2791
  %v2793 = vsub.s32 4294967266, %v2788
  %v2794 = vadd.s32 %v2793, 127
  %v2795 = vshll.u32 %v2794, 23
  %v2796 = vor.u32 4788187, %v2795
  %v2797 = vand.u32 2147483647, %v2796
  %v2799 = vcvt.s32.f32 %v2792
  %v2800 = vmul.f32 %v2799, %v2797
  %v2801 = vxor.u32 %v2800, 2147483648
  %v2802 = vsel %vm2719, %v2801, %v2800
  %v2803 = vsub.s32 4, %v2779
  %v2804 = vsel %vm2719, %v2803, %v2779
  %v2805 = vsel %vm2718, %v418, %v2802
  %v2806 = vsel %vm2718, 0, %v2804
  %v2807 = vcosq.f32.pop %v2805
  %v2808 = vsinq.f32.pop %v2805
  %vm2809 = vweird.f32 %v418
  %v2810 = vadd.s32 %v2806, 3
  %v2811 = vand.u32 %v2810, 3
  %vm2812 = vcmp.lt.s32.totalorder %v2811, 2
  %vm2813 = vcmp.eq.s32.totalorder %v2811, 0
  %v2814 = vxor.u32 %v2808, 2147483648
  %v2815 = vsel %vm2813, %v2807, %v2814
  %vm2816 = vcmp.eq.s32.totalorder %v2811, 2
  %v2817 = vxor.u32 %v2807, 2147483648
  %v2818 = vsel %vm2816, %v2817, %v2808
  %v2819 = vsel %vm2812, %v2815, %v2818
  %v2820 = vsel %vm2809, nan, %v2819
  %v2821 = vand.u32 2147483647, %v419
  %vm2822 = vcmp.le.f32.partialorder %v2821, 0.7853982
  %vm2823 = vcmp.lt.s32.totalorder %v419, 0
  %v2824 = vand.u32 %v419, 2139095040
  %v2825 = vshrl.u32 %v2824, 23
  %v2826 = vsub.s32 %v2825, 127
  %v2827 = vand.u32 2147483647, %v419
  %v2828 = vand.u32 %v2827, 8388607
  %v2829 = vor.u32 %v2828, 8388608
  %v2830 = vsub.s32 0, %v2829
  %v2831 = vadd.s32 %v2826, 1
  %vm2832 = vcmp.gt.s32.totalorder %v2831, 0
  %v2833 = vsel %vm2832, %v2831, 0
  %v2834 = vshrl.u32 %v2833, 5
  %v2835 = vand.u32 %v2833, 31
  %v2836 = vsub.s32 32, %v2835
  %v2837 = vshrl.u32 683565275, %v2836
  %v2838 = vshll.u32 683565275, %v2835
  %v2839 = vshrl.u32 2475754826, %v2836
  %v2840 = vor.u32 %v2838, %v2839
  %v2841 = vshll.u32 2475754826, %v2835
  %v2842 = vshrl.u32 2131351028, %v2836
  %v2843 = vor.u32 %v2841, %v2842
  %v2844 = vshll.u32 2131351028, %v2835
  %v2845 = vshrl.u32 2102212464, %v2836
  %v2846 = vor.u32 %v2844, %v2845
  %v2847 = vshll.u32 2102212464, %v2835
  %v2848 = vshrl.u32 920167782, %v2836
  %v2849 = vor.u32 %v2847, %v2848
  %v2850 = vshll.u32 920167782, %v2835
  %v2851 = vshrl.u32 1326507024, %v2836
  %v2852 = vor.u32 %v2850, %v2851
  %vm2853 = vcmp.lt.s32.totalorder %v2834, 1
  %vm2854 = vcmp.lt.s32.totalorder %v2834, 2
  %vm2855 = vcmp.lt.s32.totalorder %v2834, 3
  %vm2856 = vcmp.lt.s32.totalorder %v2834, 4
  %v2857 = vsel %vm2853, %v2837, %v2840
  %v2858 = vsel %vm2856, %v2846, 2102212464
  %v2859 = vsel %vm2855, %v2843, %v2858
  %v2860 = vsel %vm2854, %v2857, %v2859
  %v2861 = vsel %vm2853, %v2840, %v2843
  %v2862 = vsel %vm2856, %v2849, 920167782
  %v2863 = vsel %vm2855, %v2846, %v2862
  %v2864 = vsel %vm2854, %v2861, %v2863
  %v2865 = vsel %vm2853, %v2843, %v2846
  %v2866 = vsel %vm2856, %v2852, 1326507024
  %v2867 = vsel %vm2855, %v2849, %v2866
  %v2868 = vsel %vm2854, %v2865, %v2867
  %v2869 = vshll.u32 %v2829, 8
  %v2870 = vmul.u32.u64.compose %v2869, %v2868
  %v2871 = vextract.low.u32 %v2870
  %v2872 = vextract.high.u32 %v2870
  %v2873 = vmul.u32.u64.compose %v2869, %v2864
  %v2874 = vextract.low.u32 %v2873
  %v2875 = vextract.high.u32 %v2873
  %v2876 = vmul.u32 %v2869, %v2860
  %v2877 = vadd.s32 %v2872, %v2874
  %vm2878 = vc.u32 %v2872, %v2874
  %v2879 = vadd.s32 %v2875, 1
  %v2880 = vsel %vm2878, %v2879, %v2875
  %v2881 = vadd.s32 %v2876, %v2880
  %v2882 = vadd.s32 %v2881, 536870912
  %v2883 = vshrl.u32 %v2882, 30
  %v2884 = vshll.u32 %v2883, 30
  %v2885 = vsub.s32 %v2881, %v2884
  %vm2886 = vcmp.lt.s32.totalorder %v2885, 0
  %v2887 = vsub.s32 0, %v2885
  %v2888 = vsel %vm2886, %v2887, %v2885
  %v2889 = vclz %v2888
  %v2890 = vsub.s32 %v2889, 2
  %vm2891 = vcmp.gt.s32.totalorder 0, %v2890
  %v2892 = vsel %vm2891, 0, %v2890
  %v2893 = vsub.s32 32, %v2892
  %v2894 = vshll.u32 %v2885, %v2892
  %v2895 = vshrl.u32 %v2877, %v2893
  %v2896 = vor.u32 %v2894, %v2895
  %v2897 = vsub.s32 4294967266, %v2892
  %v2898 = vadd.s32 %v2897, 127
  %v2899 = vshll.u32 %v2898, 23
  %v2900 = vor.u32 4788187, %v2899
  %v2901 = vand.u32 2147483647, %v2900
  %v2903 = vcvt.s32.f32 %v2896
  %v2904 = vmul.f32 %v2903, %v2901
  %v2905 = vxor.u32 %v2904, 2147483648
  %v2906 = vsel %vm2823, %v2905, %v2904
  %v2907 = vsub.s32 4, %v2883
  %v2908 = vsel %vm2823, %v2907, %v2883
  %v2909 = vsel %vm2822, %v419, %v2906
  %v2910 = vsel %vm2822, 0, %v2908
  %v2911 = vcosq.f32.pop %v2909
  %v2912 = vsinq.f32.pop %v2909
  %vm2913 = vweird.f32 %v419
  %v2914 = vadd.s32 %v2910, 3
  %v2915 = vand.u32 %v2914, 3
  %vm2916 = vcmp.lt.s32.totalorder %v2915, 2
  %vm2917 = vcmp.eq.s32.totalorder %v2915, 0
  %v2918 = vxor.u32 %v2912, 2147483648
  %v2919 = vsel %vm2917, %v2911, %v2918
  %vm2920 = vcmp.eq.s32.totalorder %v2915, 2
  %v2921 = vxor.u32 %v2911, 2147483648
  %v2922 = vsel %vm2920, %v2921, %v2912
  %v2923 = vsel %vm2916, %v2919, %v2922
  %v2924 = vsel %vm2913, nan, %v2923
  %v2925 = vand.u32 2147483647, %v420
  %vm2926 = vcmp.le.f32.partialorder %v2925, 0.7853982
  %vm2927 = vcmp.lt.s32.totalorder %v420, 0
  %v2928 = vand.u32 %v420, 2139095040
  %v2929 = vshrl.u32 %v2928, 23
  %v2930 = vsub.s32 %v2929, 127
  %v2931 = vand.u32 2147483647, %v420
  %v2932 = vand.u32 %v2931, 8388607
  %v2933 = vor.u32 %v2932, 8388608
  %v2934 = vsub.s32 0, %v2933
  %v2935 = vadd.s32 %v2930, 1
  %vm2936 = vcmp.gt.s32.totalorder %v2935, 0
  %v2937 = vsel %vm2936, %v2935, 0
  %v2938 = vshrl.u32 %v2937, 5
  %v2939 = vand.u32 %v2937, 31
  %v2940 = vsub.s32 32, %v2939
  %v2941 = vshrl.u32 683565275, %v2940
  %v2942 = vshll.u32 683565275, %v2939
  %v2943 = vshrl.u32 2475754826, %v2940
  %v2944 = vor.u32 %v2942, %v2943
  %v2945 = vshll.u32 2475754826, %v2939
  %v2946 = vshrl.u32 2131351028, %v2940
  %v2947 = vor.u32 %v2945, %v2946
  %v2948 = vshll.u32 2131351028, %v2939
  %v2949 = vshrl.u32 2102212464, %v2940
  %v2950 = vor.u32 %v2948, %v2949
  %v2951 = vshll.u32 2102212464, %v2939
  %v2952 = vshrl.u32 920167782, %v2940
  %v2953 = vor.u32 %v2951, %v2952
  %v2954 = vshll.u32 920167782, %v2939
  %v2955 = vshrl.u32 1326507024, %v2940
  %v2956 = vor.u32 %v2954, %v2955
  %vm2957 = vcmp.lt.s32.totalorder %v2938, 1
  %vm2958 = vcmp.lt.s32.totalorder %v2938, 2
  %vm2959 = vcmp.lt.s32.totalorder %v2938, 3
  %vm2960 = vcmp.lt.s32.totalorder %v2938, 4
  %v2961 = vsel %vm2957, %v2941, %v2944
  %v2962 = vsel %vm2960, %v2950, 2102212464
  %v2963 = vsel %vm2959, %v2947, %v2962
  %v2964 = vsel %vm2958, %v2961, %v2963
  %v2965 = vsel %vm2957, %v2944, %v2947
  %v2966 = vsel %vm2960, %v2953, 920167782
  %v2967 = vsel %vm2959, %v2950, %v2966
  %v2968 = vsel %vm2958, %v2965, %v2967
  %v2969 = vsel %vm2957, %v2947, %v2950
  %v2970 = vsel %vm2960, %v2956, 1326507024
  %v2971 = vsel %vm2959, %v2953, %v2970
  %v2972 = vsel %vm2958, %v2969, %v2971
  %v2973 = vshll.u32 %v2933, 8
  %v2974 = vmul.u32.u64.compose %v2973, %v2972
  %v2975 = vextract.low.u32 %v2974
  %v2976 = vextract.high.u32 %v2974
  %v2977 = vmul.u32.u64.compose %v2973, %v2968
  %v2978 = vextract.low.u32 %v2977
  %v2979 = vextract.high.u32 %v2977
  %v2980 = vmul.u32 %v2973, %v2964
  %v2981 = vadd.s32 %v2976, %v2978
  %vm2982 = vc.u32 %v2976, %v2978
  %v2983 = vadd.s32 %v2979, 1
  %v2984 = vsel %vm2982, %v2983, %v2979
  %v2985 = vadd.s32 %v2980, %v2984
  %v2986 = vadd.s32 %v2985, 536870912
  %v2987 = vshrl.u32 %v2986, 30
  %v2988 = vshll.u32 %v2987, 30
  %v2989 = vsub.s32 %v2985, %v2988
  %vm2990 = vcmp.lt.s32.totalorder %v2989, 0
  %v2991 = vsub.s32 0, %v2989
  %v2992 = vsel %vm2990, %v2991, %v2989
  %v2993 = vclz %v2992
  %v2994 = vsub.s32 %v2993, 2
  %vm2995 = vcmp.gt.s32.totalorder 0, %v2994
  %v2996 = vsel %vm2995, 0, %v2994
  %v2997 = vsub.s32 32, %v2996
  %v2998 = vshll.u32 %v2989, %v2996
  %v2999 = vshrl.u32 %v2981, %v2997
  %v3000 = vor.u32 %v2998, %v2999
  %v3001 = vsub.s32 4294967266, %v2996
  %v3002 = vadd.s32 %v3001, 127
  %v3003 = vshll.u32 %v3002, 23
  %v3004 = vor.u32 4788187, %v3003
  %v3005 = vand.u32 2147483647, %v3004
  %v3007 = vcvt.s32.f32 %v3000
  %v3008 = vmul.f32 %v3007, %v3005
  %v3009 = vxor.u32 %v3008, 2147483648
  %v3010 = vsel %vm2927, %v3009, %v3008
  %v3011 = vsub.s32 4, %v2987
  %v3012 = vsel %vm2927, %v3011, %v2987
  %v3013 = vsel %vm2926, %v420, %v3010
  %v3014 = vsel %vm2926, 0, %v3012
  %v3015 = vcosq.f32.pop %v3013
  %v3016 = vsinq.f32.pop %v3013
  %vm3017 = vweird.f32 %v420
  %v3018 = vadd.s32 %v3014, 3
  %v3019 = vand.u32 %v3018, 3
  %vm3020 = vcmp.lt.s32.totalorder %v3019, 2
  %vm3021 = vcmp.eq.s32.totalorder %v3019, 0
  %v3022 = vxor.u32 %v3016, 2147483648
  %v3023 = vsel %vm3021, %v3015, %v3022
  %vm3024 = vcmp.eq.s32.totalorder %v3019, 2
  %v3025 = vxor.u32 %v3015, 2147483648
  %v3026 = vsel %vm3024, %v3025, %v3016
  %v3027 = vsel %vm3020, %v3023, %v3026
  %v3028 = vsel %vm3017, nan, %v3027
  %v3029 = vand.u32 2147483647, %v421
  %vm3030 = vcmp.le.f32.partialorder %v3029, 0.7853982
  %vm3031 = vcmp.lt.s32.totalorder %v421, 0
  %v3032 = vand.u32 %v421, 2139095040
  %v3033 = vshrl.u32 %v3032, 23
  %v3034 = vsub.s32 %v3033, 127
  %v3035 = vand.u32 2147483647, %v421
  %v3036 = vand.u32 %v3035, 8388607
  %v3037 = vor.u32 %v3036, 8388608
  %v3038 = vsub.s32 0, %v3037
  %v3039 = vadd.s32 %v3034, 1
  %vm3040 = vcmp.gt.s32.totalorder %v3039, 0
  %v3041 = vsel %vm3040, %v3039, 0
  %v3042 = vshrl.u32 %v3041, 5
  %v3043 = vand.u32 %v3041, 31
  %v3044 = vsub.s32 32, %v3043
  %v3045 = vshrl.u32 683565275, %v3044
  %v3046 = vshll.u32 683565275, %v3043
  %v3047 = vshrl.u32 2475754826, %v3044
  %v3048 = vor.u32 %v3046, %v3047
  %v3049 = vshll.u32 2475754826, %v3043
  %v3050 = vshrl.u32 2131351028, %v3044
  %v3051 = vor.u32 %v3049, %v3050
  %v3052 = vshll.u32 2131351028, %v3043
  %v3053 = vshrl.u32 2102212464, %v3044
  %v3054 = vor.u32 %v3052, %v3053
  %v3055 = vshll.u32 2102212464, %v3043
  %v3056 = vshrl.u32 920167782, %v3044
  %v3057 = vor.u32 %v3055, %v3056
  %v3058 = vshll.u32 920167782, %v3043
  %v3059 = vshrl.u32 1326507024, %v3044
  %v3060 = vor.u32 %v3058, %v3059
  %vm3061 = vcmp.lt.s32.totalorder %v3042, 1
  %vm3062 = vcmp.lt.s32.totalorder %v3042, 2
  %vm3063 = vcmp.lt.s32.totalorder %v3042, 3
  %vm3064 = vcmp.lt.s32.totalorder %v3042, 4
  %v3065 = vsel %vm3061, %v3045, %v3048
  %v3066 = vsel %vm3064, %v3054, 2102212464
  %v3067 = vsel %vm3063, %v3051, %v3066
  %v3068 = vsel %vm3062, %v3065, %v3067
  %v3069 = vsel %vm3061, %v3048, %v3051
  %v3070 = vsel %vm3064, %v3057, 920167782
  %v3071 = vsel %vm3063, %v3054, %v3070
  %v3072 = vsel %vm3062, %v3069, %v3071
  %v3073 = vsel %vm3061, %v3051, %v3054
  %v3074 = vsel %vm3064, %v3060, 1326507024
  %v3075 = vsel %vm3063, %v3057, %v3074
  %v3076 = vsel %vm3062, %v3073, %v3075
  %v3077 = vshll.u32 %v3037, 8
  %v3078 = vmul.u32.u64.compose %v3077, %v3076
  %v3079 = vextract.low.u32 %v3078
  %v3080 = vextract.high.u32 %v3078
  %v3081 = vmul.u32.u64.compose %v3077, %v3072
  %v3082 = vextract.low.u32 %v3081
  %v3083 = vextract.high.u32 %v3081
  %v3084 = vmul.u32 %v3077, %v3068
  %v3085 = vadd.s32 %v3080, %v3082
  %vm3086 = vc.u32 %v3080, %v3082
  %v3087 = vadd.s32 %v3083, 1
  %v3088 = vsel %vm3086, %v3087, %v3083
  %v3089 = vadd.s32 %v3084, %v3088
  %v3090 = vadd.s32 %v3089, 536870912
  %v3091 = vshrl.u32 %v3090, 30
  %v3092 = vshll.u32 %v3091, 30
  %v3093 = vsub.s32 %v3089, %v3092
  %vm3094 = vcmp.lt.s32.totalorder %v3093, 0
  %v3095 = vsub.s32 0, %v3093
  %v3096 = vsel %vm3094, %v3095, %v3093
  %v3097 = vclz %v3096
  %v3098 = vsub.s32 %v3097, 2
  %vm3099 = vcmp.gt.s32.totalorder 0, %v3098
  %v3100 = vsel %vm3099, 0, %v3098
  %v3101 = vsub.s32 32, %v3100
  %v3102 = vshll.u32 %v3093, %v3100
  %v3103 = vshrl.u32 %v3085, %v3101
  %v3104 = vor.u32 %v3102, %v3103
  %v3105 = vsub.s32 4294967266, %v3100
  %v3106 = vadd.s32 %v3105, 127
  %v3107 = vshll.u32 %v3106, 23
  %v3108 = vor.u32 4788187, %v3107
  %v3109 = vand.u32 2147483647, %v3108
  %v3111 = vcvt.s32.f32 %v3104
  %v3112 = vmul.f32 %v3111, %v3109
  %v3113 = vxor.u32 %v3112, 2147483648
  %v3114 = vsel %vm3031, %v3113, %v3112
  %v3115 = vsub.s32 4, %v3091
  %v3116 = vsel %vm3031, %v3115, %v3091
  %v3117 = vsel %vm3030, %v421, %v3114
  %v3118 = vsel %vm3030, 0, %v3116
  %v3119 = vcosq.f32.pop %v3117
  %v3120 = vsinq.f32.pop %v3117
  %vm3121 = vweird.f32 %v421
  %v3122 = vadd.s32 %v3118, 3
  %v3123 = vand.u32 %v3122, 3
  %vm3124 = vcmp.lt.s32.totalorder %v3123, 2
  %vm3125 = vcmp.eq.s32.totalorder %v3123, 0
  %v3126 = vxor.u32 %v3120, 2147483648
  %v3127 = vsel %vm3125, %v3119, %v3126
  %vm3128 = vcmp.eq.s32.totalorder %v3123, 2
  %v3129 = vxor.u32 %v3119, 2147483648
  %v3130 = vsel %vm3128, %v3129, %v3120
  %v3131 = vsel %vm3124, %v3127, %v3130
  %v3132 = vsel %vm3121, nan, %v3131
  %v3133 = vand.u32 2147483647, %v422
  %vm3134 = vcmp.le.f32.partialorder %v3133, 0.7853982
  %vm3135 = vcmp.lt.s32.totalorder %v422, 0
  %v3136 = vand.u32 %v422, 2139095040
  %v3137 = vshrl.u32 %v3136, 23
  %v3138 = vsub.s32 %v3137, 127
  %v3139 = vand.u32 2147483647, %v422
  %v3140 = vand.u32 %v3139, 8388607
  %v3141 = vor.u32 %v3140, 8388608
  %v3142 = vsub.s32 0, %v3141
  %v3143 = vadd.s32 %v3138, 1
  %vm3144 = vcmp.gt.s32.totalorder %v3143, 0
  %v3145 = vsel %vm3144, %v3143, 0
  %v3146 = vshrl.u32 %v3145, 5
  %v3147 = vand.u32 %v3145, 31
  %v3148 = vsub.s32 32, %v3147
  %v3149 = vshrl.u32 683565275, %v3148
  %v3150 = vshll.u32 683565275, %v3147
  %v3151 = vshrl.u32 2475754826, %v3148
  %v3152 = vor.u32 %v3150, %v3151
  %v3153 = vshll.u32 2475754826, %v3147
  %v3154 = vshrl.u32 2131351028, %v3148
  %v3155 = vor.u32 %v3153, %v3154
  %v3156 = vshll.u32 2131351028, %v3147
  %v3157 = vshrl.u32 2102212464, %v3148
  %v3158 = vor.u32 %v3156, %v3157
  %v3159 = vshll.u32 2102212464, %v3147
  %v3160 = vshrl.u32 920167782, %v3148
  %v3161 = vor.u32 %v3159, %v3160
  %v3162 = vshll.u32 920167782, %v3147
  %v3163 = vshrl.u32 1326507024, %v3148
  %v3164 = vor.u32 %v3162, %v3163
  %vm3165 = vcmp.lt.s32.totalorder %v3146, 1
  %vm3166 = vcmp.lt.s32.totalorder %v3146, 2
  %vm3167 = vcmp.lt.s32.totalorder %v3146, 3
  %vm3168 = vcmp.lt.s32.totalorder %v3146, 4
  %v3169 = vsel %vm3165, %v3149, %v3152
  %v3170 = vsel %vm3168, %v3158, 2102212464
  %v3171 = vsel %vm3167, %v3155, %v3170
  %v3172 = vsel %vm3166, %v3169, %v3171
  %v3173 = vsel %vm3165, %v3152, %v3155
  %v3174 = vsel %vm3168, %v3161, 920167782
  %v3175 = vsel %vm3167, %v3158, %v3174
  %v3176 = vsel %vm3166, %v3173, %v3175
  %v3177 = vsel %vm3165, %v3155, %v3158
  %v3178 = vsel %vm3168, %v3164, 1326507024
  %v3179 = vsel %vm3167, %v3161, %v3178
  %v3180 = vsel %vm3166, %v3177, %v3179
  %v3181 = vshll.u32 %v3141, 8
  %v3182 = vmul.u32.u64.compose %v3181, %v3180
  %v3183 = vextract.low.u32 %v3182
  %v3184 = vextract.high.u32 %v3182
  %v3185 = vmul.u32.u64.compose %v3181, %v3176
  %v3186 = vextract.low.u32 %v3185
  %v3187 = vextract.high.u32 %v3185
  %v3188 = vmul.u32 %v3181, %v3172
  %v3189 = vadd.s32 %v3184, %v3186
  %vm3190 = vc.u32 %v3184, %v3186
  %v3191 = vadd.s32 %v3187, 1
  %v3192 = vsel %vm3190, %v3191, %v3187
  %v3193 = vadd.s32 %v3188, %v3192
  %v3194 = vadd.s32 %v3193, 536870912
  %v3195 = vshrl.u32 %v3194, 30
  %v3196 = vshll.u32 %v3195, 30
  %v3197 = vsub.s32 %v3193, %v3196
  %vm3198 = vcmp.lt.s32.totalorder %v3197, 0
  %v3199 = vsub.s32 0, %v3197
  %v3200 = vsel %vm3198, %v3199, %v3197
  %v3201 = vclz %v3200
  %v3202 = vsub.s32 %v3201, 2
  %vm3203 = vcmp.gt.s32.totalorder 0, %v3202
  %v3204 = vsel %vm3203, 0, %v3202
  %v3205 = vsub.s32 32, %v3204
  %v3206 = vshll.u32 %v3197, %v3204
  %v3207 = vshrl.u32 %v3189, %v3205
  %v3208 = vor.u32 %v3206, %v3207
  %v3209 = vsub.s32 4294967266, %v3204
  %v3210 = vadd.s32 %v3209, 127
  %v3211 = vshll.u32 %v3210, 23
  %v3212 = vor.u32 4788187, %v3211
  %v3213 = vand.u32 2147483647, %v3212
  %v3215 = vcvt.s32.f32 %v3208
  %v3216 = vmul.f32 %v3215, %v3213
  %v3217 = vxor.u32 %v3216, 2147483648
  %v3218 = vsel %vm3135, %v3217, %v3216
  %v3219 = vsub.s32 4, %v3195
  %v3220 = vsel %vm3135, %v3219, %v3195
  %v3221 = vsel %vm3134, %v422, %v3218
  %v3222 = vsel %vm3134, 0, %v3220
  %v3223 = vcosq.f32.pop %v3221
  %v3224 = vsinq.f32.pop %v3221
  %vm3225 = vweird.f32 %v422
  %v3226 = vadd.s32 %v3222, 3
  %v3227 = vand.u32 %v3226, 3
  %vm3228 = vcmp.lt.s32.totalorder %v3227, 2
  %vm3229 = vcmp.eq.s32.totalorder %v3227, 0
  %v3230 = vxor.u32 %v3224, 2147483648
  %v3231 = vsel %vm3229, %v3223, %v3230
  %vm3232 = vcmp.eq.s32.totalorder %v3227, 2
  %v3233 = vxor.u32 %v3223, 2147483648
  %v3234 = vsel %vm3232, %v3233, %v3224
  %v3235 = vsel %vm3228, %v3231, %v3234
  %v3236 = vsel %vm3225, nan, %v3235
  %v3237 = vand.u32 2147483647, %v423
  %vm3238 = vcmp.le.f32.partialorder %v3237, 0.7853982
  %vm3239 = vcmp.lt.s32.totalorder %v423, 0
  %v3240 = vand.u32 %v423, 2139095040
  %v3241 = vshrl.u32 %v3240, 23
  %v3242 = vsub.s32 %v3241, 127
  %v3243 = vand.u32 2147483647, %v423
  %v3244 = vand.u32 %v3243, 8388607
  %v3245 = vor.u32 %v3244, 8388608
  %v3246 = vsub.s32 0, %v3245
  %v3247 = vadd.s32 %v3242, 1
  %vm3248 = vcmp.gt.s32.totalorder %v3247, 0
  %v3249 = vsel %vm3248, %v3247, 0
  %v3250 = vshrl.u32 %v3249, 5
  %v3251 = vand.u32 %v3249, 31
  %v3252 = vsub.s32 32, %v3251
  %v3253 = vshrl.u32 683565275, %v3252
  %v3254 = vshll.u32 683565275, %v3251
  %v3255 = vshrl.u32 2475754826, %v3252
  %v3256 = vor.u32 %v3254, %v3255
  %v3257 = vshll.u32 2475754826, %v3251
  %v3258 = vshrl.u32 2131351028, %v3252
  %v3259 = vor.u32 %v3257, %v3258
  %v3260 = vshll.u32 2131351028, %v3251
  %v3261 = vshrl.u32 2102212464, %v3252
  %v3262 = vor.u32 %v3260, %v3261
  %v3263 = vshll.u32 2102212464, %v3251
  %v3264 = vshrl.u32 920167782, %v3252
  %v3265 = vor.u32 %v3263, %v3264
  %v3266 = vshll.u32 920167782, %v3251
  %v3267 = vshrl.u32 1326507024, %v3252
  %v3268 = vor.u32 %v3266, %v3267
  %vm3269 = vcmp.lt.s32.totalorder %v3250, 1
  %vm3270 = vcmp.lt.s32.totalorder %v3250, 2
  %vm3271 = vcmp.lt.s32.totalorder %v3250, 3
  %vm3272 = vcmp.lt.s32.totalorder %v3250, 4
  %v3273 = vsel %vm3269, %v3253, %v3256
  %v3274 = vsel %vm3272, %v3262, 2102212464
  %v3275 = vsel %vm3271, %v3259, %v3274
  %v3276 = vsel %vm3270, %v3273, %v3275
  %v3277 = vsel %vm3269, %v3256, %v3259
  %v3278 = vsel %vm3272, %v3265, 920167782
  %v3279 = vsel %vm3271, %v3262, %v3278
  %v3280 = vsel %vm3270, %v3277, %v3279
  %v3281 = vsel %vm3269, %v3259, %v3262
  %v3282 = vsel %vm3272, %v3268, 1326507024
  %v3283 = vsel %vm3271, %v3265, %v3282
  %v3284 = vsel %vm3270, %v3281, %v3283
  %v3285 = vshll.u32 %v3245, 8
  %v3286 = vmul.u32.u64.compose %v3285, %v3284
  %v3287 = vextract.low.u32 %v3286
  %v3288 = vextract.high.u32 %v3286
  %v3289 = vmul.u32.u64.compose %v3285, %v3280
  %v3290 = vextract.low.u32 %v3289
  %v3291 = vextract.high.u32 %v3289
  %v3292 = vmul.u32 %v3285, %v3276
  %v3293 = vadd.s32 %v3288, %v3290
  %vm3294 = vc.u32 %v3288, %v3290
  %v3295 = vadd.s32 %v3291, 1
  %v3296 = vsel %vm3294, %v3295, %v3291
  %v3297 = vadd.s32 %v3292, %v3296
  %v3298 = vadd.s32 %v3297, 536870912
  %v3299 = vshrl.u32 %v3298, 30
  %v3300 = vshll.u32 %v3299, 30
  %v3301 = vsub.s32 %v3297, %v3300
  %vm3302 = vcmp.lt.s32.totalorder %v3301, 0
  %v3303 = vsub.s32 0, %v3301
  %v3304 = vsel %vm3302, %v3303, %v3301
  %v3305 = vclz %v3304
  %v3306 = vsub.s32 %v3305, 2
  %vm3307 = vcmp.gt.s32.totalorder 0, %v3306
  %v3308 = vsel %vm3307, 0, %v3306
  %v3309 = vsub.s32 32, %v3308
  %v3310 = vshll.u32 %v3301, %v3308
  %v3311 = vshrl.u32 %v3293, %v3309
  %v3312 = vor.u32 %v3310, %v3311
  %v3313 = vsub.s32 4294967266, %v3308
  %v3314 = vadd.s32 %v3313, 127
  %v3315 = vshll.u32 %v3314, 23
  %v3316 = vor.u32 4788187, %v3315
  %v3317 = vand.u32 2147483647, %v3316
  %v3319 = vcvt.s32.f32 %v3312
  %v3320 = vmul.f32 %v3319, %v3317
  %v3321 = vxor.u32 %v3320, 2147483648
  %v3322 = vsel %vm3239, %v3321, %v3320
  %v3323 = vsub.s32 4, %v3299
  %v3324 = vsel %vm3239, %v3323, %v3299
  %v3325 = vsel %vm3238, %v423, %v3322
  %v3326 = vsel %vm3238, 0, %v3324
  %v3327 = vcosq.f32.pop %v3325
  %v3328 = vsinq.f32.pop %v3325
  %vm3329 = vweird.f32 %v423
  %v3330 = vadd.s32 %v3326, 3
  %v3331 = vand.u32 %v3330, 3
  %vm3332 = vcmp.lt.s32.totalorder %v3331, 2
  %vm3333 = vcmp.eq.s32.totalorder %v3331, 0
  %v3334 = vxor.u32 %v3328, 2147483648
  %v3335 = vsel %vm3333, %v3327, %v3334
  %vm3336 = vcmp.eq.s32.totalorder %v3331, 2
  %v3337 = vxor.u32 %v3327, 2147483648
  %v3338 = vsel %vm3336, %v3337, %v3328
  %v3339 = vsel %vm3332, %v3335, %v3338
  %v3340 = vsel %vm3329, nan, %v3339
  %v3341 = vand.u32 2147483647, %v424
  %vm3342 = vcmp.le.f32.partialorder %v3341, 0.7853982
  %vm3343 = vcmp.lt.s32.totalorder %v424, 0
  %v3344 = vand.u32 %v424, 2139095040
  %v3345 = vshrl.u32 %v3344, 23
  %v3346 = vsub.s32 %v3345, 127
  %v3347 = vand.u32 2147483647, %v424
  %v3348 = vand.u32 %v3347, 8388607
  %v3349 = vor.u32 %v3348, 8388608
  %v3350 = vsub.s32 0, %v3349
  %v3351 = vadd.s32 %v3346, 1
  %vm3352 = vcmp.gt.s32.totalorder %v3351, 0
  %v3353 = vsel %vm3352, %v3351, 0
  %v3354 = vshrl.u32 %v3353, 5
  %v3355 = vand.u32 %v3353, 31
  %v3356 = vsub.s32 32, %v3355
  %v3357 = vshrl.u32 683565275, %v3356
  %v3358 = vshll.u32 683565275, %v3355
  %v3359 = vshrl.u32 2475754826, %v3356
  %v3360 = vor.u32 %v3358, %v3359
  %v3361 = vshll.u32 2475754826, %v3355
  %v3362 = vshrl.u32 2131351028, %v3356
  %v3363 = vor.u32 %v3361, %v3362
  %v3364 = vshll.u32 2131351028, %v3355
  %v3365 = vshrl.u32 2102212464, %v3356
  %v3366 = vor.u32 %v3364, %v3365
  %v3367 = vshll.u32 2102212464, %v3355
  %v3368 = vshrl.u32 920167782, %v3356
  %v3369 = vor.u32 %v3367, %v3368
  %v3370 = vshll.u32 920167782, %v3355
  %v3371 = vshrl.u32 1326507024, %v3356
  %v3372 = vor.u32 %v3370, %v3371
  %vm3373 = vcmp.lt.s32.totalorder %v3354, 1
  %vm3374 = vcmp.lt.s32.totalorder %v3354, 2
  %vm3375 = vcmp.lt.s32.totalorder %v3354, 3
  %vm3376 = vcmp.lt.s32.totalorder %v3354, 4
  %v3377 = vsel %vm3373, %v3357, %v3360
  %v3378 = vsel %vm3376, %v3366, 2102212464
  %v3379 = vsel %vm3375, %v3363, %v3378
  %v3380 = vsel %vm3374, %v3377, %v3379
  %v3381 = vsel %vm3373, %v3360, %v3363
  %v3382 = vsel %vm3376, %v3369, 920167782
  %v3383 = vsel %vm3375, %v3366, %v3382
  %v3384 = vsel %vm3374, %v3381, %v3383
  %v3385 = vsel %vm3373, %v3363, %v3366
  %v3386 = vsel %vm3376, %v3372, 1326507024
  %v3387 = vsel %vm3375, %v3369, %v3386
  %v3388 = vsel %vm3374, %v3385, %v3387
  %v3389 = vshll.u32 %v3349, 8
  %v3390 = vmul.u32.u64.compose %v3389, %v3388
  %v3391 = vextract.low.u32 %v3390
  %v3392 = vextract.high.u32 %v3390
  %v3393 = vmul.u32.u64.compose %v3389, %v3384
  %v3394 = vextract.low.u32 %v3393
  %v3395 = vextract.high.u32 %v3393
  %v3396 = vmul.u32 %v3389, %v3380
  %v3397 = vadd.s32 %v3392, %v3394
  %vm3398 = vc.u32 %v3392, %v3394
  %v3399 = vadd.s32 %v3395, 1
  %v3400 = vsel %vm3398, %v3399, %v3395
  %v3401 = vadd.s32 %v3396, %v3400
  %v3402 = vadd.s32 %v3401, 536870912
  %v3403 = vshrl.u32 %v3402, 30
  %v3404 = vshll.u32 %v3403, 30
  %v3405 = vsub.s32 %v3401, %v3404
  %vm3406 = vcmp.lt.s32.totalorder %v3405, 0
  %v3407 = vsub.s32 0, %v3405
  %v3408 = vsel %vm3406, %v3407, %v3405
  %v3409 = vclz %v3408
  %v3410 = vsub.s32 %v3409, 2
  %vm3411 = vcmp.gt.s32.totalorder 0, %v3410
  %v3412 = vsel %vm3411, 0, %v3410
  %v3413 = vsub.s32 32, %v3412
  %v3414 = vshll.u32 %v3405, %v3412
  %v3415 = vshrl.u32 %v3397, %v3413
  %v3416 = vor.u32 %v3414, %v3415
  %v3417 = vsub.s32 4294967266, %v3412
  %v3418 = vadd.s32 %v3417, 127
  %v3419 = vshll.u32 %v3418, 23
  %v3420 = vor.u32 4788187, %v3419
  %v3421 = vand.u32 2147483647, %v3420
  %v3423 = vcvt.s32.f32 %v3416
  %v3424 = vmul.f32 %v3423, %v3421
  %v3425 = vxor.u32 %v3424, 2147483648
  %v3426 = vsel %vm3343, %v3425, %v3424
  %v3427 = vsub.s32 4, %v3403
  %v3428 = vsel %vm3343, %v3427, %v3403
  %v3429 = vsel %vm3342, %v424, %v3426
  %v3430 = vsel %vm3342, 0, %v3428
  %v3431 = vcosq.f32.pop %v3429
  %v3432 = vsinq.f32.pop %v3429
  %vm3433 = vweird.f32 %v424
  %v3434 = vadd.s32 %v3430, 3
  %v3435 = vand.u32 %v3434, 3
  %vm3436 = vcmp.lt.s32.totalorder %v3435, 2
  %vm3437 = vcmp.eq.s32.totalorder %v3435, 0
  %v3438 = vxor.u32 %v3432, 2147483648
  %v3439 = vsel %vm3437, %v3431, %v3438
  %vm3440 = vcmp.eq.s32.totalorder %v3435, 2
  %v3441 = vxor.u32 %v3431, 2147483648
  %v3442 = vsel %vm3440, %v3441, %v3432
  %v3443 = vsel %vm3436, %v3439, %v3442
  %v3444 = vsel %vm3433, nan, %v3443
  %v3445 = vand.u32 2147483647, %v425
  %vm3446 = vcmp.le.f32.partialorder %v3445, 0.7853982
  %vm3447 = vcmp.lt.s32.totalorder %v425, 0
  %v3448 = vand.u32 %v425, 2139095040
  %v3449 = vshrl.u32 %v3448, 23
  %v3450 = vsub.s32 %v3449, 127
  %v3451 = vand.u32 2147483647, %v425
  %v3452 = vand.u32 %v3451, 8388607
  %v3453 = vor.u32 %v3452, 8388608
  %v3454 = vsub.s32 0, %v3453
  %v3455 = vadd.s32 %v3450, 1
  %vm3456 = vcmp.gt.s32.totalorder %v3455, 0
  %v3457 = vsel %vm3456, %v3455, 0
  %v3458 = vshrl.u32 %v3457, 5
  %v3459 = vand.u32 %v3457, 31
  %v3460 = vsub.s32 32, %v3459
  %v3461 = vshrl.u32 683565275, %v3460
  %v3462 = vshll.u32 683565275, %v3459
  %v3463 = vshrl.u32 2475754826, %v3460
  %v3464 = vor.u32 %v3462, %v3463
  %v3465 = vshll.u32 2475754826, %v3459
  %v3466 = vshrl.u32 2131351028, %v3460
  %v3467 = vor.u32 %v3465, %v3466
  %v3468 = vshll.u32 2131351028, %v3459
  %v3469 = vshrl.u32 2102212464, %v3460
  %v3470 = vor.u32 %v3468, %v3469
  %v3471 = vshll.u32 2102212464, %v3459
  %v3472 = vshrl.u32 920167782, %v3460
  %v3473 = vor.u32 %v3471, %v3472
  %v3474 = vshll.u32 920167782, %v3459
  %v3475 = vshrl.u32 1326507024, %v3460
  %v3476 = vor.u32 %v3474, %v3475
  %vm3477 = vcmp.lt.s32.totalorder %v3458, 1
  %vm3478 = vcmp.lt.s32.totalorder %v3458, 2
  %vm3479 = vcmp.lt.s32.totalorder %v3458, 3
  %vm3480 = vcmp.lt.s32.totalorder %v3458, 4
  %v3481 = vsel %vm3477, %v3461, %v3464
  %v3482 = vsel %vm3480, %v3470, 2102212464
  %v3483 = vsel %vm3479, %v3467, %v3482
  %v3484 = vsel %vm3478, %v3481, %v3483
  %v3485 = vsel %vm3477, %v3464, %v3467
  %v3486 = vsel %vm3480, %v3473, 920167782
  %v3487 = vsel %vm3479, %v3470, %v3486
  %v3488 = vsel %vm3478, %v3485, %v3487
  %v3489 = vsel %vm3477, %v3467, %v3470
  %v3490 = vsel %vm3480, %v3476, 1326507024
  %v3491 = vsel %vm3479, %v3473, %v3490
  %v3492 = vsel %vm3478, %v3489, %v3491
  %v3493 = vshll.u32 %v3453, 8
  %v3494 = vmul.u32.u64.compose %v3493, %v3492
  %v3495 = vextract.low.u32 %v3494
  %v3496 = vextract.high.u32 %v3494
  %v3497 = vmul.u32.u64.compose %v3493, %v3488
  %v3498 = vextract.low.u32 %v3497
  %v3499 = vextract.high.u32 %v3497
  %v3500 = vmul.u32 %v3493, %v3484
  %v3501 = vadd.s32 %v3496, %v3498
  %vm3502 = vc.u32 %v3496, %v3498
  %v3503 = vadd.s32 %v3499, 1
  %v3504 = vsel %vm3502, %v3503, %v3499
  %v3505 = vadd.s32 %v3500, %v3504
  %v3506 = vadd.s32 %v3505, 536870912
  %v3507 = vshrl.u32 %v3506, 30
  %v3508 = vshll.u32 %v3507, 30
  %v3509 = vsub.s32 %v3505, %v3508
  %vm3510 = vcmp.lt.s32.totalorder %v3509, 0
  %v3511 = vsub.s32 0, %v3509
  %v3512 = vsel %vm3510, %v3511, %v3509
  %v3513 = vclz %v3512
  %v3514 = vsub.s32 %v3513, 2
  %vm3515 = vcmp.gt.s32.totalorder 0, %v3514
  %v3516 = vsel %vm3515, 0, %v3514
  %v3517 = vsub.s32 32, %v3516
  %v3518 = vshll.u32 %v3509, %v3516
  %v3519 = vshrl.u32 %v3501, %v3517
  %v3520 = vor.u32 %v3518, %v3519
  %v3521 = vsub.s32 4294967266, %v3516
  %v3522 = vadd.s32 %v3521, 127
  %v3523 = vshll.u32 %v3522, 23
  %v3524 = vor.u32 4788187, %v3523
  %v3525 = vand.u32 2147483647, %v3524
  %v3527 = vcvt.s32.f32 %v3520
  %v3528 = vmul.f32 %v3527, %v3525
  %v3529 = vxor.u32 %v3528, 2147483648
  %v3530 = vsel %vm3447, %v3529, %v3528
  %v3531 = vsub.s32 4, %v3507
  %v3532 = vsel %vm3447, %v3531, %v3507
  %v3533 = vsel %vm3446, %v425, %v3530
  %v3534 = vsel %vm3446, 0, %v3532
  %v3535 = vcosq.f32.pop %v3533
  %v3536 = vsinq.f32.pop %v3533
  %vm3537 = vweird.f32 %v425
  %v3538 = vadd.s32 %v3534, 3
  %v3539 = vand.u32 %v3538, 3
  %vm3540 = vcmp.lt.s32.totalorder %v3539, 2
  %vm3541 = vcmp.eq.s32.totalorder %v3539, 0
  %v3542 = vxor.u32 %v3536, 2147483648
  %v3543 = vsel %vm3541, %v3535, %v3542
  %vm3544 = vcmp.eq.s32.totalorder %v3539, 2
  %v3545 = vxor.u32 %v3535, 2147483648
  %v3546 = vsel %vm3544, %v3545, %v3536
  %v3547 = vsel %vm3540, %v3543, %v3546
  %v3548 = vsel %vm3537, nan, %v3547
  %v3549 = vand.u32 2147483647, %v426
  %vm3550 = vcmp.le.f32.partialorder %v3549, 0.7853982
  %vm3551 = vcmp.lt.s32.totalorder %v426, 0
  %v3552 = vand.u32 %v426, 2139095040
  %v3553 = vshrl.u32 %v3552, 23
  %v3554 = vsub.s32 %v3553, 127
  %v3555 = vand.u32 2147483647, %v426
  %v3556 = vand.u32 %v3555, 8388607
  %v3557 = vor.u32 %v3556, 8388608
  %v3558 = vsub.s32 0, %v3557
  %v3559 = vadd.s32 %v3554, 1
  %vm3560 = vcmp.gt.s32.totalorder %v3559, 0
  %v3561 = vsel %vm3560, %v3559, 0
  %v3562 = vshrl.u32 %v3561, 5
  %v3563 = vand.u32 %v3561, 31
  %v3564 = vsub.s32 32, %v3563
  %v3565 = vshrl.u32 683565275, %v3564
  %v3566 = vshll.u32 683565275, %v3563
  %v3567 = vshrl.u32 2475754826, %v3564
  %v3568 = vor.u32 %v3566, %v3567
  %v3569 = vshll.u32 2475754826, %v3563
  %v3570 = vshrl.u32 2131351028, %v3564
  %v3571 = vor.u32 %v3569, %v3570
  %v3572 = vshll.u32 2131351028, %v3563
  %v3573 = vshrl.u32 2102212464, %v3564
  %v3574 = vor.u32 %v3572, %v3573
  %v3575 = vshll.u32 2102212464, %v3563
  %v3576 = vshrl.u32 920167782, %v3564
  %v3577 = vor.u32 %v3575, %v3576
  %v3578 = vshll.u32 920167782, %v3563
  %v3579 = vshrl.u32 1326507024, %v3564
  %v3580 = vor.u32 %v3578, %v3579
  %vm3581 = vcmp.lt.s32.totalorder %v3562, 1
  %vm3582 = vcmp.lt.s32.totalorder %v3562, 2
  %vm3583 = vcmp.lt.s32.totalorder %v3562, 3
  %vm3584 = vcmp.lt.s32.totalorder %v3562, 4
  %v3585 = vsel %vm3581, %v3565, %v3568
  %v3586 = vsel %vm3584, %v3574, 2102212464
  %v3587 = vsel %vm3583, %v3571, %v3586
  %v3588 = vsel %vm3582, %v3585, %v3587
  %v3589 = vsel %vm3581, %v3568, %v3571
  %v3590 = vsel %vm3584, %v3577, 920167782
  %v3591 = vsel %vm3583, %v3574, %v3590
  %v3592 = vsel %vm3582, %v3589, %v3591
  %v3593 = vsel %vm3581, %v3571, %v3574
  %v3594 = vsel %vm3584, %v3580, 1326507024
  %v3595 = vsel %vm3583, %v3577, %v3594
  %v3596 = vsel %vm3582, %v3593, %v3595
  %v3597 = vshll.u32 %v3557, 8
  %v3598 = vmul.u32.u64.compose %v3597, %v3596
  %v3599 = vextract.low.u32 %v3598
  %v3600 = vextract.high.u32 %v3598
  %v3601 = vmul.u32.u64.compose %v3597, %v3592
  %v3602 = vextract.low.u32 %v3601
  %v3603 = vextract.high.u32 %v3601
  %v3604 = vmul.u32 %v3597, %v3588
  %v3605 = vadd.s32 %v3600, %v3602
  %vm3606 = vc.u32 %v3600, %v3602
  %v3607 = vadd.s32 %v3603, 1
  %v3608 = vsel %vm3606, %v3607, %v3603
  %v3609 = vadd.s32 %v3604, %v3608
  %v3610 = vadd.s32 %v3609, 536870912
  %v3611 = vshrl.u32 %v3610, 30
  %v3612 = vshll.u32 %v3611, 30
  %v3613 = vsub.s32 %v3609, %v3612
  %vm3614 = vcmp.lt.s32.totalorder %v3613, 0
  %v3615 = vsub.s32 0, %v3613
  %v3616 = vsel %vm3614, %v3615, %v3613
  %v3617 = vclz %v3616
  %v3618 = vsub.s32 %v3617, 2
  %vm3619 = vcmp.gt.s32.totalorder 0, %v3618
  %v3620 = vsel %vm3619, 0, %v3618
  %v3621 = vsub.s32 32, %v3620
  %v3622 = vshll.u32 %v3613, %v3620
  %v3623 = vshrl.u32 %v3605, %v3621
  %v3624 = vor.u32 %v3622, %v3623
  %v3625 = vsub.s32 4294967266, %v3620
  %v3626 = vadd.s32 %v3625, 127
  %v3627 = vshll.u32 %v3626, 23
  %v3628 = vor.u32 4788187, %v3627
  %v3629 = vand.u32 2147483647, %v3628
  %v3631 = vcvt.s32.f32 %v3624
  %v3632 = vmul.f32 %v3631, %v3629
  %v3633 = vxor.u32 %v3632, 2147483648
  %v3634 = vsel %vm3551, %v3633, %v3632
  %v3635 = vsub.s32 4, %v3611
  %v3636 = vsel %vm3551, %v3635, %v3611
  %v3637 = vsel %vm3550, %v426, %v3634
  %v3638 = vsel %vm3550, 0, %v3636
  %v3639 = vcosq.f32.pop %v3637
  %v3640 = vsinq.f32.pop %v3637
  %vm3641 = vweird.f32 %v426
  %v3642 = vadd.s32 %v3638, 3
  %v3643 = vand.u32 %v3642, 3
  %vm3644 = vcmp.lt.s32.totalorder %v3643, 2
  %vm3645 = vcmp.eq.s32.totalorder %v3643, 0
  %v3646 = vxor.u32 %v3640, 2147483648
  %v3647 = vsel %vm3645, %v3639, %v3646
  %vm3648 = vcmp.eq.s32.totalorder %v3643, 2
  %v3649 = vxor.u32 %v3639, 2147483648
  %v3650 = vsel %vm3648, %v3649, %v3640
  %v3651 = vsel %vm3644, %v3647, %v3650
  %v3652 = vsel %vm3641, nan, %v3651
  %v3653 = vand.u32 2147483647, %v427
  %vm3654 = vcmp.le.f32.partialorder %v3653, 0.7853982
  %vm3655 = vcmp.lt.s32.totalorder %v427, 0
  %v3656 = vand.u32 %v427, 2139095040
  %v3657 = vshrl.u32 %v3656, 23
  %v3658 = vsub.s32 %v3657, 127
  %v3659 = vand.u32 2147483647, %v427
  %v3660 = vand.u32 %v3659, 8388607
  %v3661 = vor.u32 %v3660, 8388608
  %v3662 = vsub.s32 0, %v3661
  %v3663 = vadd.s32 %v3658, 1
  %vm3664 = vcmp.gt.s32.totalorder %v3663, 0
  %v3665 = vsel %vm3664, %v3663, 0
  %v3666 = vshrl.u32 %v3665, 5
  %v3667 = vand.u32 %v3665, 31
  %v3668 = vsub.s32 32, %v3667
  %v3669 = vshrl.u32 683565275, %v3668
  %v3670 = vshll.u32 683565275, %v3667
  %v3671 = vshrl.u32 2475754826, %v3668
  %v3672 = vor.u32 %v3670, %v3671
  %v3673 = vshll.u32 2475754826, %v3667
  %v3674 = vshrl.u32 2131351028, %v3668
  %v3675 = vor.u32 %v3673, %v3674
  %v3676 = vshll.u32 2131351028, %v3667
  %v3677 = vshrl.u32 2102212464, %v3668
  %v3678 = vor.u32 %v3676, %v3677
  %v3679 = vshll.u32 2102212464, %v3667
  %v3680 = vshrl.u32 920167782, %v3668
  %v3681 = vor.u32 %v3679, %v3680
  %v3682 = vshll.u32 920167782, %v3667
  %v3683 = vshrl.u32 1326507024, %v3668
  %v3684 = vor.u32 %v3682, %v3683
  %vm3685 = vcmp.lt.s32.totalorder %v3666, 1
  %vm3686 = vcmp.lt.s32.totalorder %v3666, 2
  %vm3687 = vcmp.lt.s32.totalorder %v3666, 3
  %vm3688 = vcmp.lt.s32.totalorder %v3666, 4
  %v3689 = vsel %vm3685, %v3669, %v3672
  %v3690 = vsel %vm3688, %v3678, 2102212464
  %v3691 = vsel %vm3687, %v3675, %v3690
  %v3692 = vsel %vm3686, %v3689, %v3691
  %v3693 = vsel %vm3685, %v3672, %v3675
  %v3694 = vsel %vm3688, %v3681, 920167782
  %v3695 = vsel %vm3687, %v3678, %v3694
  %v3696 = vsel %vm3686, %v3693, %v3695
  %v3697 = vsel %vm3685, %v3675, %v3678
  %v3698 = vsel %vm3688, %v3684, 1326507024
  %v3699 = vsel %vm3687, %v3681, %v3698
  %v3700 = vsel %vm3686, %v3697, %v3699
  %v3701 = vshll.u32 %v3661, 8
  %v3702 = vmul.u32.u64.compose %v3701, %v3700
  %v3703 = vextract.low.u32 %v3702
  %v3704 = vextract.high.u32 %v3702
  %v3705 = vmul.u32.u64.compose %v3701, %v3696
  %v3706 = vextract.low.u32 %v3705
  %v3707 = vextract.high.u32 %v3705
  %v3708 = vmul.u32 %v3701, %v3692
  %v3709 = vadd.s32 %v3704, %v3706
  %vm3710 = vc.u32 %v3704, %v3706
  %v3711 = vadd.s32 %v3707, 1
  %v3712 = vsel %vm3710, %v3711, %v3707
  %v3713 = vadd.s32 %v3708, %v3712
  %v3714 = vadd.s32 %v3713, 536870912
  %v3715 = vshrl.u32 %v3714, 30
  %v3716 = vshll.u32 %v3715, 30
  %v3717 = vsub.s32 %v3713, %v3716
  %vm3718 = vcmp.lt.s32.totalorder %v3717, 0
  %v3719 = vsub.s32 0, %v3717
  %v3720 = vsel %vm3718, %v3719, %v3717
  %v3721 = vclz %v3720
  %v3722 = vsub.s32 %v3721, 2
  %vm3723 = vcmp.gt.s32.totalorder 0, %v3722
  %v3724 = vsel %vm3723, 0, %v3722
  %v3725 = vsub.s32 32, %v3724
  %v3726 = vshll.u32 %v3717, %v3724
  %v3727 = vshrl.u32 %v3709, %v3725
  %v3728 = vor.u32 %v3726, %v3727
  %v3729 = vsub.s32 4294967266, %v3724
  %v3730 = vadd.s32 %v3729, 127
  %v3731 = vshll.u32 %v3730, 23
  %v3732 = vor.u32 4788187, %v3731
  %v3733 = vand.u32 2147483647, %v3732
  %v3735 = vcvt.s32.f32 %v3728
  %v3736 = vmul.f32 %v3735, %v3733
  %v3737 = vxor.u32 %v3736, 2147483648
  %v3738 = vsel %vm3655, %v3737, %v3736
  %v3739 = vsub.s32 4, %v3715
  %v3740 = vsel %vm3655, %v3739, %v3715
  %v3741 = vsel %vm3654, %v427, %v3738
  %v3742 = vsel %vm3654, 0, %v3740
  %v3743 = vcosq.f32.pop %v3741
  %v3744 = vsinq.f32.pop %v3741
  %vm3745 = vweird.f32 %v427
  %v3746 = vadd.s32 %v3742, 3
  %v3747 = vand.u32 %v3746, 3
  %vm3748 = vcmp.lt.s32.totalorder %v3747, 2
  %vm3749 = vcmp.eq.s32.totalorder %v3747, 0
  %v3750 = vxor.u32 %v3744, 2147483648
  %v3751 = vsel %vm3749, %v3743, %v3750
  %vm3752 = vcmp.eq.s32.totalorder %v3747, 2
  %v3753 = vxor.u32 %v3743, 2147483648
  %v3754 = vsel %vm3752, %v3753, %v3744
  %v3755 = vsel %vm3748, %v3751, %v3754
  %v3756 = vsel %vm3745, nan, %v3755
  %3773 = vrot.lane.b32.xlu0 %v2196, 16
  %v3774 = vpop.permute.xlu0 %3773
  %3775 = vrot.lane.b32.xlu0 %v2300, 16
  %v3776 = vpop.permute.xlu0 %3775
  %3777 = vrot.lane.b32.xlu0 %v2404, 16
  %v3778 = vpop.permute.xlu0 %3777
  %3779 = vrot.lane.b32.xlu0 %v2508, 16
  %v3780 = vpop.permute.xlu0 %3779
  %3781 = vrot.lane.b32.xlu0 %v2612, 16
  %v3782 = vpop.permute.xlu0 %3781
  %3783 = vrot.lane.b32.xlu0 %v2716, 16
  %v3784 = vpop.permute.xlu0 %3783
  %3785 = vrot.lane.b32.xlu0 %v2820, 16
  %v3786 = vpop.permute.xlu0 %3785
  %3787 = vrot.lane.b32.xlu0 %v2924, 16
  %v3788 = vpop.permute.xlu0 %3787
  %3789 = vrot.lane.b32.xlu0 %v3028, 16
  %v3790 = vpop.permute.xlu0 %3789
  %3791 = vrot.lane.b32.xlu0 %v3132, 16
  %v3792 = vpop.permute.xlu0 %3791
  %3793 = vrot.lane.b32.xlu0 %v3236, 16
  %v3794 = vpop.permute.xlu0 %3793
  %3795 = vrot.lane.b32.xlu0 %v3340, 16
  %v3796 = vpop.permute.xlu0 %3795
  %3797 = vrot.lane.b32.xlu0 %v3444, 16
  %v3798 = vpop.permute.xlu0 %3797
  %3799 = vrot.lane.b32.xlu0 %v3548, 16
  %v3800 = vpop.permute.xlu0 %3799
  %3801 = vrot.lane.b32.xlu0 %v3652, 16
  %v3802 = vpop.permute.xlu0 %3801
  %3803 = vrot.lane.b32.xlu0 %v3756, 16
  %v3804 = vpop.permute.xlu0 %3803
  %vm3821 = vcmask 261248
  %3822 = vst.msk [vmem:[%s2] sm:$0xff] %vm3821, %v3774
  %3823 = vst.msk [vmem:[%s2 + $0x8] sm:$0xff] %vm3821, %v3776
  %3824 = vst.msk [vmem:[%s2 + $0x10] sm:$0xff] %vm3821, %v3778
  %3825 = vst.msk [vmem:[%s2 + $0x18] sm:$0xff] %vm3821, %v3780
  %3826 = vst.msk [vmem:[%s2 + $0x20] sm:$0xff] %vm3821, %v3782
  %3827 = vst.msk [vmem:[%s2 + $0x28] sm:$0xff] %vm3821, %v3784
  %3828 = vst.msk [vmem:[%s2 + $0x30] sm:$0xff] %vm3821, %v3786
  %3829 = vst.msk [vmem:[%s2 + $0x38] sm:$0xff] %vm3821, %v3788
  %3830 = vst.msk [vmem:[%s2 + $0x40] sm:$0xff] %vm3821, %v3790
  %3831 = vst.msk [vmem:[%s2 + $0x48] sm:$0xff] %vm3821, %v3792
  %3832 = vst.msk [vmem:[%s2 + $0x50] sm:$0xff] %vm3821, %v3794
  %3833 = vst.msk [vmem:[%s2 + $0x58] sm:$0xff] %vm3821, %v3796
  %3834 = vst.msk [vmem:[%s2 + $0x60] sm:$0xff] %vm3821, %v3798
  %3835 = vst.msk [vmem:[%s2 + $0x68] sm:$0xff] %vm3821, %v3800
  %3836 = vst.msk [vmem:[%s2 + $0x70] sm:$0xff] %vm3821, %v3802
  %3837 = vst.msk [vmem:[%s2 + $0x78] sm:$0xff] %vm3821, %v3804
  // Predicated region
  $region10: #{tpu_custom_call.1} parent=0 // pred_check
    _
  $region11: #{tpu_custom_call.1} parent=0 // pred_check_branch
    %3839 = sbr.rel (0) target = $region13
  $region12: #{tpu_custom_call.1} parent=0 // pred_region
    _
  $region13: #{tpu_custom_call.1} parent=0 // pred_fallthru
    _
  // Predicated region
  $region14: #{tpu_custom_call.1} parent=0 // pred_check
    _
  $region15: #{tpu_custom_call.1} parent=0 // pred_check_branch
    %3841 = sbr.rel (0) target = $region17
  $region16: #{tpu_custom_call.1} parent=0 // pred_region
    _
  $region17: #{tpu_custom_call.1} parent=0 // pred_fallthru
    _

</llo_original>
